<compile_context>
chip_gen: v7x
topology: tpu7x:2x2x1
jax: 0.10.0
libtpu: 0.0.40
codegen_flags: <defaults>
</compile_context>

<pallas_src>
import functools

import jax
import jax.numpy as jnp
from jax.experimental import pallas as pl
from jax.experimental.pallas import tpu as pltpu

# --- hyperparameters (the globals the PyTorch module relies on) -------------
VOCAB_SIZE = 64
N_EMBED = 32
N_HEADS = 4
N_LAYERS = 2
BLOCK_SIZE = 8     # max context length T (power of 2: required by mask trick)
DROPOUT = 0.0      # TODO(synk): dropout is identity at inference; training-mode
                   # dropout masks are not implemented.

_VOCAB_PAD = 128   # vocab padded to a full lane width for lane-dense stores


def _layernorm(x, g, b, eps=1e-5):
    # PyTorch nn.LayerNorm: biased variance over the last dim, eps=1e-5.
    mu = jnp.mean(x, axis=-1, keepdims=True)
    var = jnp.mean(jnp.square(x - mu), axis=-1, keepdims=True)
    return (x - mu) * jax.lax.rsqrt(var + eps) * g + b


def _transformer_layer(x, wa, w1, w2, vecs, bias, n_heads):
    """One pre-LN transformer block on flattened rows x: (N, C)."""
    N, C = x.shape
    hs = C // n_heads

    # Packed per-layer vectors (rows of an (8, 4C) slab, slices start at lane 0):
    ln1g, ln1b = vecs[0:1, :C], vecs[1:2, :C]
    bp = vecs[2:3, :C]
    ln2g, ln2b = vecs[3:4, :C], vecs[4:5, :C]
    b2 = vecs[5:6, :C]
    b1 = vecs[6:7, :]          # (1, 4C)

    # --- multi-head causal self-attention on ln1(x) ---
    h = _layernorm(x, ln1g, ln1b)
    q = jnp.dot(h, wa[0], preferred_element_type=jnp.float32)   # (N, C)
    k = jnp.dot(h, wa[1], preferred_element_type=jnp.float32)
    v = jnp.dot(h, wa[2], preferred_element_type=jnp.float32)
    wp = wa[3]

    scale = C ** -0.5          # reference scales by n_embed**-0.5 (intentional)
    acc = jnp.zeros((N, C), jnp.float32)
    for hd in range(n_heads):                       # static unroll, 2-D dots only
        sl = slice(hd * hs, (hd + 1) * hs)
        qh, kh, vh = q[:, sl], k[:, sl], v[:, sl]   # (N, hs)
        # scores over ALL flattened rows; additive block-diagonal bias removes
        # cross-batch / future terms.  (N,hs)x(N,hs)^T -> (N,N)
        s = jax.lax.dot_general(qh, kh, (((1,), (1,)), ((), ())),
                                preferred_element_type=jnp.float32) * scale + bias
        s = s - jnp.max(s, axis=-1, keepdims=True)
        p = jnp.exp(s)
        p = p * pl.reciprocal(jnp.sum(p, axis=-1, keepdims=True), approx=True)
        oh = jnp.dot(p, vh, preferred_element_type=jnp.float32)  # (N, hs)
        # concat-free head merge: concat_h(oh) @ Wp == sum_h oh @ Wp[rows_h]
        acc = acc + jnp.dot(oh, wp[sl, :], preferred_element_type=jnp.float32)
    x = x + acc + bp

    # --- feed-forward on ln2(x) ---
    h2 = _layernorm(x, ln2g, ln2b)
    ff = jnp.maximum(jnp.dot(h2, w1, preferred_element_type=jnp.float32) + b1, 0.0)
    ff = jnp.dot(ff, w2, preferred_element_type=jnp.float32) + b2
    return x + ff


def _gpt_kernel(idx_ref, tok_ref, pos_ref, wattn_ref, w1_ref, w2_ref, vecs_ref,
                wlm_ref, fvecs_ref, o_ref, *, n_heads, n_layers, seq_len):
    N = o_ref.shape[0]                               # N = B*T flattened rows
    V, C = tok_ref.shape
    P = pos_ref.shape[0]                             # BLOCK_SIZE
    T = seq_len

    # --- fused embeddings: exact one-hot gathers via MXU matmuls ---
    idx = idx_ref[...]                               # (N, 1) int32
    tok_col = jax.lax.broadcasted_iota(jnp.int32, (N, V), 1)
    tok_oh = (idx == tok_col).astype(jnp.float32)    # (N, V) one-hot
    x = jnp.dot(tok_oh, tok_ref[...], preferred_element_type=jnp.float32)

    prow = jax.lax.broadcasted_iota(jnp.int32, (N, P), 0)
    pcol = jax.lax.broadcasted_iota(jnp.int32, (N, P), 1)
    pos_oh = ((prow & (T - 1)) == pcol).astype(jnp.float32)   # row i -> pos i%T
    x = x + jnp.dot(pos_oh, pos_ref[...], preferred_element_type=jnp.float32)

    # Block-diagonal causal mask on the flattened rows, as an additive bias.
    # same-sequence(i, j) <=> (i XOR j) < T   (T is a power of two).
    row = jax.lax.broadcasted_iota(jnp.int32, (N, N), 0)
    col = jax.lax.broadcasted_iota(jnp.int32, (N, N), 1)
    allowed = jnp.logical_and(col <= row, jnp.bitwise_xor(row, col) < T)
    bias = jnp.where(allowed, 0.0, -1e30).astype(jnp.float32)  # finite: no NaN risk

    for layer in range(n_layers):                    # static unroll (n_layers=2)
        x = _transformer_layer(x, wattn_ref[layer], w1_ref[layer],
                               w2_ref[layer], vecs_ref[layer], bias, n_heads)

    # final LayerNorm + lm_head (vocab padded to 128 lanes -> lane-dense store)
    fvecs = fvecs_ref[...]
    h = _layernorm(x, fvecs[0:1, :C], fvecs[1:2, :C])
    logits = jnp.dot(h, wlm_ref[...], preferred_element_type=jnp.float32) \
        + fvecs[2:3, :]
    o_ref[...] = logits.astype(o_ref.dtype)


# ------------------------------ wrapper --------------------------------------
def gpt_forward(idx, params):
    """targets=None path of GPT.forward: returns logits (B, T, vocab)."""
    B, T = idx.shape
    assert T <= BLOCK_SIZE and (T & (T - 1)) == 0, "T must be a power of 2 <= BLOCK_SIZE"

    vp = params["wlm_p"].shape[-1]
    idx_flat = idx.reshape(B * T, 1).astype(jnp.int32)

    kernel = functools.partial(_gpt_kernel, n_heads=N_HEADS,
                               n_layers=N_LAYERS, seq_len=T)
    vmem = pl.BlockSpec(memory_space=pltpu.MemorySpace.VMEM)
    logits_p = pl.pallas_call(
        kernel,
        out_shape=jax.ShapeDtypeStruct((B * T, vp), jnp.float32),
        in_specs=[vmem] * 9,
        out_specs=vmem,
    )(idx_flat, params["tok_emb"], params["pos_emb"], params["wattn"],
      params["w1"], params["w2"], params["vecs"], params["wlm_p"],
      params["fvecs"])

    return logits_p.reshape(B, T, vp)[:, :, :VOCAB_SIZE]


# --------------------------- parameter init ----------------------------------
def init_params(key):
    C, V, H4 = N_EMBED, VOCAB_SIZE, 4 * N_EMBED

    def nrm(k, shape, scale=0.02):
        return (scale * jax.random.normal(k, shape)).astype(jnp.float32)

    keys = jax.random.split(key, 3 + N_LAYERS)
    tok_emb = nrm(keys[0], (V, C))
    pos_emb = nrm(keys[1], (BLOCK_SIZE, C))

    # lm_head, zero-padded along the vocab dim to 128 lanes.
    wlm = nrm(keys[2], (C, V))
    wlm_p = jnp.zeros((C, _VOCAB_PAD), jnp.float32).at[:, :V].set(wlm)
    fvecs = jnp.zeros((8, _VOCAB_PAD), jnp.float32)
    fvecs = fvecs.at[0, :C].set(1.0)      # ln_f gamma; ln_f beta / blm are zero

    wattn, w1s, w2s, vecs = [], [], [], []
    for l in range(N_LAYERS):
        ks = jax.random.split(keys[3 + l], 6)
        wq, wk = nrm(ks[0], (C, C)), nrm(ks[1], (C, C))
        wv, wp = nrm(ks[2], (C, C)), nrm(ks[3], (C, C))
        wattn.append(jnp.stack([wq, wk, wv, wp]))            # (4, C, C)
        w1s.append(nrm(ks[4], (C, H4)))                       # (C, 4C)
        w2s.append(nrm(ks[5], (H4, C)))                       # (4C, C)
        # packed slab (8, 4C): rows = ln1g, ln1b, bp, ln2g, ln2b, b2, b1, pad
        vl = jnp.zeros((8, H4), jnp.float32)
        vl = vl.at[0, :C].set(1.0)                            # ln1 gamma
        vl = vl.at[3, :C].set(1.0)                            # ln2 gamma
        vecs.append(vl)

    return {
        "tok_emb": tok_emb,          # (V, C)
        "pos_emb": pos_emb,          # (BLOCK_SIZE, C)
        "wattn": jnp.stack(wattn),   # (L, 4, C, C)
        "w1": jnp.stack(w1s),        # (L, C, 4C)
        "w2": jnp.stack(w2s),        # (L, 4C, C)
        "vecs": jnp.stack(vecs),     # (L, 8, 4C)
        "wlm_p": wlm_p,              # (C, 128)
        "fvecs": fvecs,              # (8, 128)
    }


if __name__ == "__main__":
    B, T = 2, BLOCK_SIZE
    key = jax.random.PRNGKey(0)
    k_idx, k_params = jax.random.split(key)
    idx = jax.random.randint(k_idx, (B, T), 0, VOCAB_SIZE, dtype=jnp.int32)
    params = init_params(k_params)

    logits = jax.jit(gpt_forward)(idx, params)
    jax.block_until_ready(logits)
    assert logits.shape == (B, T, VOCAB_SIZE)
    assert logits.dtype == jnp.float32
    print("KERNEL_OK")
</pallas_src>

<mosaic_0001>
module attributes {stable_mosaic.version = 11 : i64} {
  func.func @_gpt_kernel(%arg0: memref<16x1xi32, #tpu.memory_space<vmem>>, %arg1: memref<64x32xf32, #tpu.memory_space<vmem>>, %arg2: memref<8x32xf32, #tpu.memory_space<vmem>>, %arg3: memref<2x4x32x32xf32, #tpu.memory_space<vmem>>, %arg4: memref<2x32x128xf32, #tpu.memory_space<vmem>>, %arg5: memref<2x128x32xf32, #tpu.memory_space<vmem>>, %arg6: memref<2x8x128xf32, #tpu.memory_space<vmem>>, %arg7: memref<32x128xf32, #tpu.memory_space<vmem>>, %arg8: memref<8x128xf32, #tpu.memory_space<vmem>>, %arg9: memref<16x128xf32, #tpu.memory_space<vmem>>) attributes {dimension_semantics = [], scalar_prefetch = 0 : i64, scratch_operands = 0 : i64, tpu.core_type = #tpu.core_type<tc>} {
    %c0 = arith.constant 0 : index
    %c0_0 = arith.constant 0 : index
    %0 = vector.load %arg0[%c0, %c0_0] : memref<16x1xi32, #tpu.memory_space<vmem>>, vector<16x1xi32>
    %1 = tpu.iota {dimensions = array<i32: 1>} : vector<16x64xi32>
    %2 = vector.broadcast %0 : vector<16x1xi32> to vector<16x64xi32>
    %3 = arith.cmpi eq, %2, %1 : vector<16x64xi32>
    %4 = arith.extui %3 : vector<16x64xi1> to vector<16x64xi32>
    %5 = arith.sitofp %4 : vector<16x64xi32> to vector<16x64xf32>
    %c0_1 = arith.constant 0 : index
    %c0_2 = arith.constant 0 : index
    %6 = vector.load %arg1[%c0_1, %c0_2] : memref<64x32xf32, #tpu.memory_space<vmem>>, vector<64x32xf32>
    %cst = arith.constant dense<0.000000e+00> : vector<16x32xf32>
    %7 = tpu.matmul %5, %6, %cst {dimension_numbers = #tpu.dot_dimension_numbers<[1], [0], [0], [1], [0, 0, 1, 1], [], []>} : vector<16x64xf32>, vector<64x32xf32>, vector<16x32xf32> -> vector<16x32xf32>
    %8 = tpu.iota {dimensions = array<i32: 0>} : vector<16x8xi32>
    %9 = tpu.iota {dimensions = array<i32: 1>} : vector<16x8xi32>
    %c7_i32 = arith.constant 7 : i32
    %10 = vector.broadcast %c7_i32 : i32 to vector<16x8xi32>
    %11 = arith.andi %8, %10 : vector<16x8xi32>
    %12 = arith.cmpi eq, %11, %9 : vector<16x8xi32>
    %13 = arith.extui %12 : vector<16x8xi1> to vector<16x8xi32>
    %14 = arith.sitofp %13 : vector<16x8xi32> to vector<16x8xf32>
    %c0_3 = arith.constant 0 : index
    %c0_4 = arith.constant 0 : index
    %15 = vector.load %arg2[%c0_3, %c0_4] : memref<8x32xf32, #tpu.memory_space<vmem>>, vector<8x32xf32>
    %cst_5 = arith.constant dense<0.000000e+00> : vector<16x32xf32>
    %16 = tpu.matmul %14, %15, %cst_5 {dimension_numbers = #tpu.dot_dimension_numbers<[1], [0], [0], [1], [0, 0, 1, 1], [], []>} : vector<16x8xf32>, vector<8x32xf32>, vector<16x32xf32> -> vector<16x32xf32>
    %17 = arith.addf %7, %16 : vector<16x32xf32>
    %18 = tpu.iota {dimensions = array<i32: 0>} : vector<16x16xi32>
    %19 = tpu.iota {dimensions = array<i32: 1>} : vector<16x16xi32>
    %20 = arith.cmpi sle, %19, %18 : vector<16x16xi32>
    %21 = arith.xori %18, %19 : vector<16x16xi32>
    %c8_i32 = arith.constant 8 : i32
    %22 = vector.broadcast %c8_i32 : i32 to vector<16x16xi32>
    %23 = arith.cmpi slt, %21, %22 : vector<16x16xi32>
    %24 = arith.andi %20, %23 : vector<16x16xi1>
    %cst_6 = arith.constant 0.000000e+00 : f32
    %cst_7 = arith.constant -1.000000e+30 : f32
    %25 = vector.broadcast %cst_6 : f32 to vector<16x16xf32>
    %26 = vector.broadcast %cst_7 : f32 to vector<16x16xf32>
    %27 = arith.select %24, %25, %26 : vector<16x16xi1>, vector<16x16xf32>
    %c0_8 = arith.constant 0 : index
    %c0_9 = arith.constant 0 : index
    %c0_10 = arith.constant 0 : index
    %c0_11 = arith.constant 0 : index
    %28 = vector.load %arg3[%c0_8, %c0_9, %c0_10, %c0_11] : memref<2x4x32x32xf32, #tpu.memory_space<vmem>>, vector<1x4x32x32xf32>
    %29 = vector.shape_cast %28 : vector<1x4x32x32xf32> to vector<4x32x32xf32>
    %c0_12 = arith.constant 0 : index
    %c0_13 = arith.constant 0 : index
    %c0_14 = arith.constant 0 : index
    %30 = vector.load %arg4[%c0_12, %c0_13, %c0_14] : memref<2x32x128xf32, #tpu.memory_space<vmem>>, vector<1x32x128xf32>
    %31 = vector.shape_cast %30 : vector<1x32x128xf32> to vector<32x128xf32>
    %c0_15 = arith.constant 0 : index
    %c0_16 = arith.constant 0 : index
    %c0_17 = arith.constant 0 : index
    %32 = vector.load %arg5[%c0_15, %c0_16, %c0_17] : memref<2x128x32xf32, #tpu.memory_space<vmem>>, vector<1x128x32xf32>
    %33 = vector.shape_cast %32 : vector<1x128x32xf32> to vector<128x32xf32>
    %c0_18 = arith.constant 0 : index
    %c0_19 = arith.constant 0 : index
    %c0_20 = arith.constant 0 : index
    %34 = vector.load %arg6[%c0_18, %c0_19, %c0_20] : memref<2x8x128xf32, #tpu.memory_space<vmem>>, vector<1x8x128xf32>
    %35 = vector.shape_cast %34 : vector<1x8x128xf32> to vector<8x128xf32>
    %36 = vector.extract_strided_slice %35 {offsets = [0, 0], sizes = [1, 32], strides = [1, 1]} : vector<8x128xf32> to vector<1x32xf32>
    %37 = vector.extract_strided_slice %35 {offsets = [1, 0], sizes = [1, 32], strides = [1, 1]} : vector<8x128xf32> to vector<1x32xf32>
    %38 = vector.extract_strided_slice %35 {offsets = [2, 0], sizes = [1, 32], strides = [1, 1]} : vector<8x128xf32> to vector<1x32xf32>
    %39 = vector.extract_strided_slice %35 {offsets = [3, 0], sizes = [1, 32], strides = [1, 1]} : vector<8x128xf32> to vector<1x32xf32>
    %40 = vector.extract_strided_slice %35 {offsets = [4, 0], sizes = [1, 32], strides = [1, 1]} : vector<8x128xf32> to vector<1x32xf32>
    %41 = vector.extract_strided_slice %35 {offsets = [5, 0], sizes = [1, 32], strides = [1, 1]} : vector<8x128xf32> to vector<1x32xf32>
    %42 = vector.extract_strided_slice %35 {offsets = [6, 0], sizes = [1, 128], strides = [1, 1]} : vector<8x128xf32> to vector<1x128xf32>
    %cst_21 = arith.constant dense<0.000000e+00> : vector<16xf32>
    %43 = vector.multi_reduction <add>, %17, %cst_21 [1] : vector<16x32xf32> to vector<16xf32>
    %44 = vector.shape_cast %43 : vector<16xf32> to vector<16x1xf32>
    %cst_22 = arith.constant 3.200000e+01 : f32
    %45 = vector.broadcast %cst_22 : f32 to vector<16x1xf32>
    %46 = arith.divf %44, %45 : vector<16x1xf32>
    %47 = vector.broadcast %46 : vector<16x1xf32> to vector<16x32xf32>
    %48 = arith.subf %17, %47 : vector<16x32xf32>
    %49 = arith.mulf %48, %48 : vector<16x32xf32>
    %cst_23 = arith.constant dense<0.000000e+00> : vector<16xf32>
    %50 = vector.multi_reduction <add>, %49, %cst_23 [1] : vector<16x32xf32> to vector<16xf32>
    %51 = vector.shape_cast %50 : vector<16xf32> to vector<16x1xf32>
    %cst_24 = arith.constant 3.200000e+01 : f32
    %52 = vector.broadcast %cst_24 : f32 to vector<16x1xf32>
    %53 = arith.divf %51, %52 : vector<16x1xf32>
    %54 = vector.broadcast %46 : vector<16x1xf32> to vector<16x32xf32>
    %55 = arith.subf %17, %54 : vector<16x32xf32>
    %cst_25 = arith.constant 9.99999974E-6 : f32
    %56 = vector.broadcast %cst_25 : f32 to vector<16x1xf32>
    %57 = arith.addf %53, %56 : vector<16x1xf32>
    %58 = math.rsqrt %57 : vector<16x1xf32>
    %59 = vector.broadcast %58 : vector<16x1xf32> to vector<16x32xf32>
    %60 = arith.mulf %55, %59 : vector<16x32xf32>
    %61 = vector.broadcast %36 : vector<1x32xf32> to vector<16x32xf32>
    %62 = arith.mulf %60, %61 : vector<16x32xf32>
    %63 = vector.broadcast %37 : vector<1x32xf32> to vector<16x32xf32>
    %64 = arith.addf %62, %63 : vector<16x32xf32>
    %65 = vector.extract_strided_slice %29 {offsets = [0, 0, 0], sizes = [1, 32, 32], strides = [1, 1, 1]} : vector<4x32x32xf32> to vector<1x32x32xf32>
    %66 = vector.shape_cast %65 : vector<1x32x32xf32> to vector<32x32xf32>
    %cst_26 = arith.constant dense<0.000000e+00> : vector<16x32xf32>
    %67 = tpu.matmul %64, %66, %cst_26 {dimension_numbers = #tpu.dot_dimension_numbers<[1], [0], [0], [1], [0, 0, 1, 1], [], []>} : vector<16x32xf32>, vector<32x32xf32>, vector<16x32xf32> -> vector<16x32xf32>
    %68 = vector.extract_strided_slice %29 {offsets = [1, 0, 0], sizes = [1, 32, 32], strides = [1, 1, 1]} : vector<4x32x32xf32> to vector<1x32x32xf32>
    %69 = vector.shape_cast %68 : vector<1x32x32xf32> to vector<32x32xf32>
    %cst_27 = arith.constant dense<0.000000e+00> : vector<16x32xf32>
    %70 = tpu.matmul %64, %69, %cst_27 {dimension_numbers = #tpu.dot_dimension_numbers<[1], [0], [0], [1], [0, 0, 1, 1], [], []>} : vector<16x32xf32>, vector<32x32xf32>, vector<16x32xf32> -> vector<16x32xf32>
    %71 = vector.extract_strided_slice %29 {offsets = [2, 0, 0], sizes = [1, 32, 32], strides = [1, 1, 1]} : vector<4x32x32xf32> to vector<1x32x32xf32>
    %72 = vector.shape_cast %71 : vector<1x32x32xf32> to vector<32x32xf32>
    %cst_28 = arith.constant dense<0.000000e+00> : vector<16x32xf32>
    %73 = tpu.matmul %64, %72, %cst_28 {dimension_numbers = #tpu.dot_dimension_numbers<[1], [0], [0], [1], [0, 0, 1, 1], [], []>} : vector<16x32xf32>, vector<32x32xf32>, vector<16x32xf32> -> vector<16x32xf32>
    %74 = vector.extract_strided_slice %29 {offsets = [3, 0, 0], sizes = [1, 32, 32], strides = [1, 1, 1]} : vector<4x32x32xf32> to vector<1x32x32xf32>
    %75 = vector.shape_cast %74 : vector<1x32x32xf32> to vector<32x32xf32>
    %cst_29 = arith.constant 0.000000e+00 : f32
    %76 = vector.broadcast %cst_29 : f32 to vector<16x32xf32>
    %77 = vector.extract_strided_slice %67 {offsets = [0, 0], sizes = [16, 8], strides = [1, 1]} : vector<16x32xf32> to vector<16x8xf32>
    %78 = vector.extract_strided_slice %70 {offsets = [0, 0], sizes = [16, 8], strides = [1, 1]} : vector<16x32xf32> to vector<16x8xf32>
    %79 = vector.extract_strided_slice %73 {offsets = [0, 0], sizes = [16, 8], strides = [1, 1]} : vector<16x32xf32> to vector<16x8xf32>
    %cst_30 = arith.constant dense<0.000000e+00> : vector<16x16xf32>
    %80 = tpu.matmul %77, %78, %cst_30 {dimension_numbers = #tpu.dot_dimension_numbers<[1], [1], [0], [0], [0, 0, 1, 0], [], []>} : vector<16x8xf32>, vector<16x8xf32>, vector<16x16xf32> -> vector<16x16xf32>
    %cst_31 = arith.constant 0.176776692 : f32
    %81 = vector.broadcast %cst_31 : f32 to vector<16x16xf32>
    %82 = arith.mulf %80, %81 : vector<16x16xf32>
    %83 = arith.addf %82, %27 : vector<16x16xf32>
    %cst_32 = arith.constant dense<0xFF800000> : vector<16xf32>
    %84 = vector.multi_reduction <maximumf>, %83, %cst_32 [1] : vector<16x16xf32> to vector<16xf32>
    %85 = vector.shape_cast %84 : vector<16xf32> to vector<16x1xf32>
    %86 = vector.broadcast %85 : vector<16x1xf32> to vector<16x16xf32>
    %87 = arith.subf %83, %86 : vector<16x16xf32>
    %88 = math.exp %87 : vector<16x16xf32>
    %cst_33 = arith.constant dense<0.000000e+00> : vector<16xf32>
    %89 = vector.multi_reduction <add>, %88, %cst_33 [1] : vector<16x16xf32> to vector<16xf32>
    %90 = vector.shape_cast %89 : vector<16xf32> to vector<16x1xf32>
    %91 = tpu.reciprocal %90 {approx = true} : vector<16x1xf32> -> vector<16x1xf32>
    %92 = vector.broadcast %91 : vector<16x1xf32> to vector<16x16xf32>
    %93 = arith.mulf %88, %92 : vector<16x16xf32>
    %cst_34 = arith.constant dense<0.000000e+00> : vector<16x8xf32>
    %94 = tpu.matmul %93, %79, %cst_34 {dimension_numbers = #tpu.dot_dimension_numbers<[1], [0], [0], [1], [0, 0, 1, 1], [], []>} : vector<16x16xf32>, vector<16x8xf32>, vector<16x8xf32> -> vector<16x8xf32>
    %95 = vector.extract_strided_slice %75 {offsets = [0, 0], sizes = [8, 32], strides = [1, 1]} : vector<32x32xf32> to vector<8x32xf32>
    %cst_35 = arith.constant dense<0.000000e+00> : vector<16x32xf32>
    %96 = tpu.matmul %94, %95, %cst_35 {dimension_numbers = #tpu.dot_dimension_numbers<[1], [0], [0], [1], [0, 0, 1, 1], [], []>} : vector<16x8xf32>, vector<8x32xf32>, vector<16x32xf32> -> vector<16x32xf32>
    %97 = arith.addf %76, %96 : vector<16x32xf32>
    %98 = vector.extract_strided_slice %67 {offsets = [0, 8], sizes = [16, 8], strides = [1, 1]} : vector<16x32xf32> to vector<16x8xf32>
    %99 = vector.extract_strided_slice %70 {offsets = [0, 8], sizes = [16, 8], strides = [1, 1]} : vector<16x32xf32> to vector<16x8xf32>
    %100 = vector.extract_strided_slice %73 {offsets = [0, 8], sizes = [16, 8], strides = [1, 1]} : vector<16x32xf32> to vector<16x8xf32>
    %cst_36 = arith.constant dense<0.000000e+00> : vector<16x16xf32>
    %101 = tpu.matmul %98, %99, %cst_36 {dimension_numbers = #tpu.dot_dimension_numbers<[1], [1], [0], [0], [0, 0, 1, 0], [], []>} : vector<16x8xf32>, vector<16x8xf32>, vector<16x16xf32> -> vector<16x16xf32>
    %cst_37 = arith.constant 0.176776692 : f32
    %102 = vector.broadcast %cst_37 : f32 to vector<16x16xf32>
    %103 = arith.mulf %101, %102 : vector<16x16xf32>
    %104 = arith.addf %103, %27 : vector<16x16xf32>
    %cst_38 = arith.constant dense<0xFF800000> : vector<16xf32>
    %105 = vector.multi_reduction <maximumf>, %104, %cst_38 [1] : vector<16x16xf32> to vector<16xf32>
    %106 = vector.shape_cast %105 : vector<16xf32> to vector<16x1xf32>
    %107 = vector.broadcast %106 : vector<16x1xf32> to vector<16x16xf32>
    %108 = arith.subf %104, %107 : vector<16x16xf32>
    %109 = math.exp %108 : vector<16x16xf32>
    %cst_39 = arith.constant dense<0.000000e+00> : vector<16xf32>
    %110 = vector.multi_reduction <add>, %109, %cst_39 [1] : vector<16x16xf32> to vector<16xf32>
    %111 = vector.shape_cast %110 : vector<16xf32> to vector<16x1xf32>
    %112 = tpu.reciprocal %111 {approx = true} : vector<16x1xf32> -> vector<16x1xf32>
    %113 = vector.broadcast %112 : vector<16x1xf32> to vector<16x16xf32>
    %114 = arith.mulf %109, %113 : vector<16x16xf32>
    %cst_40 = arith.constant dense<0.000000e+00> : vector<16x8xf32>
    %115 = tpu.matmul %114, %100, %cst_40 {dimension_numbers = #tpu.dot_dimension_numbers<[1], [0], [0], [1], [0, 0, 1, 1], [], []>} : vector<16x16xf32>, vector<16x8xf32>, vector<16x8xf32> -> vector<16x8xf32>
    %116 = vector.extract_strided_slice %75 {offsets = [8, 0], sizes = [8, 32], strides = [1, 1]} : vector<32x32xf32> to vector<8x32xf32>
    %cst_41 = arith.constant dense<0.000000e+00> : vector<16x32xf32>
    %117 = tpu.matmul %115, %116, %cst_41 {dimension_numbers = #tpu.dot_dimension_numbers<[1], [0], [0], [1], [0, 0, 1, 1], [], []>} : vector<16x8xf32>, vector<8x32xf32>, vector<16x32xf32> -> vector<16x32xf32>
    %118 = arith.addf %97, %117 : vector<16x32xf32>
    %119 = vector.extract_strided_slice %67 {offsets = [0, 16], sizes = [16, 8], strides = [1, 1]} : vector<16x32xf32> to vector<16x8xf32>
    %120 = vector.extract_strided_slice %70 {offsets = [0, 16], sizes = [16, 8], strides = [1, 1]} : vector<16x32xf32> to vector<16x8xf32>
    %121 = vector.extract_strided_slice %73 {offsets = [0, 16], sizes = [16, 8], strides = [1, 1]} : vector<16x32xf32> to vector<16x8xf32>
    %cst_42 = arith.constant dense<0.000000e+00> : vector<16x16xf32>
    %122 = tpu.matmul %119, %120, %cst_42 {dimension_numbers = #tpu.dot_dimension_numbers<[1], [1], [0], [0], [0, 0, 1, 0], [], []>} : vector<16x8xf32>, vector<16x8xf32>, vector<16x16xf32> -> vector<16x16xf32>
    %cst_43 = arith.constant 0.176776692 : f32
    %123 = vector.broadcast %cst_43 : f32 to vector<16x16xf32>
    %124 = arith.mulf %122, %123 : vector<16x16xf32>
    %125 = arith.addf %124, %27 : vector<16x16xf32>
    %cst_44 = arith.constant dense<0xFF800000> : vector<16xf32>
    %126 = vector.multi_reduction <maximumf>, %125, %cst_44 [1] : vector<16x16xf32> to vector<16xf32>
    %127 = vector.shape_cast %126 : vector<16xf32> to vector<16x1xf32>
    %128 = vector.broadcast %127 : vector<16x1xf32> to vector<16x16xf32>
    %129 = arith.subf %125, %128 : vector<16x16xf32>
    %130 = math.exp %129 : vector<16x16xf32>
    %cst_45 = arith.constant dense<0.000000e+00> : vector<16xf32>
    %131 = vector.multi_reduction <add>, %130, %cst_45 [1] : vector<16x16xf32> to vector<16xf32>
    %132 = vector.shape_cast %131 : vector<16xf32> to vector<16x1xf32>
    %133 = tpu.reciprocal %132 {approx = true} : vector<16x1xf32> -> vector<16x1xf32>
    %134 = vector.broadcast %133 : vector<16x1xf32> to vector<16x16xf32>
    %135 = arith.mulf %130, %134 : vector<16x16xf32>
    %cst_46 = arith.constant dense<0.000000e+00> : vector<16x8xf32>
    %136 = tpu.matmul %135, %121, %cst_46 {dimension_numbers = #tpu.dot_dimension_numbers<[1], [0], [0], [1], [0, 0, 1, 1], [], []>} : vector<16x16xf32>, vector<16x8xf32>, vector<16x8xf32> -> vector<16x8xf32>
    %137 = vector.extract_strided_slice %75 {offsets = [16, 0], sizes = [8, 32], strides = [1, 1]} : vector<32x32xf32> to vector<8x32xf32>
    %cst_47 = arith.constant dense<0.000000e+00> : vector<16x32xf32>
    %138 = tpu.matmul %136, %137, %cst_47 {dimension_numbers = #tpu.dot_dimension_numbers<[1], [0], [0], [1], [0, 0, 1, 1], [], []>} : vector<16x8xf32>, vector<8x32xf32>, vector<16x32xf32> -> vector<16x32xf32>
    %139 = arith.addf %118, %138 : vector<16x32xf32>
    %140 = vector.extract_strided_slice %67 {offsets = [0, 24], sizes = [16, 8], strides = [1, 1]} : vector<16x32xf32> to vector<16x8xf32>
    %141 = vector.extract_strided_slice %70 {offsets = [0, 24], sizes = [16, 8], strides = [1, 1]} : vector<16x32xf32> to vector<16x8xf32>
    %142 = vector.extract_strided_slice %73 {offsets = [0, 24], sizes = [16, 8], strides = [1, 1]} : vector<16x32xf32> to vector<16x8xf32>
    %cst_48 = arith.constant dense<0.000000e+00> : vector<16x16xf32>
    %143 = tpu.matmul %140, %141, %cst_48 {dimension_numbers = #tpu.dot_dimension_numbers<[1], [1], [0], [0], [0, 0, 1, 0], [], []>} : vector<16x8xf32>, vector<16x8xf32>, vector<16x16xf32> -> vector<16x16xf32>
    %cst_49 = arith.constant 0.176776692 : f32
    %144 = vector.broadcast %cst_49 : f32 to vector<16x16xf32>
    %145 = arith.mulf %143, %144 : vector<16x16xf32>
    %146 = arith.addf %145, %27 : vector<16x16xf32>
    %cst_50 = arith.constant dense<0xFF800000> : vector<16xf32>
    %147 = vector.multi_reduction <maximumf>, %146, %cst_50 [1] : vector<16x16xf32> to vector<16xf32>
    %148 = vector.shape_cast %147 : vector<16xf32> to vector<16x1xf32>
    %149 = vector.broadcast %148 : vector<16x1xf32> to vector<16x16xf32>
    %150 = arith.subf %146, %149 : vector<16x16xf32>
    %151 = math.exp %150 : vector<16x16xf32>
    %cst_51 = arith.constant dense<0.000000e+00> : vector<16xf32>
    %152 = vector.multi_reduction <add>, %151, %cst_51 [1] : vector<16x16xf32> to vector<16xf32>
    %153 = vector.shape_cast %152 : vector<16xf32> to vector<16x1xf32>
    %154 = tpu.reciprocal %153 {approx = true} : vector<16x1xf32> -> vector<16x1xf32>
    %155 = vector.broadcast %154 : vector<16x1xf32> to vector<16x16xf32>
    %156 = arith.mulf %151, %155 : vector<16x16xf32>
    %cst_52 = arith.constant dense<0.000000e+00> : vector<16x8xf32>
    %157 = tpu.matmul %156, %142, %cst_52 {dimension_numbers = #tpu.dot_dimension_numbers<[1], [0], [0], [1], [0, 0, 1, 1], [], []>} : vector<16x16xf32>, vector<16x8xf32>, vector<16x8xf32> -> vector<16x8xf32>
    %158 = vector.extract_strided_slice %75 {offsets = [24, 0], sizes = [8, 32], strides = [1, 1]} : vector<32x32xf32> to vector<8x32xf32>
    %cst_53 = arith.constant dense<0.000000e+00> : vector<16x32xf32>
    %159 = tpu.matmul %157, %158, %cst_53 {dimension_numbers = #tpu.dot_dimension_numbers<[1], [0], [0], [1], [0, 0, 1, 1], [], []>} : vector<16x8xf32>, vector<8x32xf32>, vector<16x32xf32> -> vector<16x32xf32>
    %160 = arith.addf %139, %159 : vector<16x32xf32>
    %161 = arith.addf %17, %160 : vector<16x32xf32>
    %162 = vector.broadcast %38 : vector<1x32xf32> to vector<16x32xf32>
    %163 = arith.addf %161, %162 : vector<16x32xf32>
    %cst_54 = arith.constant dense<0.000000e+00> : vector<16xf32>
    %164 = vector.multi_reduction <add>, %163, %cst_54 [1] : vector<16x32xf32> to vector<16xf32>
    %165 = vector.shape_cast %164 : vector<16xf32> to vector<16x1xf32>
    %cst_55 = arith.constant 3.200000e+01 : f32
    %166 = vector.broadcast %cst_55 : f32 to vector<16x1xf32>
    %167 = arith.divf %165, %166 : vector<16x1xf32>
    %168 = vector.broadcast %167 : vector<16x1xf32> to vector<16x32xf32>
    %169 = arith.subf %163, %168 : vector<16x32xf32>
    %170 = arith.mulf %169, %169 : vector<16x32xf32>
    %cst_56 = arith.constant dense<0.000000e+00> : vector<16xf32>
    %171 = vector.multi_reduction <add>, %170, %cst_56 [1] : vector<16x32xf32> to vector<16xf32>
    %172 = vector.shape_cast %171 : vector<16xf32> to vector<16x1xf32>
    %cst_57 = arith.constant 3.200000e+01 : f32
    %173 = vector.broadcast %cst_57 : f32 to vector<16x1xf32>
    %174 = arith.divf %172, %173 : vector<16x1xf32>
    %175 = vector.broadcast %167 : vector<16x1xf32> to vector<16x32xf32>
    %176 = arith.subf %163, %175 : vector<16x32xf32>
    %cst_58 = arith.constant 9.99999974E-6 : f32
    %177 = vector.broadcast %cst_58 : f32 to vector<16x1xf32>
    %178 = arith.addf %174, %177 : vector<16x1xf32>
    %179 = math.rsqrt %178 : vector<16x1xf32>
    %180 = vector.broadcast %179 : vector<16x1xf32> to vector<16x32xf32>
    %181 = arith.mulf %176, %180 : vector<16x32xf32>
    %182 = vector.broadcast %39 : vector<1x32xf32> to vector<16x32xf32>
    %183 = arith.mulf %181, %182 : vector<16x32xf32>
    %184 = vector.broadcast %40 : vector<1x32xf32> to vector<16x32xf32>
    %185 = arith.addf %183, %184 : vector<16x32xf32>
    %cst_59 = arith.constant dense<0.000000e+00> : vector<16x128xf32>
    %186 = tpu.matmul %185, %31, %cst_59 {dimension_numbers = #tpu.dot_dimension_numbers<[1], [0], [0], [1], [0, 0, 1, 1], [], []>} : vector<16x32xf32>, vector<32x128xf32>, vector<16x128xf32> -> vector<16x128xf32>
    %187 = vector.broadcast %42 : vector<1x128xf32> to vector<16x128xf32>
    %188 = arith.addf %186, %187 : vector<16x128xf32>
    %cst_60 = arith.constant 0.000000e+00 : f32
    %189 = vector.broadcast %cst_60 : f32 to vector<16x128xf32>
    %190 = arith.maximumf %188, %189 : vector<16x128xf32>
    %cst_61 = arith.constant dense<0.000000e+00> : vector<16x32xf32>
    %191 = tpu.matmul %190, %33, %cst_61 {dimension_numbers = #tpu.dot_dimension_numbers<[1], [0], [0], [1], [0, 0, 1, 1], [], []>} : vector<16x128xf32>, vector<128x32xf32>, vector<16x32xf32> -> vector<16x32xf32>
    %192 = vector.broadcast %41 : vector<1x32xf32> to vector<16x32xf32>
    %193 = arith.addf %191, %192 : vector<16x32xf32>
    %194 = arith.addf %163, %193 : vector<16x32xf32>
    %c1 = arith.constant 1 : index
    %c0_62 = arith.constant 0 : index
    %c0_63 = arith.constant 0 : index
    %c0_64 = arith.constant 0 : index
    %195 = vector.load %arg3[%c1, %c0_62, %c0_63, %c0_64] : memref<2x4x32x32xf32, #tpu.memory_space<vmem>>, vector<1x4x32x32xf32>
    %196 = vector.shape_cast %195 : vector<1x4x32x32xf32> to vector<4x32x32xf32>
    %c1_65 = arith.constant 1 : index
    %c0_66 = arith.constant 0 : index
    %c0_67 = arith.constant 0 : index
    %197 = vector.load %arg4[%c1_65, %c0_66, %c0_67] : memref<2x32x128xf32, #tpu.memory_space<vmem>>, vector<1x32x128xf32>
    %198 = vector.shape_cast %197 : vector<1x32x128xf32> to vector<32x128xf32>
    %c1_68 = arith.constant 1 : index
    %c0_69 = arith.constant 0 : index
    %c0_70 = arith.constant 0 : index
    %199 = vector.load %arg5[%c1_68, %c0_69, %c0_70] : memref<2x128x32xf32, #tpu.memory_space<vmem>>, vector<1x128x32xf32>
    %200 = vector.shape_cast %199 : vector<1x128x32xf32> to vector<128x32xf32>
    %c1_71 = arith.constant 1 : index
    %c0_72 = arith.constant 0 : index
    %c0_73 = arith.constant 0 : index
    %201 = vector.load %arg6[%c1_71, %c0_72, %c0_73] : memref<2x8x128xf32, #tpu.memory_space<vmem>>, vector<1x8x128xf32>
    %202 = vector.shape_cast %201 : vector<1x8x128xf32> to vector<8x128xf32>
    %203 = vector.extract_strided_slice %202 {offsets = [0, 0], sizes = [1, 32], strides = [1, 1]} : vector<8x128xf32> to vector<1x32xf32>
    %204 = vector.extract_strided_slice %202 {offsets = [1, 0], sizes = [1, 32], strides = [1, 1]} : vector<8x128xf32> to vector<1x32xf32>
    %205 = vector.extract_strided_slice %202 {offsets = [2, 0], sizes = [1, 32], strides = [1, 1]} : vector<8x128xf32> to vector<1x32xf32>
    %206 = vector.extract_strided_slice %202 {offsets = [3, 0], sizes = [1, 32], strides = [1, 1]} : vector<8x128xf32> to vector<1x32xf32>
    %207 = vector.extract_strided_slice %202 {offsets = [4, 0], sizes = [1, 32], strides = [1, 1]} : vector<8x128xf32> to vector<1x32xf32>
    %208 = vector.extract_strided_slice %202 {offsets = [5, 0], sizes = [1, 32], strides = [1, 1]} : vector<8x128xf32> to vector<1x32xf32>
    %209 = vector.extract_strided_slice %202 {offsets = [6, 0], sizes = [1, 128], strides = [1, 1]} : vector<8x128xf32> to vector<1x128xf32>
    %cst_74 = arith.constant dense<0.000000e+00> : vector<16xf32>
    %210 = vector.multi_reduction <add>, %194, %cst_74 [1] : vector<16x32xf32> to vector<16xf32>
    %211 = vector.shape_cast %210 : vector<16xf32> to vector<16x1xf32>
    %cst_75 = arith.constant 3.200000e+01 : f32
    %212 = vector.broadcast %cst_75 : f32 to vector<16x1xf32>
    %213 = arith.divf %211, %212 : vector<16x1xf32>
    %214 = vector.broadcast %213 : vector<16x1xf32> to vector<16x32xf32>
    %215 = arith.subf %194, %214 : vector<16x32xf32>
    %216 = arith.mulf %215, %215 : vector<16x32xf32>
    %cst_76 = arith.constant dense<0.000000e+00> : vector<16xf32>
    %217 = vector.multi_reduction <add>, %216, %cst_76 [1] : vector<16x32xf32> to vector<16xf32>
    %218 = vector.shape_cast %217 : vector<16xf32> to vector<16x1xf32>
    %cst_77 = arith.constant 3.200000e+01 : f32
    %219 = vector.broadcast %cst_77 : f32 to vector<16x1xf32>
    %220 = arith.divf %218, %219 : vector<16x1xf32>
    %221 = vector.broadcast %213 : vector<16x1xf32> to vector<16x32xf32>
    %222 = arith.subf %194, %221 : vector<16x32xf32>
    %cst_78 = arith.constant 9.99999974E-6 : f32
    %223 = vector.broadcast %cst_78 : f32 to vector<16x1xf32>
    %224 = arith.addf %220, %223 : vector<16x1xf32>
    %225 = math.rsqrt %224 : vector<16x1xf32>
    %226 = vector.broadcast %225 : vector<16x1xf32> to vector<16x32xf32>
    %227 = arith.mulf %222, %226 : vector<16x32xf32>
    %228 = vector.broadcast %203 : vector<1x32xf32> to vector<16x32xf32>
    %229 = arith.mulf %227, %228 : vector<16x32xf32>
    %230 = vector.broadcast %204 : vector<1x32xf32> to vector<16x32xf32>
    %231 = arith.addf %229, %230 : vector<16x32xf32>
    %232 = vector.extract_strided_slice %196 {offsets = [0, 0, 0], sizes = [1, 32, 32], strides = [1, 1, 1]} : vector<4x32x32xf32> to vector<1x32x32xf32>
    %233 = vector.shape_cast %232 : vector<1x32x32xf32> to vector<32x32xf32>
    %cst_79 = arith.constant dense<0.000000e+00> : vector<16x32xf32>
    %234 = tpu.matmul %231, %233, %cst_79 {dimension_numbers = #tpu.dot_dimension_numbers<[1], [0], [0], [1], [0, 0, 1, 1], [], []>} : vector<16x32xf32>, vector<32x32xf32>, vector<16x32xf32> -> vector<16x32xf32>
    %235 = vector.extract_strided_slice %196 {offsets = [1, 0, 0], sizes = [1, 32, 32], strides = [1, 1, 1]} : vector<4x32x32xf32> to vector<1x32x32xf32>
    %236 = vector.shape_cast %235 : vector<1x32x32xf32> to vector<32x32xf32>
    %cst_80 = arith.constant dense<0.000000e+00> : vector<16x32xf32>
    %237 = tpu.matmul %231, %236, %cst_80 {dimension_numbers = #tpu.dot_dimension_numbers<[1], [0], [0], [1], [0, 0, 1, 1], [], []>} : vector<16x32xf32>, vector<32x32xf32>, vector<16x32xf32> -> vector<16x32xf32>
    %238 = vector.extract_strided_slice %196 {offsets = [2, 0, 0], sizes = [1, 32, 32], strides = [1, 1, 1]} : vector<4x32x32xf32> to vector<1x32x32xf32>
    %239 = vector.shape_cast %238 : vector<1x32x32xf32> to vector<32x32xf32>
    %cst_81 = arith.constant dense<0.000000e+00> : vector<16x32xf32>
    %240 = tpu.matmul %231, %239, %cst_81 {dimension_numbers = #tpu.dot_dimension_numbers<[1], [0], [0], [1], [0, 0, 1, 1], [], []>} : vector<16x32xf32>, vector<32x32xf32>, vector<16x32xf32> -> vector<16x32xf32>
    %241 = vector.extract_strided_slice %196 {offsets = [3, 0, 0], sizes = [1, 32, 32], strides = [1, 1, 1]} : vector<4x32x32xf32> to vector<1x32x32xf32>
    %242 = vector.shape_cast %241 : vector<1x32x32xf32> to vector<32x32xf32>
    %cst_82 = arith.constant 0.000000e+00 : f32
    %243 = vector.broadcast %cst_82 : f32 to vector<16x32xf32>
    %244 = vector.extract_strided_slice %234 {offsets = [0, 0], sizes = [16, 8], strides = [1, 1]} : vector<16x32xf32> to vector<16x8xf32>
    %245 = vector.extract_strided_slice %237 {offsets = [0, 0], sizes = [16, 8], strides = [1, 1]} : vector<16x32xf32> to vector<16x8xf32>
    %246 = vector.extract_strided_slice %240 {offsets = [0, 0], sizes = [16, 8], strides = [1, 1]} : vector<16x32xf32> to vector<16x8xf32>
    %cst_83 = arith.constant dense<0.000000e+00> : vector<16x16xf32>
    %247 = tpu.matmul %244, %245, %cst_83 {dimension_numbers = #tpu.dot_dimension_numbers<[1], [1], [0], [0], [0, 0, 1, 0], [], []>} : vector<16x8xf32>, vector<16x8xf32>, vector<16x16xf32> -> vector<16x16xf32>
    %cst_84 = arith.constant 0.176776692 : f32
    %248 = vector.broadcast %cst_84 : f32 to vector<16x16xf32>
    %249 = arith.mulf %247, %248 : vector<16x16xf32>
    %250 = arith.addf %249, %27 : vector<16x16xf32>
    %cst_85 = arith.constant dense<0xFF800000> : vector<16xf32>
    %251 = vector.multi_reduction <maximumf>, %250, %cst_85 [1] : vector<16x16xf32> to vector<16xf32>
    %252 = vector.shape_cast %251 : vector<16xf32> to vector<16x1xf32>
    %253 = vector.broadcast %252 : vector<16x1xf32> to vector<16x16xf32>
    %254 = arith.subf %250, %253 : vector<16x16xf32>
    %255 = math.exp %254 : vector<16x16xf32>
    %cst_86 = arith.constant dense<0.000000e+00> : vector<16xf32>
    %256 = vector.multi_reduction <add>, %255, %cst_86 [1] : vector<16x16xf32> to vector<16xf32>
    %257 = vector.shape_cast %256 : vector<16xf32> to vector<16x1xf32>
    %258 = tpu.reciprocal %257 {approx = true} : vector<16x1xf32> -> vector<16x1xf32>
    %259 = vector.broadcast %258 : vector<16x1xf32> to vector<16x16xf32>
    %260 = arith.mulf %255, %259 : vector<16x16xf32>
    %cst_87 = arith.constant dense<0.000000e+00> : vector<16x8xf32>
    %261 = tpu.matmul %260, %246, %cst_87 {dimension_numbers = #tpu.dot_dimension_numbers<[1], [0], [0], [1], [0, 0, 1, 1], [], []>} : vector<16x16xf32>, vector<16x8xf32>, vector<16x8xf32> -> vector<16x8xf32>
    %262 = vector.extract_strided_slice %242 {offsets = [0, 0], sizes = [8, 32], strides = [1, 1]} : vector<32x32xf32> to vector<8x32xf32>
    %cst_88 = arith.constant dense<0.000000e+00> : vector<16x32xf32>
    %263 = tpu.matmul %261, %262, %cst_88 {dimension_numbers = #tpu.dot_dimension_numbers<[1], [0], [0], [1], [0, 0, 1, 1], [], []>} : vector<16x8xf32>, vector<8x32xf32>, vector<16x32xf32> -> vector<16x32xf32>
    %264 = arith.addf %243, %263 : vector<16x32xf32>
    %265 = vector.extract_strided_slice %234 {offsets = [0, 8], sizes = [16, 8], strides = [1, 1]} : vector<16x32xf32> to vector<16x8xf32>
    %266 = vector.extract_strided_slice %237 {offsets = [0, 8], sizes = [16, 8], strides = [1, 1]} : vector<16x32xf32> to vector<16x8xf32>
    %267 = vector.extract_strided_slice %240 {offsets = [0, 8], sizes = [16, 8], strides = [1, 1]} : vector<16x32xf32> to vector<16x8xf32>
    %cst_89 = arith.constant dense<0.000000e+00> : vector<16x16xf32>
    %268 = tpu.matmul %265, %266, %cst_89 {dimension_numbers = #tpu.dot_dimension_numbers<[1], [1], [0], [0], [0, 0, 1, 0], [], []>} : vector<16x8xf32>, vector<16x8xf32>, vector<16x16xf32> -> vector<16x16xf32>
    %cst_90 = arith.constant 0.176776692 : f32
    %269 = vector.broadcast %cst_90 : f32 to vector<16x16xf32>
    %270 = arith.mulf %268, %269 : vector<16x16xf32>
    %271 = arith.addf %270, %27 : vector<16x16xf32>
    %cst_91 = arith.constant dense<0xFF800000> : vector<16xf32>
    %272 = vector.multi_reduction <maximumf>, %271, %cst_91 [1] : vector<16x16xf32> to vector<16xf32>
    %273 = vector.shape_cast %272 : vector<16xf32> to vector<16x1xf32>
    %274 = vector.broadcast %273 : vector<16x1xf32> to vector<16x16xf32>
    %275 = arith.subf %271, %274 : vector<16x16xf32>
    %276 = math.exp %275 : vector<16x16xf32>
    %cst_92 = arith.constant dense<0.000000e+00> : vector<16xf32>
    %277 = vector.multi_reduction <add>, %276, %cst_92 [1] : vector<16x16xf32> to vector<16xf32>
    %278 = vector.shape_cast %277 : vector<16xf32> to vector<16x1xf32>
    %279 = tpu.reciprocal %278 {approx = true} : vector<16x1xf32> -> vector<16x1xf32>
    %280 = vector.broadcast %279 : vector<16x1xf32> to vector<16x16xf32>
    %281 = arith.mulf %276, %280 : vector<16x16xf32>
    %cst_93 = arith.constant dense<0.000000e+00> : vector<16x8xf32>
    %282 = tpu.matmul %281, %267, %cst_93 {dimension_numbers = #tpu.dot_dimension_numbers<[1], [0], [0], [1], [0, 0, 1, 1], [], []>} : vector<16x16xf32>, vector<16x8xf32>, vector<16x8xf32> -> vector<16x8xf32>
    %283 = vector.extract_strided_slice %242 {offsets = [8, 0], sizes = [8, 32], strides = [1, 1]} : vector<32x32xf32> to vector<8x32xf32>
    %cst_94 = arith.constant dense<0.000000e+00> : vector<16x32xf32>
    %284 = tpu.matmul %282, %283, %cst_94 {dimension_numbers = #tpu.dot_dimension_numbers<[1], [0], [0], [1], [0, 0, 1, 1], [], []>} : vector<16x8xf32>, vector<8x32xf32>, vector<16x32xf32> -> vector<16x32xf32>
    %285 = arith.addf %264, %284 : vector<16x32xf32>
    %286 = vector.extract_strided_slice %234 {offsets = [0, 16], sizes = [16, 8], strides = [1, 1]} : vector<16x32xf32> to vector<16x8xf32>
    %287 = vector.extract_strided_slice %237 {offsets = [0, 16], sizes = [16, 8], strides = [1, 1]} : vector<16x32xf32> to vector<16x8xf32>
    %288 = vector.extract_strided_slice %240 {offsets = [0, 16], sizes = [16, 8], strides = [1, 1]} : vector<16x32xf32> to vector<16x8xf32>
    %cst_95 = arith.constant dense<0.000000e+00> : vector<16x16xf32>
    %289 = tpu.matmul %286, %287, %cst_95 {dimension_numbers = #tpu.dot_dimension_numbers<[1], [1], [0], [0], [0, 0, 1, 0], [], []>} : vector<16x8xf32>, vector<16x8xf32>, vector<16x16xf32> -> vector<16x16xf32>
    %cst_96 = arith.constant 0.176776692 : f32
    %290 = vector.broadcast %cst_96 : f32 to vector<16x16xf32>
    %291 = arith.mulf %289, %290 : vector<16x16xf32>
    %292 = arith.addf %291, %27 : vector<16x16xf32>
    %cst_97 = arith.constant dense<0xFF800000> : vector<16xf32>
    %293 = vector.multi_reduction <maximumf>, %292, %cst_97 [1] : vector<16x16xf32> to vector<16xf32>
    %294 = vector.shape_cast %293 : vector<16xf32> to vector<16x1xf32>
    %295 = vector.broadcast %294 : vector<16x1xf32> to vector<16x16xf32>
    %296 = arith.subf %292, %295 : vector<16x16xf32>
    %297 = math.exp %296 : vector<16x16xf32>
    %cst_98 = arith.constant dense<0.000000e+00> : vector<16xf32>
    %298 = vector.multi_reduction <add>, %297, %cst_98 [1] : vector<16x16xf32> to vector<16xf32>
    %299 = vector.shape_cast %298 : vector<16xf32> to vector<16x1xf32>
    %300 = tpu.reciprocal %299 {approx = true} : vector<16x1xf32> -> vector<16x1xf32>
    %301 = vector.broadcast %300 : vector<16x1xf32> to vector<16x16xf32>
    %302 = arith.mulf %297, %301 : vector<16x16xf32>
    %cst_99 = arith.constant dense<0.000000e+00> : vector<16x8xf32>
    %303 = tpu.matmul %302, %288, %cst_99 {dimension_numbers = #tpu.dot_dimension_numbers<[1], [0], [0], [1], [0, 0, 1, 1], [], []>} : vector<16x16xf32>, vector<16x8xf32>, vector<16x8xf32> -> vector<16x8xf32>
    %304 = vector.extract_strided_slice %242 {offsets = [16, 0], sizes = [8, 32], strides = [1, 1]} : vector<32x32xf32> to vector<8x32xf32>
    %cst_100 = arith.constant dense<0.000000e+00> : vector<16x32xf32>
    %305 = tpu.matmul %303, %304, %cst_100 {dimension_numbers = #tpu.dot_dimension_numbers<[1], [0], [0], [1], [0, 0, 1, 1], [], []>} : vector<16x8xf32>, vector<8x32xf32>, vector<16x32xf32> -> vector<16x32xf32>
    %306 = arith.addf %285, %305 : vector<16x32xf32>
    %307 = vector.extract_strided_slice %234 {offsets = [0, 24], sizes = [16, 8], strides = [1, 1]} : vector<16x32xf32> to vector<16x8xf32>
    %308 = vector.extract_strided_slice %237 {offsets = [0, 24], sizes = [16, 8], strides = [1, 1]} : vector<16x32xf32> to vector<16x8xf32>
    %309 = vector.extract_strided_slice %240 {offsets = [0, 24], sizes = [16, 8], strides = [1, 1]} : vector<16x32xf32> to vector<16x8xf32>
    %cst_101 = arith.constant dense<0.000000e+00> : vector<16x16xf32>
    %310 = tpu.matmul %307, %308, %cst_101 {dimension_numbers = #tpu.dot_dimension_numbers<[1], [1], [0], [0], [0, 0, 1, 0], [], []>} : vector<16x8xf32>, vector<16x8xf32>, vector<16x16xf32> -> vector<16x16xf32>
    %cst_102 = arith.constant 0.176776692 : f32
    %311 = vector.broadcast %cst_102 : f32 to vector<16x16xf32>
    %312 = arith.mulf %310, %311 : vector<16x16xf32>
    %313 = arith.addf %312, %27 : vector<16x16xf32>
    %cst_103 = arith.constant dense<0xFF800000> : vector<16xf32>
    %314 = vector.multi_reduction <maximumf>, %313, %cst_103 [1] : vector<16x16xf32> to vector<16xf32>
    %315 = vector.shape_cast %314 : vector<16xf32> to vector<16x1xf32>
    %316 = vector.broadcast %315 : vector<16x1xf32> to vector<16x16xf32>
    %317 = arith.subf %313, %316 : vector<16x16xf32>
    %318 = math.exp %317 : vector<16x16xf32>
    %cst_104 = arith.constant dense<0.000000e+00> : vector<16xf32>
    %319 = vector.multi_reduction <add>, %318, %cst_104 [1] : vector<16x16xf32> to vector<16xf32>
    %320 = vector.shape_cast %319 : vector<16xf32> to vector<16x1xf32>
    %321 = tpu.reciprocal %320 {approx = true} : vector<16x1xf32> -> vector<16x1xf32>
    %322 = vector.broadcast %321 : vector<16x1xf32> to vector<16x16xf32>
    %323 = arith.mulf %318, %322 : vector<16x16xf32>
    %cst_105 = arith.constant dense<0.000000e+00> : vector<16x8xf32>
    %324 = tpu.matmul %323, %309, %cst_105 {dimension_numbers = #tpu.dot_dimension_numbers<[1], [0], [0], [1], [0, 0, 1, 1], [], []>} : vector<16x16xf32>, vector<16x8xf32>, vector<16x8xf32> -> vector<16x8xf32>
    %325 = vector.extract_strided_slice %242 {offsets = [24, 0], sizes = [8, 32], strides = [1, 1]} : vector<32x32xf32> to vector<8x32xf32>
    %cst_106 = arith.constant dense<0.000000e+00> : vector<16x32xf32>
    %326 = tpu.matmul %324, %325, %cst_106 {dimension_numbers = #tpu.dot_dimension_numbers<[1], [0], [0], [1], [0, 0, 1, 1], [], []>} : vector<16x8xf32>, vector<8x32xf32>, vector<16x32xf32> -> vector<16x32xf32>
    %327 = arith.addf %306, %326 : vector<16x32xf32>
    %328 = arith.addf %194, %327 : vector<16x32xf32>
    %329 = vector.broadcast %205 : vector<1x32xf32> to vector<16x32xf32>
    %330 = arith.addf %328, %329 : vector<16x32xf32>
    %cst_107 = arith.constant dense<0.000000e+00> : vector<16xf32>
    %331 = vector.multi_reduction <add>, %330, %cst_107 [1] : vector<16x32xf32> to vector<16xf32>
    %332 = vector.shape_cast %331 : vector<16xf32> to vector<16x1xf32>
    %cst_108 = arith.constant 3.200000e+01 : f32
    %333 = vector.broadcast %cst_108 : f32 to vector<16x1xf32>
    %334 = arith.divf %332, %333 : vector<16x1xf32>
    %335 = vector.broadcast %334 : vector<16x1xf32> to vector<16x32xf32>
    %336 = arith.subf %330, %335 : vector<16x32xf32>
    %337 = arith.mulf %336, %336 : vector<16x32xf32>
    %cst_109 = arith.constant dense<0.000000e+00> : vector<16xf32>
    %338 = vector.multi_reduction <add>, %337, %cst_109 [1] : vector<16x32xf32> to vector<16xf32>
    %339 = vector.shape_cast %338 : vector<16xf32> to vector<16x1xf32>
    %cst_110 = arith.constant 3.200000e+01 : f32
    %340 = vector.broadcast %cst_110 : f32 to vector<16x1xf32>
    %341 = arith.divf %339, %340 : vector<16x1xf32>
    %342 = vector.broadcast %334 : vector<16x1xf32> to vector<16x32xf32>
    %343 = arith.subf %330, %342 : vector<16x32xf32>
    %cst_111 = arith.constant 9.99999974E-6 : f32
    %344 = vector.broadcast %cst_111 : f32 to vector<16x1xf32>
    %345 = arith.addf %341, %344 : vector<16x1xf32>
    %346 = math.rsqrt %345 : vector<16x1xf32>
    %347 = vector.broadcast %346 : vector<16x1xf32> to vector<16x32xf32>
    %348 = arith.mulf %343, %347 : vector<16x32xf32>
    %349 = vector.broadcast %206 : vector<1x32xf32> to vector<16x32xf32>
    %350 = arith.mulf %348, %349 : vector<16x32xf32>
    %351 = vector.broadcast %207 : vector<1x32xf32> to vector<16x32xf32>
    %352 = arith.addf %350, %351 : vector<16x32xf32>
    %cst_112 = arith.constant dense<0.000000e+00> : vector<16x128xf32>
    %353 = tpu.matmul %352, %198, %cst_112 {dimension_numbers = #tpu.dot_dimension_numbers<[1], [0], [0], [1], [0, 0, 1, 1], [], []>} : vector<16x32xf32>, vector<32x128xf32>, vector<16x128xf32> -> vector<16x128xf32>
    %354 = vector.broadcast %209 : vector<1x128xf32> to vector<16x128xf32>
    %355 = arith.addf %353, %354 : vector<16x128xf32>
    %cst_113 = arith.constant 0.000000e+00 : f32
    %356 = vector.broadcast %cst_113 : f32 to vector<16x128xf32>
    %357 = arith.maximumf %355, %356 : vector<16x128xf32>
    %cst_114 = arith.constant dense<0.000000e+00> : vector<16x32xf32>
    %358 = tpu.matmul %357, %200, %cst_114 {dimension_numbers = #tpu.dot_dimension_numbers<[1], [0], [0], [1], [0, 0, 1, 1], [], []>} : vector<16x128xf32>, vector<128x32xf32>, vector<16x32xf32> -> vector<16x32xf32>
    %359 = vector.broadcast %208 : vector<1x32xf32> to vector<16x32xf32>
    %360 = arith.addf %358, %359 : vector<16x32xf32>
    %361 = arith.addf %330, %360 : vector<16x32xf32>
    %c0_115 = arith.constant 0 : index
    %c0_116 = arith.constant 0 : index
    %362 = vector.load %arg8[%c0_115, %c0_116] : memref<8x128xf32, #tpu.memory_space<vmem>>, vector<8x128xf32>
    %363 = vector.extract_strided_slice %362 {offsets = [0, 0], sizes = [1, 32], strides = [1, 1]} : vector<8x128xf32> to vector<1x32xf32>
    %364 = vector.extract_strided_slice %362 {offsets = [1, 0], sizes = [1, 32], strides = [1, 1]} : vector<8x128xf32> to vector<1x32xf32>
    %cst_117 = arith.constant dense<0.000000e+00> : vector<16xf32>
    %365 = vector.multi_reduction <add>, %361, %cst_117 [1] : vector<16x32xf32> to vector<16xf32>
    %366 = vector.shape_cast %365 : vector<16xf32> to vector<16x1xf32>
    %cst_118 = arith.constant 3.200000e+01 : f32
    %367 = vector.broadcast %cst_118 : f32 to vector<16x1xf32>
    %368 = arith.divf %366, %367 : vector<16x1xf32>
    %369 = vector.broadcast %368 : vector<16x1xf32> to vector<16x32xf32>
    %370 = arith.subf %361, %369 : vector<16x32xf32>
    %371 = arith.mulf %370, %370 : vector<16x32xf32>
    %cst_119 = arith.constant dense<0.000000e+00> : vector<16xf32>
    %372 = vector.multi_reduction <add>, %371, %cst_119 [1] : vector<16x32xf32> to vector<16xf32>
    %373 = vector.shape_cast %372 : vector<16xf32> to vector<16x1xf32>
    %cst_120 = arith.constant 3.200000e+01 : f32
    %374 = vector.broadcast %cst_120 : f32 to vector<16x1xf32>
    %375 = arith.divf %373, %374 : vector<16x1xf32>
    %376 = vector.broadcast %368 : vector<16x1xf32> to vector<16x32xf32>
    %377 = arith.subf %361, %376 : vector<16x32xf32>
    %cst_121 = arith.constant 9.99999974E-6 : f32
    %378 = vector.broadcast %cst_121 : f32 to vector<16x1xf32>
    %379 = arith.addf %375, %378 : vector<16x1xf32>
    %380 = math.rsqrt %379 : vector<16x1xf32>
    %381 = vector.broadcast %380 : vector<16x1xf32> to vector<16x32xf32>
    %382 = arith.mulf %377, %381 : vector<16x32xf32>
    %383 = vector.broadcast %363 : vector<1x32xf32> to vector<16x32xf32>
    %384 = arith.mulf %382, %383 : vector<16x32xf32>
    %385 = vector.broadcast %364 : vector<1x32xf32> to vector<16x32xf32>
    %386 = arith.addf %384, %385 : vector<16x32xf32>
    %c0_122 = arith.constant 0 : index
    %c0_123 = arith.constant 0 : index
    %387 = vector.load %arg7[%c0_122, %c0_123] : memref<32x128xf32, #tpu.memory_space<vmem>>, vector<32x128xf32>
    %cst_124 = arith.constant dense<0.000000e+00> : vector<16x128xf32>
    %388 = tpu.matmul %386, %387, %cst_124 {dimension_numbers = #tpu.dot_dimension_numbers<[1], [0], [0], [1], [0, 0, 1, 1], [], []>} : vector<16x32xf32>, vector<32x128xf32>, vector<16x128xf32> -> vector<16x128xf32>
    %389 = vector.extract_strided_slice %362 {offsets = [2, 0], sizes = [1, 128], strides = [1, 1]} : vector<8x128xf32> to vector<1x128xf32>
    %390 = vector.broadcast %389 : vector<1x128xf32> to vector<16x128xf32>
    %391 = arith.addf %388, %390 : vector<16x128xf32>
    %c0_125 = arith.constant 0 : index
    %c0_126 = arith.constant 0 : index
    %392 = vector.load %arg9[%c0_125, %c0_126] : memref<16x128xf32, #tpu.memory_space<vmem>>, vector<16x128xf32>
    tpu.vector_store %arg9[%c0_125, %c0_126], %391 {strides = array<i32>} : memref<16x128xf32, #tpu.memory_space<vmem>>, vector<16x128xf32>,
    return
  }
}

</mosaic_0001>

<llo_original>
// kernel: gpt_forward.1
$region0: #{gpt_forward.1}
  #allocation0 [shape = 'u32[]', space=smem, size = 0x4, offset = 0x4, fixed_abs, tag = 'smem constant byte address 0x4 - core index']
  #allocation1 [shape = 'u32[144,128]{1,0:T(1,128)}', space=vmem, size = 0x12000, scoped, tag = 'internal scratch']
  %s0 = inlined_call_operand.vmem [shape: s32[16,1], index: 0, kind: input, shape index: {}]
  %s1 = inlined_call_operand.vmem [shape: f32[64,32], index: 1, kind: input, shape index: {}]
  %s2 = inlined_call_operand.vmem [shape: f32[8,32], index: 2, kind: input, shape index: {}]
  %s3 = inlined_call_operand.vmem [shape: f32[2,4,32,32], index: 3, kind: input, shape index: {}]
  %s4 = inlined_call_operand.vmem [shape: f32[2,32,128], index: 4, kind: input, shape index: {}]
  %s5 = inlined_call_operand.vmem [shape: f32[2,128,32], index: 5, kind: input, shape index: {}]
  %s6 = inlined_call_operand.vmem [shape: f32[2,8,128], index: 6, kind: input, shape index: {}]
  %s7 = inlined_call_operand.vmem [shape: f32[32,128], index: 7, kind: input, shape index: {}]
  %s8 = inlined_call_operand.vmem [shape: f32[8,128], index: 8, kind: input, shape index: {}]
  %s9 = inlined_call_operand.hbm [shape: f32[16,128], index: 9, kind: output, shape index: {}]
  %s10 = sld [smem:[#allocation0]]
  $region46: #{gpt_forward.1} parent=0
    _
  %s12 = ssub.s32 1, %s10
  %s13 = scalar_select 0, %s12, %s10
  $region1: #{gpt_forward.1} parent=0
    #allocation2 [shape = 'u8[8192]{0}', space=vmem, size = 0x2000, scoped, tag = 'output window, operand 0, single buffered']
    #allocation3 [shape = 's32[1]{0}', space=sflag, size = 0x4, scoped, tag = 'scoped memory for gpt_forward.1']
    %14 = vsyncpa [#allocation3], 0
    // Predicated region
    $region2: #{gpt_forward.1} parent=1 // pred_check
      _
    $region3: #{gpt_forward.1} parent=1 // pred_check_branch
      %16 = sbr.rel (0) target = $region5
    $region4: #{gpt_forward.1} parent=1 // pred_region
      _
    $region5: #{gpt_forward.1} parent=1 // pred_fallthru
      _
    // Predicated region
    $region6: #{gpt_forward.1} parent=1 // pred_check
      _
    $region7: #{gpt_forward.1} parent=1 // pred_check_branch
      %18 = sbr.rel (0) target = $region9
    $region8: #{gpt_forward.1} parent=1 // pred_region
      _
    $region9: #{gpt_forward.1} parent=1 // pred_fallthru
      _
    // Predicated region
    $region10: #{gpt_forward.1} parent=1 // pred_check
      _
    $region11: #{gpt_forward.1} parent=1 // pred_check_branch
      %20 = sbr.rel (0) target = $region13
    $region12: #{gpt_forward.1} parent=1 // pred_region
      _
    $region13: #{gpt_forward.1} parent=1 // pred_fallthru
      _
    // Predicated region
    $region14: #{gpt_forward.1} parent=1 // pred_check
      _
    $region15: #{gpt_forward.1} parent=1 // pred_check_branch
      %22 = sbr.rel (0) target = $region17
    $region16: #{gpt_forward.1} parent=1 // pred_region
      _
    $region17: #{gpt_forward.1} parent=1 // pred_fallthru
      _
    // Predicated region
    $region18: #{gpt_forward.1} parent=1 // pred_check
      _
    $region19: #{gpt_forward.1} parent=1 // pred_check_branch
      %24 = sbr.rel (0) target = $region21
    $region20: #{gpt_forward.1} parent=1 // pred_region
      _
    $region21: #{gpt_forward.1} parent=1 // pred_fallthru
      _
    // Predicated region
    $region22: #{gpt_forward.1} parent=1 // pred_check
      _
    $region23: #{gpt_forward.1} parent=1 // pred_check_branch
      %26 = sbr.rel (0) target = $region25
    $region24: #{gpt_forward.1} parent=1 // pred_region
      _
    $region25: #{gpt_forward.1} parent=1 // pred_fallthru
      _
    // Predicated region
    $region26: #{gpt_forward.1} parent=1 // pred_check
      _
    $region27: #{gpt_forward.1} parent=1 // pred_check_branch
      %28 = sbr.rel (0) target = $region29
    $region28: #{gpt_forward.1} parent=1 // pred_region
      _
    $region29: #{gpt_forward.1} parent=1 // pred_fallthru
      _
    // Predicated region
    $region30: #{gpt_forward.1} parent=1 // pred_check
      _
    $region31: #{gpt_forward.1} parent=1 // pred_check_branch
      %30 = sbr.rel (0) target = $region33
    $region32: #{gpt_forward.1} parent=1 // pred_region
      _
    $region33: #{gpt_forward.1} parent=1 // pred_fallthru
      _
    // Predicated region
    $region34: #{gpt_forward.1} parent=1 // pred_check
      _
    $region35: #{gpt_forward.1} parent=1 // pred_check_branch
      %32 = sbr.rel (0) target = $region37
    $region36: #{gpt_forward.1} parent=1 // pred_region
      _
    $region37: #{gpt_forward.1} parent=1 // pred_fallthru
      _
    %v33 = vld [vmem:[%s0] sm:$0xff]
    %v34 = vld [vmem:[%s0 + $0x8] sm:$0xff]
    %v35 = vlaneseq
    %v36 = vand.u32 %v35, 127
    %37 = vset.pattern.permute.xlu0 0
    %38 = vperm.xlu0 %37, %v33
    %v39 = vpop.permute.xlu0 %38
    %40 = vset.pattern.permute.xlu0 0
    %41 = vperm.xlu0 %40, %v34
    %v42 = vpop.permute.xlu0 %41
    %vm43 = vcmp.eq.s32.totalorder %v39, %v36
    %vm44 = vcmp.eq.s32.totalorder %v42, %v36
    %v45 = vsel %vm43, 1, 0
    %v46 = vsel %vm44, 1, 0
    %v47 = vcvt.s32.f32 %v45
    %v48 = vcvt.s32.f32 %v46
    %v49 = vld [vmem:[%s1] sm:$0xff]
    %v50 = vld [vmem:[%s1 + $0x8] sm:$0xff]
    %v51 = vld [vmem:[%s1 + $0x10] sm:$0xff]
    %v52 = vld [vmem:[%s1 + $0x18] sm:$0xff]
    %v53 = vld [vmem:[%s1 + $0x20] sm:$0xff]
    %v54 = vld [vmem:[%s1 + $0x28] sm:$0xff]
    %v55 = vld [vmem:[%s1 + $0x30] sm:$0xff]
    %v56 = vld [vmem:[%s1 + $0x38] sm:$0xff]
    %v57 = vlaneseq
    %v58 = vshrl.u32 %v57, 7
    %v59 = vadd.s32 %v58, 8
    %v60 = vand.u32 %v58, 7
    %v61 = vand.u32 %v59, 7
    %vm62 = vcmp.eq.s32.totalorder %v60, %v36
    %vm63 = vcmp.eq.s32.totalorder %v61, %v36
    %v64 = vsel %vm62, 1, 0
    %v65 = vsel %vm63, 1, 0
    %v66 = vcvt.s32.f32 %v64
    %v67 = vcvt.s32.f32 %v65
    %v68 = vld [vmem:[%s2] sm:$0xff]
    %vm69 = vcmask 64512
    %v71 = vsel %vm69, %v66, 0
    %v74 = vsel %vm69, %v67, 0
    %76 = vmatprep.subr.mxu0 0.0
    %77 = vmatpush1.msra.mxu0 %v68
    %78 = vmatprep.subr.mxu0 0.0
    %79 = vmatpush1.msra.mxu0 0.0
    %80 = vmatprep.subr.mxu0 0.0
    %81 = vmatpush1.msra.mxu0 0.0
    %82 = vmatprep.subr.mxu0 0.0
    %83 = vmatpush1.msra.mxu0 0.0
    %84 = vmatprep.subr.mxu0 0.0
    %85 = vmatpush1.msra.mxu0 0.0
    %86 = vmatprep.subr.mxu0 0.0
    %87 = vmatpush1.msra.mxu0 0.0
    %88 = vmatprep.subr.mxu0 0.0
    %89 = vmatpush1.msra.mxu0 0.0
    %90 = vmatprep.subr.mxu0 0.0
    %91 = vmatpush1.msra.mxu0 0.0
    %92 = vmatprep.subr.mxu0 0.0
    %93 = vmatpush1.msra.mxu0 0.0
    %94 = vmatprep.subr.mxu0 0.0
    %95 = vmatpush1.msra.mxu0 0.0
    %96 = vmatprep.subr.mxu0 0.0
    %97 = vmatpush1.msra.mxu0 0.0
    %98 = vmatprep.subr.mxu0 0.0
    %99 = vmatpush1.msra.mxu0 0.0
    %100 = vmatprep.subr.mxu0 0.0
    %101 = vmatpush1.msra.mxu0 0.0
    %102 = vmatprep.subr.mxu0 0.0
    %103 = vmatpush1.msra.mxu0 0.0
    %104 = vmatprep.subr.mxu0 0.0
    %105 = vmatpush1.msra.mxu0 0.0
    %106 = vmatprep.subr.mxu0 0.0
    %107 = vmatpush1.msra.mxu0 0.0
    %108 = vmatprep.subr.mxu0 0.0
    %109 = vmatpush1.msra.mxu0 0.0
    %110 = vmatprep.subr.mxu0 0.0
    %111 = vmatpush1.msra.mxu0 0.0
    %112 = vmatprep.subr.mxu0 0.0
    %113 = vmatpush1.msra.mxu0 0.0
    %114 = vmatprep.subr.mxu0 0.0
    %115 = vmatpush1.msra.mxu0 0.0
    %116 = vmatprep.subr.mxu0 0.0
    %117 = vmatpush1.msra.mxu0 0.0
    %118 = vmatprep.subr.mxu0 0.0
    %119 = vmatpush1.msra.mxu0 0.0
    %120 = vmatprep.subr.mxu0 0.0
    %121 = vmatpush1.msra.mxu0 0.0
    %122 = vmatprep.subr.mxu0 0.0
    %123 = vmatpush1.msra.mxu0 0.0
    %124 = vmatprep.subr.mxu0 0.0
    %125 = vmatpush1.msra.mxu0 0.0
    %126 = vmatprep.subr.mxu0 0.0
    %127 = vmatpush1.msra.mxu0 0.0
    %128 = vmatprep.subr.mxu0 0.0
    %129 = vmatpush1.msra.mxu0 0.0
    %130 = vmatprep.subr.mxu0 0.0
    %131 = vmatpush1.msra.mxu0 0.0
    %132 = vmatprep.subr.mxu0 0.0
    %133 = vmatpush1.msra.mxu0 0.0
    %134 = vmatprep.subr.mxu0 0.0
    %135 = vmatpush1.msra.mxu0 0.0
    %136 = vmatprep.subr.mxu0 0.0
    %137 = vmatpush1.msra.mxu0 0.0
    %138 = vmatprep.subr.mxu0 0.0
    %139 = vmatpush1.msra.mxu0 0.0
    %140 = vmatprep.mubr.f32.mxu0 0.0
    %141 = vmatmul.mubr.f32.gmra.mrb[0].mxu0 %v71
    %v142 = vpop.f32.mrb[0].mxu0
    %v143 = vadd.f32 0.0, %v142
    %v144 = vpop.f32.mrb[0].mxu0
    %145 = vmatprep.mubr.f32.mxu0 0.0
    %146 = vmatmul.mubr.f32.gmra.mrb[0].mxu0 %v74
    %v147 = vpop.f32.mrb[0].mxu0
    %v148 = vadd.f32 0.0, %v147
    %v149 = vpop.f32.mrb[0].mxu0
    %150 = vdwg.mxu0
    %vm151 = vcmask 523264
    %v153 = vsel %vm151, %v47, 0
    %v156 = vsel %vm151, %v48, 0
    %158 = vmatprep.subr.mxu0 0.0
    %159 = vmatpush1.msra.mxu0 %v49
    %160 = vmatprep.subr.mxu0 0.0
    %161 = vmatpush1.msra.mxu0 %v50
    %162 = vmatprep.subr.mxu0 0.0
    %163 = vmatpush1.msra.mxu0 %v51
    %164 = vmatprep.subr.mxu0 0.0
    %165 = vmatpush1.msra.mxu0 %v52
    %166 = vmatprep.subr.mxu0 0.0
    %167 = vmatpush1.msra.mxu0 %v53
    %168 = vmatprep.subr.mxu0 0.0
    %169 = vmatpush1.msra.mxu0 %v54
    %170 = vmatprep.subr.mxu0 0.0
    %171 = vmatpush1.msra.mxu0 %v55
    %172 = vmatprep.subr.mxu0 0.0
    %173 = vmatpush1.msra.mxu0 %v56
    %174 = vmatprep.subr.mxu0 0.0
    %175 = vmatpush1.msra.mxu0 0.0
    %176 = vmatprep.subr.mxu0 0.0
    %177 = vmatpush1.msra.mxu0 0.0
    %178 = vmatprep.subr.mxu0 0.0
    %179 = vmatpush1.msra.mxu0 0.0
    %180 = vmatprep.subr.mxu0 0.0
    %181 = vmatpush1.msra.mxu0 0.0
    %182 = vmatprep.subr.mxu0 0.0
    %183 = vmatpush1.msra.mxu0 0.0
    %184 = vmatprep.subr.mxu0 0.0
    %185 = vmatpush1.msra.mxu0 0.0
    %186 = vmatprep.subr.mxu0 0.0
    %187 = vmatpush1.msra.mxu0 0.0
    %188 = vmatprep.subr.mxu0 0.0
    %189 = vmatpush1.msra.mxu0 0.0
    %190 = vmatprep.subr.mxu0 0.0
    %191 = vmatpush1.msra.mxu0 0.0
    %192 = vmatprep.subr.mxu0 0.0
    %193 = vmatpush1.msra.mxu0 0.0
    %194 = vmatprep.subr.mxu0 0.0
    %195 = vmatpush1.msra.mxu0 0.0
    %196 = vmatprep.subr.mxu0 0.0
    %197 = vmatpush1.msra.mxu0 0.0
    %198 = vmatprep.subr.mxu0 0.0
    %199 = vmatpush1.msra.mxu0 0.0
    %200 = vmatprep.subr.mxu0 0.0
    %201 = vmatpush1.msra.mxu0 0.0
    %202 = vmatprep.subr.mxu0 0.0
    %203 = vmatpush1.msra.mxu0 0.0
    %204 = vmatprep.subr.mxu0 0.0
    %205 = vmatpush1.msra.mxu0 0.0
    %206 = vmatprep.subr.mxu0 0.0
    %207 = vmatpush1.msra.mxu0 0.0
    %208 = vmatprep.subr.mxu0 0.0
    %209 = vmatpush1.msra.mxu0 0.0
    %210 = vmatprep.subr.mxu0 0.0
    %211 = vmatpush1.msra.mxu0 0.0
    %212 = vmatprep.subr.mxu0 0.0
    %213 = vmatpush1.msra.mxu0 0.0
    %214 = vmatprep.subr.mxu0 0.0
    %215 = vmatpush1.msra.mxu0 0.0
    %216 = vmatprep.subr.mxu0 0.0
    %217 = vmatpush1.msra.mxu0 0.0
    %218 = vmatprep.subr.mxu0 0.0
    %219 = vmatpush1.msra.mxu0 0.0
    %220 = vmatprep.subr.mxu0 0.0
    %221 = vmatpush1.msra.mxu0 0.0
    %222 = vmatprep.mubr.f32.mxu0 0.0
    %223 = vmatmul.mubr.f32.gmra.mrb[0].mxu0 %v153
    %v224 = vpop.f32.mrb[0].mxu0
    %v225 = vadd.f32 %v143, %v224
    %v226 = vpop.f32.mrb[0].mxu0
    %227 = vmatprep.mubr.f32.mxu0 0.0
    %228 = vmatmul.mubr.f32.gmra.mrb[0].mxu0 %v156
    %v229 = vpop.f32.mrb[0].mxu0
    %v230 = vadd.f32 %v148, %v229
    %v231 = vpop.f32.mrb[0].mxu0
    %232 = vdwg.mxu0
    %vm233 = vcmp.le.s32.totalorder %v36, %v58
    %vm234 = vcmp.le.s32.totalorder %v36, %v59
    %v235 = vxor.u32 %v58, %v36
    %v236 = vxor.u32 %v59, %v36
    %vm237 = vcmp.lt.s32.totalorder %v235, 8
    %vm238 = vcmp.lt.s32.totalorder %v236, 8
    %vm239 = vmand %vm233, %vm237
    %vm240 = vmand %vm234, %vm238
    %v241 = vsel %vm239, 0.0, -1e+30
    %v242 = vsel %vm240, 0.0, -1e+30
    %v243 = vld [vmem:[%s3] sm:$0xff]
    %v244 = vld [vmem:[%s3 + $0x8] sm:$0xff]
    %v245 = vld [vmem:[%s3 + $0x10] sm:$0xff]
    %v246 = vld [vmem:[%s3 + $0x18] sm:$0xff]
    %v247 = vld [vmem:[%s3 + $0x20] sm:$0xff]
    %v248 = vld [vmem:[%s3 + $0x28] sm:$0xff]
    %v249 = vld [vmem:[%s3 + $0x30] sm:$0xff]
    %v250 = vld [vmem:[%s3 + $0x38] sm:$0xff]
    %v251 = vld [vmem:[%s3 + $0x40] sm:$0xff]
    %v252 = vld [vmem:[%s3 + $0x48] sm:$0xff]
    %v253 = vld [vmem:[%s3 + $0x50] sm:$0xff]
    %v254 = vld [vmem:[%s3 + $0x58] sm:$0xff]
    %v255 = vld [vmem:[%s3 + $0x60] sm:$0xff]
    %v256 = vld [vmem:[%s3 + $0x68] sm:$0xff]
    %v257 = vld [vmem:[%s3 + $0x70] sm:$0xff]
    %v258 = vld [vmem:[%s3 + $0x78] sm:$0xff]
    %v259 = vld [vmem:[%s4] sm:$0xff]
    %v260 = vld [vmem:[%s4 + $0x8] sm:$0xff]
    %v261 = vld [vmem:[%s4 + $0x10] sm:$0xff]
    %v262 = vld [vmem:[%s4 + $0x18] sm:$0xff]
    %v263 = vld [vmem:[%s5] sm:$0xff]
    %v264 = vld [vmem:[%s5 + $0x8] sm:$0xff]
    %v265 = vld [vmem:[%s5 + $0x10] sm:$0xff]
    %v266 = vld [vmem:[%s5 + $0x18] sm:$0xff]
    %v267 = vld [vmem:[%s5 + $0x20] sm:$0xff]
    %v268 = vld [vmem:[%s5 + $0x28] sm:$0xff]
    %v269 = vld [vmem:[%s5 + $0x30] sm:$0xff]
    %v270 = vld [vmem:[%s5 + $0x38] sm:$0xff]
    %v271 = vld [vmem:[%s5 + $0x40] sm:$0xff]
    %v272 = vld [vmem:[%s5 + $0x48] sm:$0xff]
    %v273 = vld [vmem:[%s5 + $0x50] sm:$0xff]
    %v274 = vld [vmem:[%s5 + $0x58] sm:$0xff]
    %v275 = vld [vmem:[%s5 + $0x60] sm:$0xff]
    %v276 = vld [vmem:[%s5 + $0x68] sm:$0xff]
    %v277 = vld [vmem:[%s5 + $0x70] sm:$0xff]
    %v278 = vld [vmem:[%s5 + $0x78] sm:$0xff]
    %v279 = vld [vmem:[%s6] sm:$0xff]
    %vm280 = vcmask 261120
    %v281 = vsel %vm280, %v225, 0.0
    %282 = vadd.xlane.f32.xlu0 %v281
    %v283 = vpop.xlane.xlu0 %282
    %v284 = vsel %vm280, %v230, 0.0
    %285 = vadd.xlane.f32.xlu0 %v284
    %v286 = vpop.xlane.xlu0 %285
    %v287 = vrcp.pop 32.0
    %v288 = vmul.f32 %v283, %v287
    %v289 = vmul.f32 %v286, %v287
    %v290 = vsub.f32 %v225, %v288
    %v291 = vsub.f32 %v230, %v289
    %v292 = vmul.f32 %v290, %v290
    %v293 = vmul.f32 %v291, %v291
    %v294 = vsel %vm280, %v292, 0.0
    %295 = vadd.xlane.f32.xlu0 %v294
    %v296 = vpop.xlane.xlu0 %295
    %v297 = vsel %vm280, %v293, 0.0
    %298 = vadd.xlane.f32.xlu0 %v297
    %v299 = vpop.xlane.xlu0 %298
    %v300 = vmul.f32 %v296, %v287
    %v301 = vmul.f32 %v299, %v287
    %v302 = vadd.f32 %v300, 1e-05
    %v303 = vadd.f32 %v301, 1e-05
    %v304 = vrsqrt.pop %v302
    %v305 = vrsqrt.pop %v303
    %v306 = vmul.f32 %v290, %v304
    %v307 = vmul.f32 %v291, %v305
    %v308 = vlaneseq
    %v309 = vshrl.u32 %v308, 7
    %v310 = vsub.s32 0, %v309
    %v311 = vrot.slane %v279, %v310
    %v312 = vmul.f32 %v306, %v311
    %v313 = vmul.f32 %v307, %v311
    %v314 = vlaneseq
    %v315 = vshrl.u32 %v314, 7
    %v316 = vsub.s32 1, %v315
    %v317 = vrot.slane %v279, %v316
    %v318 = vadd.f32 %v312, %v317
    %v319 = vadd.f32 %v313, %v317
    %v321 = vsel %vm280, %v318, 0
    %v324 = vsel %vm280, %v319, 0
    %326 = vmatprep.subr.mxu0 0.0
    %327 = vmatpush1.msra.mxu0 %v243
    %328 = vmatprep.subr.mxu0 0.0
    %329 = vmatpush1.msra.mxu0 %v244
    %330 = vmatprep.subr.mxu0 0.0
    %331 = vmatpush1.msra.mxu0 %v245
    %332 = vmatprep.subr.mxu0 0.0
    %333 = vmatpush1.msra.mxu0 %v246
    %334 = vmatprep.subr.mxu0 0.0
    %335 = vmatpush1.msra.mxu0 0.0
    %336 = vmatprep.subr.mxu0 0.0
    %337 = vmatpush1.msra.mxu0 0.0
    %338 = vmatprep.subr.mxu0 0.0
    %339 = vmatpush1.msra.mxu0 0.0
    %340 = vmatprep.subr.mxu0 0.0
    %341 = vmatpush1.msra.mxu0 0.0
    %342 = vmatprep.subr.mxu0 0.0
    %343 = vmatpush1.msra.mxu0 0.0
    %344 = vmatprep.subr.mxu0 0.0
    %345 = vmatpush1.msra.mxu0 0.0
    %346 = vmatprep.subr.mxu0 0.0
    %347 = vmatpush1.msra.mxu0 0.0
    %348 = vmatprep.subr.mxu0 0.0
    %349 = vmatpush1.msra.mxu0 0.0
    %350 = vmatprep.subr.mxu0 0.0
    %351 = vmatpush1.msra.mxu0 0.0
    %352 = vmatprep.subr.mxu0 0.0
    %353 = vmatpush1.msra.mxu0 0.0
    %354 = vmatprep.subr.mxu0 0.0
    %355 = vmatpush1.msra.mxu0 0.0
    %356 = vmatprep.subr.mxu0 0.0
    %357 = vmatpush1.msra.mxu0 0.0
    %358 = vmatprep.subr.mxu0 0.0
    %359 = vmatpush1.msra.mxu0 0.0
    %360 = vmatprep.subr.mxu0 0.0
    %361 = vmatpush1.msra.mxu0 0.0
    %362 = vmatprep.subr.mxu0 0.0
    %363 = vmatpush1.msra.mxu0 0.0
    %364 = vmatprep.subr.mxu0 0.0
    %365 = vmatpush1.msra.mxu0 0.0
    %366 = vmatprep.subr.mxu0 0.0
    %367 = vmatpush1.msra.mxu0 0.0
    %368 = vmatprep.subr.mxu0 0.0
    %369 = vmatpush1.msra.mxu0 0.0
    %370 = vmatprep.subr.mxu0 0.0
    %371 = vmatpush1.msra.mxu0 0.0
    %372 = vmatprep.subr.mxu0 0.0
    %373 = vmatpush1.msra.mxu0 0.0
    %374 = vmatprep.subr.mxu0 0.0
    %375 = vmatpush1.msra.mxu0 0.0
    %376 = vmatprep.subr.mxu0 0.0
    %377 = vmatpush1.msra.mxu0 0.0
    %378 = vmatprep.subr.mxu0 0.0
    %379 = vmatpush1.msra.mxu0 0.0
    %380 = vmatprep.subr.mxu0 0.0
    %381 = vmatpush1.msra.mxu0 0.0
    %382 = vmatprep.subr.mxu0 0.0
    %383 = vmatpush1.msra.mxu0 0.0
    %384 = vmatprep.subr.mxu0 0.0
    %385 = vmatpush1.msra.mxu0 0.0
    %386 = vmatprep.subr.mxu0 0.0
    %387 = vmatpush1.msra.mxu0 0.0
    %388 = vmatprep.subr.mxu0 0.0
    %389 = vmatpush1.msra.mxu0 0.0
    %390 = vmatprep.mubr.f32.mxu0 0.0
    %391 = vmatmul.mubr.f32.gmra.mrb[0].mxu0 %v321
    %v392 = vpop.f32.mrb[0].mxu0
    %v393 = vadd.f32 0.0, %v392
    %v394 = vpop.f32.mrb[0].mxu0
    %395 = vmatprep.mubr.f32.mxu0 0.0
    %396 = vmatmul.mubr.f32.gmra.mrb[0].mxu0 %v324
    %v397 = vpop.f32.mrb[0].mxu0
    %v398 = vadd.f32 0.0, %v397
    %v399 = vpop.f32.mrb[0].mxu0
    %400 = vdwg.mxu0
    %401 = vmatprep.subr.mxu0 0.0
    %402 = vmatpush1.msra.mxu0 %v247
    %403 = vmatprep.subr.mxu0 0.0
    %404 = vmatpush1.msra.mxu0 %v248
    %405 = vmatprep.subr.mxu0 0.0
    %406 = vmatpush1.msra.mxu0 %v249
    %407 = vmatprep.subr.mxu0 0.0
    %408 = vmatpush1.msra.mxu0 %v250
    %409 = vmatprep.subr.mxu0 0.0
    %410 = vmatpush1.msra.mxu0 0.0
    %411 = vmatprep.subr.mxu0 0.0
    %412 = vmatpush1.msra.mxu0 0.0
    %413 = vmatprep.subr.mxu0 0.0
    %414 = vmatpush1.msra.mxu0 0.0
    %415 = vmatprep.subr.mxu0 0.0
    %416 = vmatpush1.msra.mxu0 0.0
    %417 = vmatprep.subr.mxu0 0.0
    %418 = vmatpush1.msra.mxu0 0.0
    %419 = vmatprep.subr.mxu0 0.0
    %420 = vmatpush1.msra.mxu0 0.0
    %421 = vmatprep.subr.mxu0 0.0
    %422 = vmatpush1.msra.mxu0 0.0
    %423 = vmatprep.subr.mxu0 0.0
    %424 = vmatpush1.msra.mxu0 0.0
    %425 = vmatprep.subr.mxu0 0.0
    %426 = vmatpush1.msra.mxu0 0.0
    %427 = vmatprep.subr.mxu0 0.0
    %428 = vmatpush1.msra.mxu0 0.0
    %429 = vmatprep.subr.mxu0 0.0
    %430 = vmatpush1.msra.mxu0 0.0
    %431 = vmatprep.subr.mxu0 0.0
    %432 = vmatpush1.msra.mxu0 0.0
    %433 = vmatprep.subr.mxu0 0.0
    %434 = vmatpush1.msra.mxu0 0.0
    %435 = vmatprep.subr.mxu0 0.0
    %436 = vmatpush1.msra.mxu0 0.0
    %437 = vmatprep.subr.mxu0 0.0
    %438 = vmatpush1.msra.mxu0 0.0
    %439 = vmatprep.subr.mxu0 0.0
    %440 = vmatpush1.msra.mxu0 0.0
    %441 = vmatprep.subr.mxu0 0.0
    %442 = vmatpush1.msra.mxu0 0.0
    %443 = vmatprep.subr.mxu0 0.0
    %444 = vmatpush1.msra.mxu0 0.0
    %445 = vmatprep.subr.mxu0 0.0
    %446 = vmatpush1.msra.mxu0 0.0
    %447 = vmatprep.subr.mxu0 0.0
    %448 = vmatpush1.msra.mxu0 0.0
    %449 = vmatprep.subr.mxu0 0.0
    %450 = vmatpush1.msra.mxu0 0.0
    %451 = vmatprep.subr.mxu0 0.0
    %452 = vmatpush1.msra.mxu0 0.0
    %453 = vmatprep.subr.mxu0 0.0
    %454 = vmatpush1.msra.mxu0 0.0
    %455 = vmatprep.subr.mxu0 0.0
    %456 = vmatpush1.msra.mxu0 0.0
    %457 = vmatprep.subr.mxu0 0.0
    %458 = vmatpush1.msra.mxu0 0.0
    %459 = vmatprep.subr.mxu0 0.0
    %460 = vmatpush1.msra.mxu0 0.0
    %461 = vmatprep.subr.mxu0 0.0
    %462 = vmatpush1.msra.mxu0 0.0
    %463 = vmatprep.subr.mxu0 0.0
    %464 = vmatpush1.msra.mxu0 0.0
    %465 = vmatprep.mubr.f32.mxu0 0.0
    %466 = vmatmul.mubr.f32.gmra.mrb[0].mxu0 %v321
    %v467 = vpop.f32.mrb[0].mxu0
    %v468 = vadd.f32 0.0, %v467
    %v469 = vpop.f32.mrb[0].mxu0
    %470 = vmatprep.mubr.f32.mxu0 0.0
    %471 = vmatmul.mubr.f32.gmra.mrb[0].mxu0 %v324
    %v472 = vpop.f32.mrb[0].mxu0
    %v473 = vadd.f32 0.0, %v472
    %v474 = vpop.f32.mrb[0].mxu0
    %475 = vdwg.mxu0
    %476 = vmatprep.subr.mxu0 0.0
    %477 = vmatpush1.msra.mxu0 %v251
    %478 = vmatprep.subr.mxu0 0.0
    %479 = vmatpush1.msra.mxu0 %v252
    %480 = vmatprep.subr.mxu0 0.0
    %481 = vmatpush1.msra.mxu0 %v253
    %482 = vmatprep.subr.mxu0 0.0
    %483 = vmatpush1.msra.mxu0 %v254
    %484 = vmatprep.subr.mxu0 0.0
    %485 = vmatpush1.msra.mxu0 0.0
    %486 = vmatprep.subr.mxu0 0.0
    %487 = vmatpush1.msra.mxu0 0.0
    %488 = vmatprep.subr.mxu0 0.0
    %489 = vmatpush1.msra.mxu0 0.0
    %490 = vmatprep.subr.mxu0 0.0
    %491 = vmatpush1.msra.mxu0 0.0
    %492 = vmatprep.subr.mxu0 0.0
    %493 = vmatpush1.msra.mxu0 0.0
    %494 = vmatprep.subr.mxu0 0.0
    %495 = vmatpush1.msra.mxu0 0.0
    %496 = vmatprep.subr.mxu0 0.0
    %497 = vmatpush1.msra.mxu0 0.0
    %498 = vmatprep.subr.mxu0 0.0
    %499 = vmatpush1.msra.mxu0 0.0
    %500 = vmatprep.subr.mxu0 0.0
    %501 = vmatpush1.msra.mxu0 0.0
    %502 = vmatprep.subr.mxu0 0.0
    %503 = vmatpush1.msra.mxu0 0.0
    %504 = vmatprep.subr.mxu0 0.0
    %505 = vmatpush1.msra.mxu0 0.0
    %506 = vmatprep.subr.mxu0 0.0
    %507 = vmatpush1.msra.mxu0 0.0
    %508 = vmatprep.subr.mxu0 0.0
    %509 = vmatpush1.msra.mxu0 0.0
    %510 = vmatprep.subr.mxu0 0.0
    %511 = vmatpush1.msra.mxu0 0.0
    %512 = vmatprep.subr.mxu0 0.0
    %513 = vmatpush1.msra.mxu0 0.0
    %514 = vmatprep.subr.mxu0 0.0
    %515 = vmatpush1.msra.mxu0 0.0
    %516 = vmatprep.subr.mxu0 0.0
    %517 = vmatpush1.msra.mxu0 0.0
    %518 = vmatprep.subr.mxu0 0.0
    %519 = vmatpush1.msra.mxu0 0.0
    %520 = vmatprep.subr.mxu0 0.0
    %521 = vmatpush1.msra.mxu0 0.0
    %522 = vmatprep.subr.mxu0 0.0
    %523 = vmatpush1.msra.mxu0 0.0
    %524 = vmatprep.subr.mxu0 0.0
    %525 = vmatpush1.msra.mxu0 0.0
    %526 = vmatprep.subr.mxu0 0.0
    %527 = vmatpush1.msra.mxu0 0.0
    %528 = vmatprep.subr.mxu0 0.0
    %529 = vmatpush1.msra.mxu0 0.0
    %530 = vmatprep.subr.mxu0 0.0
    %531 = vmatpush1.msra.mxu0 0.0
    %532 = vmatprep.subr.mxu0 0.0
    %533 = vmatpush1.msra.mxu0 0.0
    %534 = vmatprep.subr.mxu0 0.0
    %535 = vmatpush1.msra.mxu0 0.0
    %536 = vmatprep.subr.mxu0 0.0
    %537 = vmatpush1.msra.mxu0 0.0
    %538 = vmatprep.subr.mxu0 0.0
    %539 = vmatpush1.msra.mxu0 0.0
    %540 = vmatprep.mubr.f32.mxu0 0.0
    %541 = vmatmul.mubr.f32.gmra.mrb[0].mxu0 %v321
    %v542 = vpop.f32.mrb[0].mxu0
    %v543 = vadd.f32 0.0, %v542
    %v544 = vpop.f32.mrb[0].mxu0
    %545 = vmatprep.mubr.f32.mxu0 0.0
    %546 = vmatmul.mubr.f32.gmra.mrb[0].mxu0 %v324
    %v547 = vpop.f32.mrb[0].mxu0
    %v548 = vadd.f32 0.0, %v547
    %v549 = vpop.f32.mrb[0].mxu0
    %550 = vdwg.mxu0
    %v552 = vsel %vm69, %v393, 0
    %v555 = vsel %vm69, %v398, 0
    %v558 = vsel %vm69, %v468, 0
    %v561 = vsel %vm69, %v473, 0
    %563 = vmatprep.subr.mxu0 0.0
    %564 = vmatpush1.xpose.msra.mxu0 %v558
    %565 = vmatprep.subr.mxu0 0.0
    %566 = vmatpush1.xpose.msra.mxu0 %v561
    %567 = vmatprep.subr.mxu0 0.0
    %568 = vmatpush1.xpose.msra.mxu0 0.0
    %569 = vmatprep.subr.mxu0 0.0
    %570 = vmatpush1.xpose.msra.mxu0 0.0
    %571 = vmatprep.subr.mxu0 0.0
    %572 = vmatpush1.xpose.msra.mxu0 0.0
    %573 = vmatprep.subr.mxu0 0.0
    %574 = vmatpush1.xpose.msra.mxu0 0.0
    %575 = vmatprep.subr.mxu0 0.0
    %576 = vmatpush1.xpose.msra.mxu0 0.0
    %577 = vmatprep.subr.mxu0 0.0
    %578 = vmatpush1.xpose.msra.mxu0 0.0
    %579 = vmatprep.subr.mxu0 0.0
    %580 = vmatpush1.xpose.msra.mxu0 0.0
    %581 = vmatprep.subr.mxu0 0.0
    %582 = vmatpush1.xpose.msra.mxu0 0.0
    %583 = vmatprep.subr.mxu0 0.0
    %584 = vmatpush1.xpose.msra.mxu0 0.0
    %585 = vmatprep.subr.mxu0 0.0
    %586 = vmatpush1.xpose.msra.mxu0 0.0
    %587 = vmatprep.subr.mxu0 0.0
    %588 = vmatpush1.xpose.msra.mxu0 0.0
    %589 = vmatprep.subr.mxu0 0.0
    %590 = vmatpush1.xpose.msra.mxu0 0.0
    %591 = vmatprep.subr.mxu0 0.0
    %592 = vmatpush1.xpose.msra.mxu0 0.0
    %593 = vmatprep.subr.mxu0 0.0
    %594 = vmatpush1.xpose.msra.mxu0 0.0
    %595 = vmatprep.subr.mxu0 0.0
    %596 = vmatpush1.xpose.msra.mxu0 0.0
    %597 = vmatprep.subr.mxu0 0.0
    %598 = vmatpush1.xpose.msra.mxu0 0.0
    %599 = vmatprep.subr.mxu0 0.0
    %600 = vmatpush1.xpose.msra.mxu0 0.0
    %601 = vmatprep.subr.mxu0 0.0
    %602 = vmatpush1.xpose.msra.mxu0 0.0
    %603 = vmatprep.subr.mxu0 0.0
    %604 = vmatpush1.xpose.msra.mxu0 0.0
    %605 = vmatprep.subr.mxu0 0.0
    %606 = vmatpush1.xpose.msra.mxu0 0.0
    %607 = vmatprep.subr.mxu0 0.0
    %608 = vmatpush1.xpose.msra.mxu0 0.0
    %609 = vmatprep.subr.mxu0 0.0
    %610 = vmatpush1.xpose.msra.mxu0 0.0
    %611 = vmatprep.subr.mxu0 0.0
    %612 = vmatpush1.xpose.msra.mxu0 0.0
    %613 = vmatprep.subr.mxu0 0.0
    %614 = vmatpush1.xpose.msra.mxu0 0.0
    %615 = vmatprep.subr.mxu0 0.0
    %616 = vmatpush1.xpose.msra.mxu0 0.0
    %617 = vmatprep.subr.mxu0 0.0
    %618 = vmatpush1.xpose.msra.mxu0 0.0
    %619 = vmatprep.subr.mxu0 0.0
    %620 = vmatpush1.xpose.msra.mxu0 0.0
    %621 = vmatprep.subr.mxu0 0.0
    %622 = vmatpush1.xpose.msra.mxu0 0.0
    %623 = vmatprep.subr.mxu0 0.0
    %624 = vmatpush1.xpose.msra.mxu0 0.0
    %625 = vmatprep.subr.mxu0 0.0
    %626 = vmatpush1.xpose.msra.mxu0 0.0
    %627 = vmatprep.mubr.f32.mxu0 0.0
    %628 = vmatmul.mubr.f32.gmra.mrb[0].mxu0 %v552
    %v629 = vpop.f32.mrb[0].mxu0
    %v630 = vadd.f32 0.0, %v629
    %v631 = vpop.f32.mrb[0].mxu0
    %632 = vmatprep.mubr.f32.mxu0 0.0
    %633 = vmatmul.mubr.f32.gmra.mrb[0].mxu0 %v555
    %v634 = vpop.f32.mrb[0].mxu0
    %v635 = vadd.f32 0.0, %v634
    %v636 = vpop.f32.mrb[0].mxu0
    %637 = vdwg.mxu0
    %v638 = vmul.f32 %v630, 0.17677669
    %v639 = vmul.f32 %v635, 0.17677669
    %v640 = vadd.f32 %v638, %v241
    %v641 = vadd.f32 %v639, %v242
    %vm642 = vcmask 130048
    %v643 = vsel %vm642, %v640, -inf
    %644 = vmax.xlane.f32.xlu0 %v643
    %v645 = vpop.xlane.xlu0 %644
    %v646 = vsel %vm642, %v641, -inf
    %647 = vmax.xlane.f32.xlu0 %v646
    %v648 = vpop.xlane.xlu0 %647
    %v649 = vsub.f32 %v640, %v645
    %v650 = vsub.f32 %v641, %v648
    %v651 = vmul.f32 %v649, 1.442695
    %v652 = vpow.pop %v651
    %v653 = vmul.f32 %v650, 1.442695
    %v654 = vpow.pop %v653
    %v655 = vsel %vm642, %v652, 0.0
    %656 = vadd.xlane.f32.xlu0 %v655
    %v657 = vpop.xlane.xlu0 %656
    %v658 = vsel %vm642, %v654, 0.0
    %659 = vadd.xlane.f32.xlu0 %v658
    %v660 = vpop.xlane.xlu0 %659
    %v661 = vrcp.pop %v657
    %v662 = vrcp.pop %v660
    %v663 = vmul.f32 %v652, %v661
    %v664 = vmul.f32 %v654, %v662
    %v666 = vsel %vm642, %v663, 0
    %v669 = vsel %vm642, %v664, 0
    %671 = vmatprep.subr.mxu0 0.0
    %672 = vmatpush1.msra.mxu0 %v543
    %673 = vmatprep.subr.mxu0 0.0
    %674 = vmatpush1.msra.mxu0 %v548
    %675 = vmatprep.subr.mxu0 0.0
    %676 = vmatpush1.msra.mxu0 0.0
    %677 = vmatprep.subr.mxu0 0.0
    %678 = vmatpush1.msra.mxu0 0.0
    %679 = vmatprep.subr.mxu0 0.0
    %680 = vmatpush1.msra.mxu0 0.0
    %681 = vmatprep.subr.mxu0 0.0
    %682 = vmatpush1.msra.mxu0 0.0
    %683 = vmatprep.subr.mxu0 0.0
    %684 = vmatpush1.msra.mxu0 0.0
    %685 = vmatprep.subr.mxu0 0.0
    %686 = vmatpush1.msra.mxu0 0.0
    %687 = vmatprep.subr.mxu0 0.0
    %688 = vmatpush1.msra.mxu0 0.0
    %689 = vmatprep.subr.mxu0 0.0
    %690 = vmatpush1.msra.mxu0 0.0
    %691 = vmatprep.subr.mxu0 0.0
    %692 = vmatpush1.msra.mxu0 0.0
    %693 = vmatprep.subr.mxu0 0.0
    %694 = vmatpush1.msra.mxu0 0.0
    %695 = vmatprep.subr.mxu0 0.0
    %696 = vmatpush1.msra.mxu0 0.0
    %697 = vmatprep.subr.mxu0 0.0
    %698 = vmatpush1.msra.mxu0 0.0
    %699 = vmatprep.subr.mxu0 0.0
    %700 = vmatpush1.msra.mxu0 0.0
    %701 = vmatprep.subr.mxu0 0.0
    %702 = vmatpush1.msra.mxu0 0.0
    %703 = vmatprep.subr.mxu0 0.0
    %704 = vmatpush1.msra.mxu0 0.0
    %705 = vmatprep.subr.mxu0 0.0
    %706 = vmatpush1.msra.mxu0 0.0
    %707 = vmatprep.subr.mxu0 0.0
    %708 = vmatpush1.msra.mxu0 0.0
    %709 = vmatprep.subr.mxu0 0.0
    %710 = vmatpush1.msra.mxu0 0.0
    %711 = vmatprep.subr.mxu0 0.0
    %712 = vmatpush1.msra.mxu0 0.0
    %713 = vmatprep.subr.mxu0 0.0
    %714 = vmatpush1.msra.mxu0 0.0
    %715 = vmatprep.subr.mxu0 0.0
    %716 = vmatpush1.msra.mxu0 0.0
    %717 = vmatprep.subr.mxu0 0.0
    %718 = vmatpush1.msra.mxu0 0.0
    %719 = vmatprep.subr.mxu0 0.0
    %720 = vmatpush1.msra.mxu0 0.0
    %721 = vmatprep.subr.mxu0 0.0
    %722 = vmatpush1.msra.mxu0 0.0
    %723 = vmatprep.subr.mxu0 0.0
    %724 = vmatpush1.msra.mxu0 0.0
    %725 = vmatprep.subr.mxu0 0.0
    %726 = vmatpush1.msra.mxu0 0.0
    %727 = vmatprep.subr.mxu0 0.0
    %728 = vmatpush1.msra.mxu0 0.0
    %729 = vmatprep.subr.mxu0 0.0
    %730 = vmatpush1.msra.mxu0 0.0
    %731 = vmatprep.subr.mxu0 0.0
    %732 = vmatpush1.msra.mxu0 0.0
    %733 = vmatprep.subr.mxu0 0.0
    %734 = vmatpush1.msra.mxu0 0.0
    %735 = vmatprep.mubr.f32.mxu0 0.0
    %736 = vmatmul.mubr.f32.gmra.mrb[0].mxu0 %v666
    %v737 = vpop.f32.mrb[0].mxu0
    %v738 = vadd.f32 0.0, %v737
    %v739 = vpop.f32.mrb[0].mxu0
    %740 = vmatprep.mubr.f32.mxu0 0.0
    %741 = vmatmul.mubr.f32.gmra.mrb[0].mxu0 %v669
    %v742 = vpop.f32.mrb[0].mxu0
    %v743 = vadd.f32 0.0, %v742
    %v744 = vpop.f32.mrb[0].mxu0
    %745 = vdwg.mxu0
    %746 = vrot.lane.b32.xlu0 %v393, 120
    %v747 = vpop.permute.xlu0 %746
    %748 = vrot.lane.b32.xlu0 %v398, 120
    %v749 = vpop.permute.xlu0 %748
    %750 = vrot.lane.b32.xlu0 %v468, 120
    %v751 = vpop.permute.xlu0 %750
    %752 = vrot.lane.b32.xlu0 %v473, 120
    %v753 = vpop.permute.xlu0 %752
    %v754 = vsel %vm69, %v747, 0
    %v756 = vsel %vm69, %v749, 0
    %v758 = vsel %vm69, %v751, 0
    %v760 = vsel %vm69, %v753, 0
    %762 = vmatprep.subr.mxu0 0.0
    %763 = vmatpush1.xpose.msra.mxu0 %v758
    %764 = vmatprep.subr.mxu0 0.0
    %765 = vmatpush1.xpose.msra.mxu0 %v760
    %766 = vmatprep.subr.mxu0 0.0
    %767 = vmatpush1.xpose.msra.mxu0 0.0
    %768 = vmatprep.subr.mxu0 0.0
    %769 = vmatpush1.xpose.msra.mxu0 0.0
    %770 = vmatprep.subr.mxu0 0.0
    %771 = vmatpush1.xpose.msra.mxu0 0.0
    %772 = vmatprep.subr.mxu0 0.0
    %773 = vmatpush1.xpose.msra.mxu0 0.0
    %774 = vmatprep.subr.mxu0 0.0
    %775 = vmatpush1.xpose.msra.mxu0 0.0
    %776 = vmatprep.subr.mxu0 0.0
    %777 = vmatpush1.xpose.msra.mxu0 0.0
    %778 = vmatprep.subr.mxu0 0.0
    %779 = vmatpush1.xpose.msra.mxu0 0.0
    %780 = vmatprep.subr.mxu0 0.0
    %781 = vmatpush1.xpose.msra.mxu0 0.0
    %782 = vmatprep.subr.mxu0 0.0
    %783 = vmatpush1.xpose.msra.mxu0 0.0
    %784 = vmatprep.subr.mxu0 0.0
    %785 = vmatpush1.xpose.msra.mxu0 0.0
    %786 = vmatprep.subr.mxu0 0.0
    %787 = vmatpush1.xpose.msra.mxu0 0.0
    %788 = vmatprep.subr.mxu0 0.0
    %789 = vmatpush1.xpose.msra.mxu0 0.0
    %790 = vmatprep.subr.mxu0 0.0
    %791 = vmatpush1.xpose.msra.mxu0 0.0
    %792 = vmatprep.subr.mxu0 0.0
    %793 = vmatpush1.xpose.msra.mxu0 0.0
    %794 = vmatprep.subr.mxu0 0.0
    %795 = vmatpush1.xpose.msra.mxu0 0.0
    %796 = vmatprep.subr.mxu0 0.0
    %797 = vmatpush1.xpose.msra.mxu0 0.0
    %798 = vmatprep.subr.mxu0 0.0
    %799 = vmatpush1.xpose.msra.mxu0 0.0
    %800 = vmatprep.subr.mxu0 0.0
    %801 = vmatpush1.xpose.msra.mxu0 0.0
    %802 = vmatprep.subr.mxu0 0.0
    %803 = vmatpush1.xpose.msra.mxu0 0.0
    %804 = vmatprep.subr.mxu0 0.0
    %805 = vmatpush1.xpose.msra.mxu0 0.0
    %806 = vmatprep.subr.mxu0 0.0
    %807 = vmatpush1.xpose.msra.mxu0 0.0
    %808 = vmatprep.subr.mxu0 0.0
    %809 = vmatpush1.xpose.msra.mxu0 0.0
    %810 = vmatprep.subr.mxu0 0.0
    %811 = vmatpush1.xpose.msra.mxu0 0.0
    %812 = vmatprep.subr.mxu0 0.0
    %813 = vmatpush1.xpose.msra.mxu0 0.0
    %814 = vmatprep.subr.mxu0 0.0
    %815 = vmatpush1.xpose.msra.mxu0 0.0
    %816 = vmatprep.subr.mxu0 0.0
    %817 = vmatpush1.xpose.msra.mxu0 0.0
    %818 = vmatprep.subr.mxu0 0.0
    %819 = vmatpush1.xpose.msra.mxu0 0.0
    %820 = vmatprep.subr.mxu0 0.0
    %821 = vmatpush1.xpose.msra.mxu0 0.0
    %822 = vmatprep.subr.mxu0 0.0
    %823 = vmatpush1.xpose.msra.mxu0 0.0
    %824 = vmatprep.subr.mxu0 0.0
    %825 = vmatpush1.xpose.msra.mxu0 0.0
    %826 = vmatprep.mubr.f32.mxu0 0.0
    %827 = vmatmul.mubr.f32.gmra.mrb[0].mxu0 %v754
    %v828 = vpop.f32.mrb[0].mxu0
    %v829 = vadd.f32 0.0, %v828
    %v830 = vpop.f32.mrb[0].mxu0
    %831 = vmatprep.mubr.f32.mxu0 0.0
    %832 = vmatmul.mubr.f32.gmra.mrb[0].mxu0 %v756
    %v833 = vpop.f32.mrb[0].mxu0
    %v834 = vadd.f32 0.0, %v833
    %v835 = vpop.f32.mrb[0].mxu0
    %836 = vdwg.mxu0
    %v837 = vmul.f32 %v829, 0.17677669
    %v838 = vmul.f32 %v834, 0.17677669
    %v839 = vadd.f32 %v837, %v241
    %v840 = vadd.f32 %v838, %v242
    %v841 = vsel %vm642, %v839, -inf
    %842 = vmax.xlane.f32.xlu0 %v841
    %v843 = vpop.xlane.xlu0 %842
    %v844 = vsel %vm642, %v840, -inf
    %845 = vmax.xlane.f32.xlu0 %v844
    %v846 = vpop.xlane.xlu0 %845
    %v847 = vsub.f32 %v839, %v843
    %v848 = vsub.f32 %v840, %v846
    %v849 = vmul.f32 %v847, 1.442695
    %v850 = vpow.pop %v849
    %v851 = vmul.f32 %v848, 1.442695
    %v852 = vpow.pop %v851
    %v853 = vsel %vm642, %v850, 0.0
    %854 = vadd.xlane.f32.xlu0 %v853
    %v855 = vpop.xlane.xlu0 %854
    %v856 = vsel %vm642, %v852, 0.0
    %857 = vadd.xlane.f32.xlu0 %v856
    %v858 = vpop.xlane.xlu0 %857
    %v859 = vrcp.pop %v855
    %v860 = vrcp.pop %v858
    %v861 = vmul.f32 %v850, %v859
    %v862 = vmul.f32 %v852, %v860
    %865 = vrot.lane.b32.xlu0 %v543, 120
    %v866 = vpop.permute.xlu0 %865
    %867 = vrot.lane.b32.xlu0 %v548, 120
    %v868 = vpop.permute.xlu0 %867
    %v872 = vsel %vm642, %v861, 0
    %v875 = vsel %vm642, %v862, 0
    %877 = vmatprep.subr.mxu0 0.0
    %878 = vmatpush1.msra.mxu0 %v866
    %879 = vmatprep.subr.mxu0 0.0
    %880 = vmatpush1.msra.mxu0 %v868
    %881 = vmatprep.subr.mxu0 0.0
    %882 = vmatpush1.msra.mxu0 0.0
    %883 = vmatprep.subr.mxu0 0.0
    %884 = vmatpush1.msra.mxu0 0.0
    %885 = vmatprep.subr.mxu0 0.0
    %886 = vmatpush1.msra.mxu0 0.0
    %887 = vmatprep.subr.mxu0 0.0
    %888 = vmatpush1.msra.mxu0 0.0
    %889 = vmatprep.subr.mxu0 0.0
    %890 = vmatpush1.msra.mxu0 0.0
    %891 = vmatprep.subr.mxu0 0.0
    %892 = vmatpush1.msra.mxu0 0.0
    %893 = vmatprep.subr.mxu0 0.0
    %894 = vmatpush1.msra.mxu0 0.0
    %895 = vmatprep.subr.mxu0 0.0
    %896 = vmatpush1.msra.mxu0 0.0
    %897 = vmatprep.subr.mxu0 0.0
    %898 = vmatpush1.msra.mxu0 0.0
    %899 = vmatprep.subr.mxu0 0.0
    %900 = vmatpush1.msra.mxu0 0.0
    %901 = vmatprep.subr.mxu0 0.0
    %902 = vmatpush1.msra.mxu0 0.0
    %903 = vmatprep.subr.mxu0 0.0
    %904 = vmatpush1.msra.mxu0 0.0
    %905 = vmatprep.subr.mxu0 0.0
    %906 = vmatpush1.msra.mxu0 0.0
    %907 = vmatprep.subr.mxu0 0.0
    %908 = vmatpush1.msra.mxu0 0.0
    %909 = vmatprep.subr.mxu0 0.0
    %910 = vmatpush1.msra.mxu0 0.0
    %911 = vmatprep.subr.mxu0 0.0
    %912 = vmatpush1.msra.mxu0 0.0
    %913 = vmatprep.subr.mxu0 0.0
    %914 = vmatpush1.msra.mxu0 0.0
    %915 = vmatprep.subr.mxu0 0.0
    %916 = vmatpush1.msra.mxu0 0.0
    %917 = vmatprep.subr.mxu0 0.0
    %918 = vmatpush1.msra.mxu0 0.0
    %919 = vmatprep.subr.mxu0 0.0
    %920 = vmatpush1.msra.mxu0 0.0
    %921 = vmatprep.subr.mxu0 0.0
    %922 = vmatpush1.msra.mxu0 0.0
    %923 = vmatprep.subr.mxu0 0.0
    %924 = vmatpush1.msra.mxu0 0.0
    %925 = vmatprep.subr.mxu0 0.0
    %926 = vmatpush1.msra.mxu0 0.0
    %927 = vmatprep.subr.mxu0 0.0
    %928 = vmatpush1.msra.mxu0 0.0
    %929 = vmatprep.subr.mxu0 0.0
    %930 = vmatpush1.msra.mxu0 0.0
    %931 = vmatprep.subr.mxu0 0.0
    %932 = vmatpush1.msra.mxu0 0.0
    %933 = vmatprep.subr.mxu0 0.0
    %934 = vmatpush1.msra.mxu0 0.0
    %935 = vmatprep.subr.mxu0 0.0
    %936 = vmatpush1.msra.mxu0 0.0
    %937 = vmatprep.subr.mxu0 0.0
    %938 = vmatpush1.msra.mxu0 0.0
    %939 = vmatprep.subr.mxu0 0.0
    %940 = vmatpush1.msra.mxu0 0.0
    %941 = vmatprep.mubr.f32.mxu0 0.0
    %942 = vmatmul.mubr.f32.gmra.mrb[0].mxu0 %v872
    %v943 = vpop.f32.mrb[0].mxu0
    %v944 = vadd.f32 0.0, %v943
    %v945 = vpop.f32.mrb[0].mxu0
    %946 = vmatprep.mubr.f32.mxu0 0.0
    %947 = vmatmul.mubr.f32.gmra.mrb[0].mxu0 %v875
    %v948 = vpop.f32.mrb[0].mxu0
    %v949 = vadd.f32 0.0, %v948
    %v950 = vpop.f32.mrb[0].mxu0
    %951 = vdwg.mxu0
    %v953 = vsel %vm69, %v944, 0
    %v956 = vsel %vm69, %v949, 0
    %958 = vmatprep.subr.mxu0 0.0
    %959 = vmatpush1.msra.mxu0 %v256
    %960 = vmatprep.subr.mxu0 0.0
    %961 = vmatpush1.msra.mxu0 0.0
    %962 = vmatprep.subr.mxu0 0.0
    %963 = vmatpush1.msra.mxu0 0.0
    %964 = vmatprep.subr.mxu0 0.0
    %965 = vmatpush1.msra.mxu0 0.0
    %966 = vmatprep.subr.mxu0 0.0
    %967 = vmatpush1.msra.mxu0 0.0
    %968 = vmatprep.subr.mxu0 0.0
    %969 = vmatpush1.msra.mxu0 0.0
    %970 = vmatprep.subr.mxu0 0.0
    %971 = vmatpush1.msra.mxu0 0.0
    %972 = vmatprep.subr.mxu0 0.0
    %973 = vmatpush1.msra.mxu0 0.0
    %974 = vmatprep.subr.mxu0 0.0
    %975 = vmatpush1.msra.mxu0 0.0
    %976 = vmatprep.subr.mxu0 0.0
    %977 = vmatpush1.msra.mxu0 0.0
    %978 = vmatprep.subr.mxu0 0.0
    %979 = vmatpush1.msra.mxu0 0.0
    %980 = vmatprep.subr.mxu0 0.0
    %981 = vmatpush1.msra.mxu0 0.0
    %982 = vmatprep.subr.mxu0 0.0
    %983 = vmatpush1.msra.mxu0 0.0
    %984 = vmatprep.subr.mxu0 0.0
    %985 = vmatpush1.msra.mxu0 0.0
    %986 = vmatprep.subr.mxu0 0.0
    %987 = vmatpush1.msra.mxu0 0.0
    %988 = vmatprep.subr.mxu0 0.0
    %989 = vmatpush1.msra.mxu0 0.0
    %990 = vmatprep.subr.mxu0 0.0
    %991 = vmatpush1.msra.mxu0 0.0
    %992 = vmatprep.subr.mxu0 0.0
    %993 = vmatpush1.msra.mxu0 0.0
    %994 = vmatprep.subr.mxu0 0.0
    %995 = vmatpush1.msra.mxu0 0.0
    %996 = vmatprep.subr.mxu0 0.0
    %997 = vmatpush1.msra.mxu0 0.0
    %998 = vmatprep.subr.mxu0 0.0
    %999 = vmatpush1.msra.mxu0 0.0
    %1000 = vmatprep.subr.mxu0 0.0
    %1001 = vmatpush1.msra.mxu0 0.0
    %1002 = vmatprep.subr.mxu0 0.0
    %1003 = vmatpush1.msra.mxu0 0.0
    %1004 = vmatprep.subr.mxu0 0.0
    %1005 = vmatpush1.msra.mxu0 0.0
    %1006 = vmatprep.subr.mxu0 0.0
    %1007 = vmatpush1.msra.mxu0 0.0
    %1008 = vmatprep.subr.mxu0 0.0
    %1009 = vmatpush1.msra.mxu0 0.0
    %1010 = vmatprep.subr.mxu0 0.0
    %1011 = vmatpush1.msra.mxu0 0.0
    %1012 = vmatprep.subr.mxu0 0.0
    %1013 = vmatpush1.msra.mxu0 0.0
    %1014 = vmatprep.subr.mxu0 0.0
    %1015 = vmatpush1.msra.mxu0 0.0
    %1016 = vmatprep.subr.mxu0 0.0
    %1017 = vmatpush1.msra.mxu0 0.0
    %1018 = vmatprep.subr.mxu0 0.0
    %1019 = vmatpush1.msra.mxu0 0.0
    %1020 = vmatprep.subr.mxu0 0.0
    %1021 = vmatpush1.msra.mxu0 0.0
    %1022 = vmatprep.mubr.f32.mxu0 0.0
    %1023 = vmatmul.mubr.f32.gmra.mrb[0].mxu0 %v953
    %v1024 = vpop.f32.mrb[0].mxu0
    %v1025 = vadd.f32 0.0, %v1024
    %v1026 = vpop.f32.mrb[0].mxu0
    %1027 = vmatprep.mubr.f32.mxu0 0.0
    %1028 = vmatmul.mubr.f32.gmra.mrb[0].mxu0 %v956
    %v1029 = vpop.f32.mrb[0].mxu0
    %v1030 = vadd.f32 0.0, %v1029
    %v1031 = vpop.f32.mrb[0].mxu0
    %1032 = vdwg.mxu0
    %v1034 = vsel %vm69, %v738, 0
    %v1037 = vsel %vm69, %v743, 0
    %1039 = vmatprep.subr.mxu0 0.0
    %1040 = vmatpush1.msra.mxu0 %v255
    %1041 = vmatprep.subr.mxu0 0.0
    %1042 = vmatpush1.msra.mxu0 0.0
    %1043 = vmatprep.subr.mxu0 0.0
    %1044 = vmatpush1.msra.mxu0 0.0
    %1045 = vmatprep.subr.mxu0 0.0
    %1046 = vmatpush1.msra.mxu0 0.0
    %1047 = vmatprep.subr.mxu0 0.0
    %1048 = vmatpush1.msra.mxu0 0.0
    %1049 = vmatprep.subr.mxu0 0.0
    %1050 = vmatpush1.msra.mxu0 0.0
    %1051 = vmatprep.subr.mxu0 0.0
    %1052 = vmatpush1.msra.mxu0 0.0
    %1053 = vmatprep.subr.mxu0 0.0
    %1054 = vmatpush1.msra.mxu0 0.0
    %1055 = vmatprep.subr.mxu0 0.0
    %1056 = vmatpush1.msra.mxu0 0.0
    %1057 = vmatprep.subr.mxu0 0.0
    %1058 = vmatpush1.msra.mxu0 0.0
    %1059 = vmatprep.subr.mxu0 0.0
    %1060 = vmatpush1.msra.mxu0 0.0
    %1061 = vmatprep.subr.mxu0 0.0
    %1062 = vmatpush1.msra.mxu0 0.0
    %1063 = vmatprep.subr.mxu0 0.0
    %1064 = vmatpush1.msra.mxu0 0.0
    %1065 = vmatprep.subr.mxu0 0.0
    %1066 = vmatpush1.msra.mxu0 0.0
    %1067 = vmatprep.subr.mxu0 0.0
    %1068 = vmatpush1.msra.mxu0 0.0
    %1069 = vmatprep.subr.mxu0 0.0
    %1070 = vmatpush1.msra.mxu0 0.0
    %1071 = vmatprep.subr.mxu0 0.0
    %1072 = vmatpush1.msra.mxu0 0.0
    %1073 = vmatprep.subr.mxu0 0.0
    %1074 = vmatpush1.msra.mxu0 0.0
    %1075 = vmatprep.subr.mxu0 0.0
    %1076 = vmatpush1.msra.mxu0 0.0
    %1077 = vmatprep.subr.mxu0 0.0
    %1078 = vmatpush1.msra.mxu0 0.0
    %1079 = vmatprep.subr.mxu0 0.0
    %1080 = vmatpush1.msra.mxu0 0.0
    %1081 = vmatprep.subr.mxu0 0.0
    %1082 = vmatpush1.msra.mxu0 0.0
    %1083 = vmatprep.subr.mxu0 0.0
    %1084 = vmatpush1.msra.mxu0 0.0
    %1085 = vmatprep.subr.mxu0 0.0
    %1086 = vmatpush1.msra.mxu0 0.0
    %1087 = vmatprep.subr.mxu0 0.0
    %1088 = vmatpush1.msra.mxu0 0.0
    %1089 = vmatprep.subr.mxu0 0.0
    %1090 = vmatpush1.msra.mxu0 0.0
    %1091 = vmatprep.subr.mxu0 0.0
    %1092 = vmatpush1.msra.mxu0 0.0
    %1093 = vmatprep.subr.mxu0 0.0
    %1094 = vmatpush1.msra.mxu0 0.0
    %1095 = vmatprep.subr.mxu0 0.0
    %1096 = vmatpush1.msra.mxu0 0.0
    %1097 = vmatprep.subr.mxu0 0.0
    %1098 = vmatpush1.msra.mxu0 0.0
    %1099 = vmatprep.subr.mxu0 0.0
    %1100 = vmatpush1.msra.mxu0 0.0
    %1101 = vmatprep.subr.mxu0 0.0
    %1102 = vmatpush1.msra.mxu0 0.0
    %1103 = vmatprep.mubr.f32.mxu0 0.0
    %1104 = vmatmul.mubr.f32.gmra.mrb[0].mxu0 %v1034
    %v1105 = vpop.f32.mrb[0].mxu0
    %v1106 = vadd.f32 %v1025, %v1105
    %v1107 = vpop.f32.mrb[0].mxu0
    %1108 = vmatprep.mubr.f32.mxu0 0.0
    %1109 = vmatmul.mubr.f32.gmra.mrb[0].mxu0 %v1037
    %v1110 = vpop.f32.mrb[0].mxu0
    %v1111 = vadd.f32 %v1030, %v1110
    %v1112 = vpop.f32.mrb[0].mxu0
    %1113 = vdwg.mxu0
    %1114 = vrot.lane.b32.xlu0 %v393, 112
    %v1115 = vpop.permute.xlu0 %1114
    %1116 = vrot.lane.b32.xlu0 %v398, 112
    %v1117 = vpop.permute.xlu0 %1116
    %1118 = vrot.lane.b32.xlu0 %v468, 112
    %v1119 = vpop.permute.xlu0 %1118
    %1120 = vrot.lane.b32.xlu0 %v473, 112
    %v1121 = vpop.permute.xlu0 %1120
    %v1122 = vsel %vm69, %v1115, 0
    %v1124 = vsel %vm69, %v1117, 0
    %v1126 = vsel %vm69, %v1119, 0
    %v1128 = vsel %vm69, %v1121, 0
    %1130 = vmatprep.subr.mxu0 0.0
    %1131 = vmatpush1.xpose.msra.mxu0 %v1126
    %1132 = vmatprep.subr.mxu0 0.0
    %1133 = vmatpush1.xpose.msra.mxu0 %v1128
    %1134 = vmatprep.subr.mxu0 0.0
    %1135 = vmatpush1.xpose.msra.mxu0 0.0
    %1136 = vmatprep.subr.mxu0 0.0
    %1137 = vmatpush1.xpose.msra.mxu0 0.0
    %1138 = vmatprep.subr.mxu0 0.0
    %1139 = vmatpush1.xpose.msra.mxu0 0.0
    %1140 = vmatprep.subr.mxu0 0.0
    %1141 = vmatpush1.xpose.msra.mxu0 0.0
    %1142 = vmatprep.subr.mxu0 0.0
    %1143 = vmatpush1.xpose.msra.mxu0 0.0
    %1144 = vmatprep.subr.mxu0 0.0
    %1145 = vmatpush1.xpose.msra.mxu0 0.0
    %1146 = vmatprep.subr.mxu0 0.0
    %1147 = vmatpush1.xpose.msra.mxu0 0.0
    %1148 = vmatprep.subr.mxu0 0.0
    %1149 = vmatpush1.xpose.msra.mxu0 0.0
    %1150 = vmatprep.subr.mxu0 0.0
    %1151 = vmatpush1.xpose.msra.mxu0 0.0
    %1152 = vmatprep.subr.mxu0 0.0
    %1153 = vmatpush1.xpose.msra.mxu0 0.0
    %1154 = vmatprep.subr.mxu0 0.0
    %1155 = vmatpush1.xpose.msra.mxu0 0.0
    %1156 = vmatprep.subr.mxu0 0.0
    %1157 = vmatpush1.xpose.msra.mxu0 0.0
    %1158 = vmatprep.subr.mxu0 0.0
    %1159 = vmatpush1.xpose.msra.mxu0 0.0
    %1160 = vmatprep.subr.mxu0 0.0
    %1161 = vmatpush1.xpose.msra.mxu0 0.0
    %1162 = vmatprep.subr.mxu0 0.0
    %1163 = vmatpush1.xpose.msra.mxu0 0.0
    %1164 = vmatprep.subr.mxu0 0.0
    %1165 = vmatpush1.xpose.msra.mxu0 0.0
    %1166 = vmatprep.subr.mxu0 0.0
    %1167 = vmatpush1.xpose.msra.mxu0 0.0
    %1168 = vmatprep.subr.mxu0 0.0
    %1169 = vmatpush1.xpose.msra.mxu0 0.0
    %1170 = vmatprep.subr.mxu0 0.0
    %1171 = vmatpush1.xpose.msra.mxu0 0.0
    %1172 = vmatprep.subr.mxu0 0.0
    %1173 = vmatpush1.xpose.msra.mxu0 0.0
    %1174 = vmatprep.subr.mxu0 0.0
    %1175 = vmatpush1.xpose.msra.mxu0 0.0
    %1176 = vmatprep.subr.mxu0 0.0
    %1177 = vmatpush1.xpose.msra.mxu0 0.0
    %1178 = vmatprep.subr.mxu0 0.0
    %1179 = vmatpush1.xpose.msra.mxu0 0.0
    %1180 = vmatprep.subr.mxu0 0.0
    %1181 = vmatpush1.xpose.msra.mxu0 0.0
    %1182 = vmatprep.subr.mxu0 0.0
    %1183 = vmatpush1.xpose.msra.mxu0 0.0
    %1184 = vmatprep.subr.mxu0 0.0
    %1185 = vmatpush1.xpose.msra.mxu0 0.0
    %1186 = vmatprep.subr.mxu0 0.0
    %1187 = vmatpush1.xpose.msra.mxu0 0.0
    %1188 = vmatprep.subr.mxu0 0.0
    %1189 = vmatpush1.xpose.msra.mxu0 0.0
    %1190 = vmatprep.subr.mxu0 0.0
    %1191 = vmatpush1.xpose.msra.mxu0 0.0
    %1192 = vmatprep.subr.mxu0 0.0
    %1193 = vmatpush1.xpose.msra.mxu0 0.0
    %1194 = vmatprep.mubr.f32.mxu0 0.0
    %1195 = vmatmul.mubr.f32.gmra.mrb[0].mxu0 %v1122
    %v1196 = vpop.f32.mrb[0].mxu0
    %v1197 = vadd.f32 0.0, %v1196
    %v1198 = vpop.f32.mrb[0].mxu0
    %1199 = vmatprep.mubr.f32.mxu0 0.0
    %1200 = vmatmul.mubr.f32.gmra.mrb[0].mxu0 %v1124
    %v1201 = vpop.f32.mrb[0].mxu0
    %v1202 = vadd.f32 0.0, %v1201
    %v1203 = vpop.f32.mrb[0].mxu0
    %1204 = vdwg.mxu0
    %v1205 = vmul.f32 %v1197, 0.17677669
    %v1206 = vmul.f32 %v1202, 0.17677669
    %v1207 = vadd.f32 %v1205, %v241
    %v1208 = vadd.f32 %v1206, %v242
    %v1209 = vsel %vm642, %v1207, -inf
    %1210 = vmax.xlane.f32.xlu0 %v1209
    %v1211 = vpop.xlane.xlu0 %1210
    %v1212 = vsel %vm642, %v1208, -inf
    %1213 = vmax.xlane.f32.xlu0 %v1212
    %v1214 = vpop.xlane.xlu0 %1213
    %v1215 = vsub.f32 %v1207, %v1211
    %v1216 = vsub.f32 %v1208, %v1214
    %v1217 = vmul.f32 %v1215, 1.442695
    %v1218 = vpow.pop %v1217
    %v1219 = vmul.f32 %v1216, 1.442695
    %v1220 = vpow.pop %v1219
    %v1221 = vsel %vm642, %v1218, 0.0
    %1222 = vadd.xlane.f32.xlu0 %v1221
    %v1223 = vpop.xlane.xlu0 %1222
    %v1224 = vsel %vm642, %v1220, 0.0
    %1225 = vadd.xlane.f32.xlu0 %v1224
    %v1226 = vpop.xlane.xlu0 %1225
    %v1227 = vrcp.pop %v1223
    %v1228 = vrcp.pop %v1226
    %v1229 = vmul.f32 %v1218, %v1227
    %v1230 = vmul.f32 %v1220, %v1228
    %1231 = vrot.lane.b32.xlu0 %v543, 112
    %v1232 = vpop.permute.xlu0 %1231
    %1233 = vrot.lane.b32.xlu0 %v548, 112
    %v1234 = vpop.permute.xlu0 %1233
    %v1238 = vsel %vm642, %v1229, 0
    %v1241 = vsel %vm642, %v1230, 0
    %1243 = vmatprep.subr.mxu0 0.0
    %1244 = vmatpush1.msra.mxu0 %v1232
    %1245 = vmatprep.subr.mxu0 0.0
    %1246 = vmatpush1.msra.mxu0 %v1234
    %1247 = vmatprep.subr.mxu0 0.0
    %1248 = vmatpush1.msra.mxu0 0.0
    %1249 = vmatprep.subr.mxu0 0.0
    %1250 = vmatpush1.msra.mxu0 0.0
    %1251 = vmatprep.subr.mxu0 0.0
    %1252 = vmatpush1.msra.mxu0 0.0
    %1253 = vmatprep.subr.mxu0 0.0
    %1254 = vmatpush1.msra.mxu0 0.0
    %1255 = vmatprep.subr.mxu0 0.0
    %1256 = vmatpush1.msra.mxu0 0.0
    %1257 = vmatprep.subr.mxu0 0.0
    %1258 = vmatpush1.msra.mxu0 0.0
    %1259 = vmatprep.subr.mxu0 0.0
    %1260 = vmatpush1.msra.mxu0 0.0
    %1261 = vmatprep.subr.mxu0 0.0
    %1262 = vmatpush1.msra.mxu0 0.0
    %1263 = vmatprep.subr.mxu0 0.0
    %1264 = vmatpush1.msra.mxu0 0.0
    %1265 = vmatprep.subr.mxu0 0.0
    %1266 = vmatpush1.msra.mxu0 0.0
    %1267 = vmatprep.subr.mxu0 0.0
    %1268 = vmatpush1.msra.mxu0 0.0
    %1269 = vmatprep.subr.mxu0 0.0
    %1270 = vmatpush1.msra.mxu0 0.0
    %1271 = vmatprep.subr.mxu0 0.0
    %1272 = vmatpush1.msra.mxu0 0.0
    %1273 = vmatprep.subr.mxu0 0.0
    %1274 = vmatpush1.msra.mxu0 0.0
    %1275 = vmatprep.subr.mxu0 0.0
    %1276 = vmatpush1.msra.mxu0 0.0
    %1277 = vmatprep.subr.mxu0 0.0
    %1278 = vmatpush1.msra.mxu0 0.0
    %1279 = vmatprep.subr.mxu0 0.0
    %1280 = vmatpush1.msra.mxu0 0.0
    %1281 = vmatprep.subr.mxu0 0.0
    %1282 = vmatpush1.msra.mxu0 0.0
    %1283 = vmatprep.subr.mxu0 0.0
    %1284 = vmatpush1.msra.mxu0 0.0
    %1285 = vmatprep.subr.mxu0 0.0
    %1286 = vmatpush1.msra.mxu0 0.0
    %1287 = vmatprep.subr.mxu0 0.0
    %1288 = vmatpush1.msra.mxu0 0.0
    %1289 = vmatprep.subr.mxu0 0.0
    %1290 = vmatpush1.msra.mxu0 0.0
    %1291 = vmatprep.subr.mxu0 0.0
    %1292 = vmatpush1.msra.mxu0 0.0
    %1293 = vmatprep.subr.mxu0 0.0
    %1294 = vmatpush1.msra.mxu0 0.0
    %1295 = vmatprep.subr.mxu0 0.0
    %1296 = vmatpush1.msra.mxu0 0.0
    %1297 = vmatprep.subr.mxu0 0.0
    %1298 = vmatpush1.msra.mxu0 0.0
    %1299 = vmatprep.subr.mxu0 0.0
    %1300 = vmatpush1.msra.mxu0 0.0
    %1301 = vmatprep.subr.mxu0 0.0
    %1302 = vmatpush1.msra.mxu0 0.0
    %1303 = vmatprep.subr.mxu0 0.0
    %1304 = vmatpush1.msra.mxu0 0.0
    %1305 = vmatprep.subr.mxu0 0.0
    %1306 = vmatpush1.msra.mxu0 0.0
    %1307 = vmatprep.mubr.f32.mxu0 0.0
    %1308 = vmatmul.mubr.f32.gmra.mrb[0].mxu0 %v1238
    %v1309 = vpop.f32.mrb[0].mxu0
    %v1310 = vadd.f32 0.0, %v1309
    %v1311 = vpop.f32.mrb[0].mxu0
    %1312 = vmatprep.mubr.f32.mxu0 0.0
    %1313 = vmatmul.mubr.f32.gmra.mrb[0].mxu0 %v1241
    %v1314 = vpop.f32.mrb[0].mxu0
    %v1315 = vadd.f32 0.0, %v1314
    %v1316 = vpop.f32.mrb[0].mxu0
    %1317 = vdwg.mxu0
    %v1319 = vsel %vm69, %v1310, 0
    %v1322 = vsel %vm69, %v1315, 0
    %1324 = vmatprep.subr.mxu0 0.0
    %1325 = vmatpush1.msra.mxu0 %v257
    %1326 = vmatprep.subr.mxu0 0.0
    %1327 = vmatpush1.msra.mxu0 0.0
    %1328 = vmatprep.subr.mxu0 0.0
    %1329 = vmatpush1.msra.mxu0 0.0
    %1330 = vmatprep.subr.mxu0 0.0
    %1331 = vmatpush1.msra.mxu0 0.0
    %1332 = vmatprep.subr.mxu0 0.0
    %1333 = vmatpush1.msra.mxu0 0.0
    %1334 = vmatprep.subr.mxu0 0.0
    %1335 = vmatpush1.msra.mxu0 0.0
    %1336 = vmatprep.subr.mxu0 0.0
    %1337 = vmatpush1.msra.mxu0 0.0
    %1338 = vmatprep.subr.mxu0 0.0
    %1339 = vmatpush1.msra.mxu0 0.0
    %1340 = vmatprep.subr.mxu0 0.0
    %1341 = vmatpush1.msra.mxu0 0.0
    %1342 = vmatprep.subr.mxu0 0.0
    %1343 = vmatpush1.msra.mxu0 0.0
    %1344 = vmatprep.subr.mxu0 0.0
    %1345 = vmatpush1.msra.mxu0 0.0
    %1346 = vmatprep.subr.mxu0 0.0
    %1347 = vmatpush1.msra.mxu0 0.0
    %1348 = vmatprep.subr.mxu0 0.0
    %1349 = vmatpush1.msra.mxu0 0.0
    %1350 = vmatprep.subr.mxu0 0.0
    %1351 = vmatpush1.msra.mxu0 0.0
    %1352 = vmatprep.subr.mxu0 0.0
    %1353 = vmatpush1.msra.mxu0 0.0
    %1354 = vmatprep.subr.mxu0 0.0
    %1355 = vmatpush1.msra.mxu0 0.0
    %1356 = vmatprep.subr.mxu0 0.0
    %1357 = vmatpush1.msra.mxu0 0.0
    %1358 = vmatprep.subr.mxu0 0.0
    %1359 = vmatpush1.msra.mxu0 0.0
    %1360 = vmatprep.subr.mxu0 0.0
    %1361 = vmatpush1.msra.mxu0 0.0
    %1362 = vmatprep.subr.mxu0 0.0
    %1363 = vmatpush1.msra.mxu0 0.0
    %1364 = vmatprep.subr.mxu0 0.0
    %1365 = vmatpush1.msra.mxu0 0.0
    %1366 = vmatprep.subr.mxu0 0.0
    %1367 = vmatpush1.msra.mxu0 0.0
    %1368 = vmatprep.subr.mxu0 0.0
    %1369 = vmatpush1.msra.mxu0 0.0
    %1370 = vmatprep.subr.mxu0 0.0
    %1371 = vmatpush1.msra.mxu0 0.0
    %1372 = vmatprep.subr.mxu0 0.0
    %1373 = vmatpush1.msra.mxu0 0.0
    %1374 = vmatprep.subr.mxu0 0.0
    %1375 = vmatpush1.msra.mxu0 0.0
    %1376 = vmatprep.subr.mxu0 0.0
    %1377 = vmatpush1.msra.mxu0 0.0
    %1378 = vmatprep.subr.mxu0 0.0
    %1379 = vmatpush1.msra.mxu0 0.0
    %1380 = vmatprep.subr.mxu0 0.0
    %1381 = vmatpush1.msra.mxu0 0.0
    %1382 = vmatprep.subr.mxu0 0.0
    %1383 = vmatpush1.msra.mxu0 0.0
    %1384 = vmatprep.subr.mxu0 0.0
    %1385 = vmatpush1.msra.mxu0 0.0
    %1386 = vmatprep.subr.mxu0 0.0
    %1387 = vmatpush1.msra.mxu0 0.0
    %1388 = vmatprep.mubr.f32.mxu0 0.0
    %1389 = vmatmul.mubr.f32.gmra.mrb[0].mxu0 %v1319
    %v1390 = vpop.f32.mrb[0].mxu0
    %v1391 = vadd.f32 0.0, %v1390
    %v1392 = vpop.f32.mrb[0].mxu0
    %1393 = vmatprep.mubr.f32.mxu0 0.0
    %1394 = vmatmul.mubr.f32.gmra.mrb[0].mxu0 %v1322
    %v1395 = vpop.f32.mrb[0].mxu0
    %v1396 = vadd.f32 0.0, %v1395
    %v1397 = vpop.f32.mrb[0].mxu0
    %1398 = vdwg.mxu0
    %v1399 = vadd.f32 %v1106, %v1391
    %v1400 = vadd.f32 %v1111, %v1396
    %1401 = vrot.lane.b32.xlu0 %v393, 104
    %v1402 = vpop.permute.xlu0 %1401
    %1403 = vrot.lane.b32.xlu0 %v398, 104
    %v1404 = vpop.permute.xlu0 %1403
    %1405 = vrot.lane.b32.xlu0 %v468, 104
    %v1406 = vpop.permute.xlu0 %1405
    %1407 = vrot.lane.b32.xlu0 %v473, 104
    %v1408 = vpop.permute.xlu0 %1407
    %v1409 = vsel %vm69, %v1402, 0
    %v1411 = vsel %vm69, %v1404, 0
    %v1413 = vsel %vm69, %v1406, 0
    %v1415 = vsel %vm69, %v1408, 0
    %1417 = vmatprep.subr.mxu0 0.0
    %1418 = vmatpush1.xpose.msra.mxu0 %v1413
    %1419 = vmatprep.subr.mxu0 0.0
    %1420 = vmatpush1.xpose.msra.mxu0 %v1415
    %1421 = vmatprep.subr.mxu0 0.0
    %1422 = vmatpush1.xpose.msra.mxu0 0.0
    %1423 = vmatprep.subr.mxu0 0.0
    %1424 = vmatpush1.xpose.msra.mxu0 0.0
    %1425 = vmatprep.subr.mxu0 0.0
    %1426 = vmatpush1.xpose.msra.mxu0 0.0
    %1427 = vmatprep.subr.mxu0 0.0
    %1428 = vmatpush1.xpose.msra.mxu0 0.0
    %1429 = vmatprep.subr.mxu0 0.0
    %1430 = vmatpush1.xpose.msra.mxu0 0.0
    %1431 = vmatprep.subr.mxu0 0.0
    %1432 = vmatpush1.xpose.msra.mxu0 0.0
    %1433 = vmatprep.subr.mxu0 0.0
    %1434 = vmatpush1.xpose.msra.mxu0 0.0
    %1435 = vmatprep.subr.mxu0 0.0
    %1436 = vmatpush1.xpose.msra.mxu0 0.0
    %1437 = vmatprep.subr.mxu0 0.0
    %1438 = vmatpush1.xpose.msra.mxu0 0.0
    %1439 = vmatprep.subr.mxu0 0.0
    %1440 = vmatpush1.xpose.msra.mxu0 0.0
    %1441 = vmatprep.subr.mxu0 0.0
    %1442 = vmatpush1.xpose.msra.mxu0 0.0
    %1443 = vmatprep.subr.mxu0 0.0
    %1444 = vmatpush1.xpose.msra.mxu0 0.0
    %1445 = vmatprep.subr.mxu0 0.0
    %1446 = vmatpush1.xpose.msra.mxu0 0.0
    %1447 = vmatprep.subr.mxu0 0.0
    %1448 = vmatpush1.xpose.msra.mxu0 0.0
    %1449 = vmatprep.subr.mxu0 0.0
    %1450 = vmatpush1.xpose.msra.mxu0 0.0
    %1451 = vmatprep.subr.mxu0 0.0
    %1452 = vmatpush1.xpose.msra.mxu0 0.0
    %1453 = vmatprep.subr.mxu0 0.0
    %1454 = vmatpush1.xpose.msra.mxu0 0.0
    %1455 = vmatprep.subr.mxu0 0.0
    %1456 = vmatpush1.xpose.msra.mxu0 0.0
    %1457 = vmatprep.subr.mxu0 0.0
    %1458 = vmatpush1.xpose.msra.mxu0 0.0
    %1459 = vmatprep.subr.mxu0 0.0
    %1460 = vmatpush1.xpose.msra.mxu0 0.0
    %1461 = vmatprep.subr.mxu0 0.0
    %1462 = vmatpush1.xpose.msra.mxu0 0.0
    %1463 = vmatprep.subr.mxu0 0.0
    %1464 = vmatpush1.xpose.msra.mxu0 0.0
    %1465 = vmatprep.subr.mxu0 0.0
    %1466 = vmatpush1.xpose.msra.mxu0 0.0
    %1467 = vmatprep.subr.mxu0 0.0
    %1468 = vmatpush1.xpose.msra.mxu0 0.0
    %1469 = vmatprep.subr.mxu0 0.0
    %1470 = vmatpush1.xpose.msra.mxu0 0.0
    %1471 = vmatprep.subr.mxu0 0.0
    %1472 = vmatpush1.xpose.msra.mxu0 0.0
    %1473 = vmatprep.subr.mxu0 0.0
    %1474 = vmatpush1.xpose.msra.mxu0 0.0
    %1475 = vmatprep.subr.mxu0 0.0
    %1476 = vmatpush1.xpose.msra.mxu0 0.0
    %1477 = vmatprep.subr.mxu0 0.0
    %1478 = vmatpush1.xpose.msra.mxu0 0.0
    %1479 = vmatprep.subr.mxu0 0.0
    %1480 = vmatpush1.xpose.msra.mxu0 0.0
    %1481 = vmatprep.mubr.f32.mxu0 0.0
    %1482 = vmatmul.mubr.f32.gmra.mrb[0].mxu0 %v1409
    %v1483 = vpop.f32.mrb[0].mxu0
    %v1484 = vadd.f32 0.0, %v1483
    %v1485 = vpop.f32.mrb[0].mxu0
    %1486 = vmatprep.mubr.f32.mxu0 0.0
    %1487 = vmatmul.mubr.f32.gmra.mrb[0].mxu0 %v1411
    %v1488 = vpop.f32.mrb[0].mxu0
    %v1489 = vadd.f32 0.0, %v1488
    %v1490 = vpop.f32.mrb[0].mxu0
    %1491 = vdwg.mxu0
    %v1492 = vmul.f32 %v1484, 0.17677669
    %v1493 = vmul.f32 %v1489, 0.17677669
    %v1494 = vadd.f32 %v1492, %v241
    %v1495 = vadd.f32 %v1493, %v242
    %v1496 = vsel %vm642, %v1494, -inf
    %1497 = vmax.xlane.f32.xlu0 %v1496
    %v1498 = vpop.xlane.xlu0 %1497
    %v1499 = vsel %vm642, %v1495, -inf
    %1500 = vmax.xlane.f32.xlu0 %v1499
    %v1501 = vpop.xlane.xlu0 %1500
    %v1502 = vsub.f32 %v1494, %v1498
    %v1503 = vsub.f32 %v1495, %v1501
    %v1504 = vmul.f32 %v1502, 1.442695
    %v1505 = vpow.pop %v1504
    %v1506 = vmul.f32 %v1503, 1.442695
    %v1507 = vpow.pop %v1506
    %v1508 = vsel %vm642, %v1505, 0.0
    %1509 = vadd.xlane.f32.xlu0 %v1508
    %v1510 = vpop.xlane.xlu0 %1509
    %v1511 = vsel %vm642, %v1507, 0.0
    %1512 = vadd.xlane.f32.xlu0 %v1511
    %v1513 = vpop.xlane.xlu0 %1512
    %v1514 = vrcp.pop %v1510
    %v1515 = vrcp.pop %v1513
    %v1516 = vmul.f32 %v1505, %v1514
    %v1517 = vmul.f32 %v1507, %v1515
    %1518 = vrot.lane.b32.xlu0 %v543, 104
    %v1519 = vpop.permute.xlu0 %1518
    %1520 = vrot.lane.b32.xlu0 %v548, 104
    %v1521 = vpop.permute.xlu0 %1520
    %v1525 = vsel %vm642, %v1516, 0
    %v1528 = vsel %vm642, %v1517, 0
    %1530 = vmatprep.subr.mxu0 0.0
    %1531 = vmatpush1.msra.mxu0 %v1519
    %1532 = vmatprep.subr.mxu0 0.0
    %1533 = vmatpush1.msra.mxu0 %v1521
    %1534 = vmatprep.subr.mxu0 0.0
    %1535 = vmatpush1.msra.mxu0 0.0
    %1536 = vmatprep.subr.mxu0 0.0
    %1537 = vmatpush1.msra.mxu0 0.0
    %1538 = vmatprep.subr.mxu0 0.0
    %1539 = vmatpush1.msra.mxu0 0.0
    %1540 = vmatprep.subr.mxu0 0.0
    %1541 = vmatpush1.msra.mxu0 0.0
    %1542 = vmatprep.subr.mxu0 0.0
    %1543 = vmatpush1.msra.mxu0 0.0
    %1544 = vmatprep.subr.mxu0 0.0
    %1545 = vmatpush1.msra.mxu0 0.0
    %1546 = vmatprep.subr.mxu0 0.0
    %1547 = vmatpush1.msra.mxu0 0.0
    %1548 = vmatprep.subr.mxu0 0.0
    %1549 = vmatpush1.msra.mxu0 0.0
    %1550 = vmatprep.subr.mxu0 0.0
    %1551 = vmatpush1.msra.mxu0 0.0
    %1552 = vmatprep.subr.mxu0 0.0
    %1553 = vmatpush1.msra.mxu0 0.0
    %1554 = vmatprep.subr.mxu0 0.0
    %1555 = vmatpush1.msra.mxu0 0.0
    %1556 = vmatprep.subr.mxu0 0.0
    %1557 = vmatpush1.msra.mxu0 0.0
    %1558 = vmatprep.subr.mxu0 0.0
    %1559 = vmatpush1.msra.mxu0 0.0
    %1560 = vmatprep.subr.mxu0 0.0
    %1561 = vmatpush1.msra.mxu0 0.0
    %1562 = vmatprep.subr.mxu0 0.0
    %1563 = vmatpush1.msra.mxu0 0.0
    %1564 = vmatprep.subr.mxu0 0.0
    %1565 = vmatpush1.msra.mxu0 0.0
    %1566 = vmatprep.subr.mxu0 0.0
    %1567 = vmatpush1.msra.mxu0 0.0
    %1568 = vmatprep.subr.mxu0 0.0
    %1569 = vmatpush1.msra.mxu0 0.0
    %1570 = vmatprep.subr.mxu0 0.0
    %1571 = vmatpush1.msra.mxu0 0.0
    %1572 = vmatprep.subr.mxu0 0.0
    %1573 = vmatpush1.msra.mxu0 0.0
    %1574 = vmatprep.subr.mxu0 0.0
    %1575 = vmatpush1.msra.mxu0 0.0
    %1576 = vmatprep.subr.mxu0 0.0
    %1577 = vmatpush1.msra.mxu0 0.0
    %1578 = vmatprep.subr.mxu0 0.0
    %1579 = vmatpush1.msra.mxu0 0.0
    %1580 = vmatprep.subr.mxu0 0.0
    %1581 = vmatpush1.msra.mxu0 0.0
    %1582 = vmatprep.subr.mxu0 0.0
    %1583 = vmatpush1.msra.mxu0 0.0
    %1584 = vmatprep.subr.mxu0 0.0
    %1585 = vmatpush1.msra.mxu0 0.0
    %1586 = vmatprep.subr.mxu0 0.0
    %1587 = vmatpush1.msra.mxu0 0.0
    %1588 = vmatprep.subr.mxu0 0.0
    %1589 = vmatpush1.msra.mxu0 0.0
    %1590 = vmatprep.subr.mxu0 0.0
    %1591 = vmatpush1.msra.mxu0 0.0
    %1592 = vmatprep.subr.mxu0 0.0
    %1593 = vmatpush1.msra.mxu0 0.0
    %1594 = vmatprep.mubr.f32.mxu0 0.0
    %1595 = vmatmul.mubr.f32.gmra.mrb[0].mxu0 %v1525
    %v1596 = vpop.f32.mrb[0].mxu0
    %v1597 = vadd.f32 0.0, %v1596
    %v1598 = vpop.f32.mrb[0].mxu0
    %1599 = vmatprep.mubr.f32.mxu0 0.0
    %1600 = vmatmul.mubr.f32.gmra.mrb[0].mxu0 %v1528
    %v1601 = vpop.f32.mrb[0].mxu0
    %v1602 = vadd.f32 0.0, %v1601
    %v1603 = vpop.f32.mrb[0].mxu0
    %1604 = vdwg.mxu0
    %v1606 = vsel %vm69, %v1597, 0
    %v1609 = vsel %vm69, %v1602, 0
    %1611 = vmatprep.subr.mxu0 0.0
    %1612 = vmatpush1.msra.mxu0 %v258
    %1613 = vmatprep.subr.mxu0 0.0
    %1614 = vmatpush1.msra.mxu0 0.0
    %1615 = vmatprep.subr.mxu0 0.0
    %1616 = vmatpush1.msra.mxu0 0.0
    %1617 = vmatprep.subr.mxu0 0.0
    %1618 = vmatpush1.msra.mxu0 0.0
    %1619 = vmatprep.subr.mxu0 0.0
    %1620 = vmatpush1.msra.mxu0 0.0
    %1621 = vmatprep.subr.mxu0 0.0
    %1622 = vmatpush1.msra.mxu0 0.0
    %1623 = vmatprep.subr.mxu0 0.0
    %1624 = vmatpush1.msra.mxu0 0.0
    %1625 = vmatprep.subr.mxu0 0.0
    %1626 = vmatpush1.msra.mxu0 0.0
    %1627 = vmatprep.subr.mxu0 0.0
    %1628 = vmatpush1.msra.mxu0 0.0
    %1629 = vmatprep.subr.mxu0 0.0
    %1630 = vmatpush1.msra.mxu0 0.0
    %1631 = vmatprep.subr.mxu0 0.0
    %1632 = vmatpush1.msra.mxu0 0.0
    %1633 = vmatprep.subr.mxu0 0.0
    %1634 = vmatpush1.msra.mxu0 0.0
    %1635 = vmatprep.subr.mxu0 0.0
    %1636 = vmatpush1.msra.mxu0 0.0
    %1637 = vmatprep.subr.mxu0 0.0
    %1638 = vmatpush1.msra.mxu0 0.0
    %1639 = vmatprep.subr.mxu0 0.0
    %1640 = vmatpush1.msra.mxu0 0.0
    %1641 = vmatprep.subr.mxu0 0.0
    %1642 = vmatpush1.msra.mxu0 0.0
    %1643 = vmatprep.subr.mxu0 0.0
    %1644 = vmatpush1.msra.mxu0 0.0
    %1645 = vmatprep.subr.mxu0 0.0
    %1646 = vmatpush1.msra.mxu0 0.0
    %1647 = vmatprep.subr.mxu0 0.0
    %1648 = vmatpush1.msra.mxu0 0.0
    %1649 = vmatprep.subr.mxu0 0.0
    %1650 = vmatpush1.msra.mxu0 0.0
    %1651 = vmatprep.subr.mxu0 0.0
    %1652 = vmatpush1.msra.mxu0 0.0
    %1653 = vmatprep.subr.mxu0 0.0
    %1654 = vmatpush1.msra.mxu0 0.0
    %1655 = vmatprep.subr.mxu0 0.0
    %1656 = vmatpush1.msra.mxu0 0.0
    %1657 = vmatprep.subr.mxu0 0.0
    %1658 = vmatpush1.msra.mxu0 0.0
    %1659 = vmatprep.subr.mxu0 0.0
    %1660 = vmatpush1.msra.mxu0 0.0
    %1661 = vmatprep.subr.mxu0 0.0
    %1662 = vmatpush1.msra.mxu0 0.0
    %1663 = vmatprep.subr.mxu0 0.0
    %1664 = vmatpush1.msra.mxu0 0.0
    %1665 = vmatprep.subr.mxu0 0.0
    %1666 = vmatpush1.msra.mxu0 0.0
    %1667 = vmatprep.subr.mxu0 0.0
    %1668 = vmatpush1.msra.mxu0 0.0
    %1669 = vmatprep.subr.mxu0 0.0
    %1670 = vmatpush1.msra.mxu0 0.0
    %1671 = vmatprep.subr.mxu0 0.0
    %1672 = vmatpush1.msra.mxu0 0.0
    %1673 = vmatprep.subr.mxu0 0.0
    %1674 = vmatpush1.msra.mxu0 0.0
    %1675 = vmatprep.mubr.f32.mxu0 0.0
    %1676 = vmatmul.mubr.f32.gmra.mrb[0].mxu0 %v1606
    %v1677 = vpop.f32.mrb[0].mxu0
    %v1678 = vadd.f32 0.0, %v1677
    %v1679 = vpop.f32.mrb[0].mxu0
    %1680 = vmatprep.mubr.f32.mxu0 0.0
    %1681 = vmatmul.mubr.f32.gmra.mrb[0].mxu0 %v1609
    %v1682 = vpop.f32.mrb[0].mxu0
    %v1683 = vadd.f32 0.0, %v1682
    %v1684 = vpop.f32.mrb[0].mxu0
    %1685 = vdwg.mxu0
    %v1686 = vadd.f32 %v1399, %v1678
    %v1687 = vadd.f32 %v1400, %v1683
    %v1688 = vadd.f32 %v225, %v1686
    %v1689 = vadd.f32 %v230, %v1687
    %v1690 = vlaneseq
    %v1691 = vshrl.u32 %v1690, 7
    %v1692 = vsub.s32 2, %v1691
    %v1693 = vrot.slane %v279, %v1692
    %v1694 = vadd.f32 %v1688, %v1693
    %v1695 = vadd.f32 %v1689, %v1693
    %v1696 = vsel %vm280, %v1694, 0.0
    %1697 = vadd.xlane.f32.xlu0 %v1696
    %v1698 = vpop.xlane.xlu0 %1697
    %v1699 = vsel %vm280, %v1695, 0.0
    %1700 = vadd.xlane.f32.xlu0 %v1699
    %v1701 = vpop.xlane.xlu0 %1700
    %v1702 = vmul.f32 %v1698, %v287
    %v1703 = vmul.f32 %v1701, %v287
    %v1704 = vsub.f32 %v1694, %v1702
    %v1705 = vsub.f32 %v1695, %v1703
    %v1706 = vmul.f32 %v1704, %v1704
    %v1707 = vmul.f32 %v1705, %v1705
    %v1708 = vsel %vm280, %v1706, 0.0
    %1709 = vadd.xlane.f32.xlu0 %v1708
    %v1710 = vpop.xlane.xlu0 %1709
    %v1711 = vsel %vm280, %v1707, 0.0
    %1712 = vadd.xlane.f32.xlu0 %v1711
    %v1713 = vpop.xlane.xlu0 %1712
    %v1714 = vmul.f32 %v1710, %v287
    %v1715 = vmul.f32 %v1713, %v287
    %v1716 = vadd.f32 %v1714, 1e-05
    %v1717 = vadd.f32 %v1715, 1e-05
    %v1718 = vrsqrt.pop %v1716
    %v1719 = vrsqrt.pop %v1717
    %v1720 = vmul.f32 %v1704, %v1718
    %v1721 = vmul.f32 %v1705, %v1719
    %v1722 = vlaneseq
    %v1723 = vshrl.u32 %v1722, 7
    %v1724 = vsub.s32 3, %v1723
    %v1725 = vrot.slane %v279, %v1724
    %v1726 = vmul.f32 %v1720, %v1725
    %v1727 = vmul.f32 %v1721, %v1725
    %v1728 = vlaneseq
    %v1729 = vshrl.u32 %v1728, 7
    %v1730 = vsub.s32 4, %v1729
    %v1731 = vrot.slane %v279, %v1730
    %v1732 = vadd.f32 %v1726, %v1731
    %v1733 = vadd.f32 %v1727, %v1731
    %v1734 = vlaneseq
    %v1735 = vshrl.u32 %v1734, 7
    %v1736 = vsub.s32 6, %v1735
    %v1737 = vrot.slane %v279, %v1736
    %v1739 = vsel %vm280, %v1732, 0
    %v1742 = vsel %vm280, %v1733, 0
    %1744 = vmatprep.subr.mxu0 0.0
    %1745 = vmatpush1.msra.mxu0 %v259
    %1746 = vmatprep.subr.mxu0 0.0
    %1747 = vmatpush1.msra.mxu0 %v260
    %1748 = vmatprep.subr.mxu0 0.0
    %1749 = vmatpush1.msra.mxu0 %v261
    %1750 = vmatprep.subr.mxu0 0.0
    %1751 = vmatpush1.msra.mxu0 %v262
    %1752 = vmatprep.subr.mxu0 0.0
    %1753 = vmatpush1.msra.mxu0 0.0
    %1754 = vmatprep.subr.mxu0 0.0
    %1755 = vmatpush1.msra.mxu0 0.0
    %1756 = vmatprep.subr.mxu0 0.0
    %1757 = vmatpush1.msra.mxu0 0.0
    %1758 = vmatprep.subr.mxu0 0.0
    %1759 = vmatpush1.msra.mxu0 0.0
    %1760 = vmatprep.subr.mxu0 0.0
    %1761 = vmatpush1.msra.mxu0 0.0
    %1762 = vmatprep.subr.mxu0 0.0
    %1763 = vmatpush1.msra.mxu0 0.0
    %1764 = vmatprep.subr.mxu0 0.0
    %1765 = vmatpush1.msra.mxu0 0.0
    %1766 = vmatprep.subr.mxu0 0.0
    %1767 = vmatpush1.msra.mxu0 0.0
    %1768 = vmatprep.subr.mxu0 0.0
    %1769 = vmatpush1.msra.mxu0 0.0
    %1770 = vmatprep.subr.mxu0 0.0
    %1771 = vmatpush1.msra.mxu0 0.0
    %1772 = vmatprep.subr.mxu0 0.0
    %1773 = vmatpush1.msra.mxu0 0.0
    %1774 = vmatprep.subr.mxu0 0.0
    %1775 = vmatpush1.msra.mxu0 0.0
    %1776 = vmatprep.subr.mxu0 0.0
    %1777 = vmatpush1.msra.mxu0 0.0
    %1778 = vmatprep.subr.mxu0 0.0
    %1779 = vmatpush1.msra.mxu0 0.0
    %1780 = vmatprep.subr.mxu0 0.0
    %1781 = vmatpush1.msra.mxu0 0.0
    %1782 = vmatprep.subr.mxu0 0.0
    %1783 = vmatpush1.msra.mxu0 0.0
    %1784 = vmatprep.subr.mxu0 0.0
    %1785 = vmatpush1.msra.mxu0 0.0
    %1786 = vmatprep.subr.mxu0 0.0
    %1787 = vmatpush1.msra.mxu0 0.0
    %1788 = vmatprep.subr.mxu0 0.0
    %1789 = vmatpush1.msra.mxu0 0.0
    %1790 = vmatprep.subr.mxu0 0.0
    %1791 = vmatpush1.msra.mxu0 0.0
    %1792 = vmatprep.subr.mxu0 0.0
    %1793 = vmatpush1.msra.mxu0 0.0
    %1794 = vmatprep.subr.mxu0 0.0
    %1795 = vmatpush1.msra.mxu0 0.0
    %1796 = vmatprep.subr.mxu0 0.0
    %1797 = vmatpush1.msra.mxu0 0.0
    %1798 = vmatprep.subr.mxu0 0.0
    %1799 = vmatpush1.msra.mxu0 0.0
    %1800 = vmatprep.subr.mxu0 0.0
    %1801 = vmatpush1.msra.mxu0 0.0
    %1802 = vmatprep.subr.mxu0 0.0
    %1803 = vmatpush1.msra.mxu0 0.0
    %1804 = vmatprep.subr.mxu0 0.0
    %1805 = vmatpush1.msra.mxu0 0.0
    %1806 = vmatprep.subr.mxu0 0.0
    %1807 = vmatpush1.msra.mxu0 0.0
    %1808 = vmatprep.mubr.f32.mxu0 0.0
    %1809 = vmatmul.mubr.f32.gmra.mrb[0].mxu0 %v1739
    %v1810 = vpop.f32.mrb[0].mxu0
    %v1811 = vadd.f32 %v1737, %v1810
    %v1812 = vpop.f32.mrb[0].mxu0
    %1813 = vmatprep.mubr.f32.mxu0 0.0
    %1814 = vmatmul.mubr.f32.gmra.mrb[0].mxu0 %v1742
    %v1815 = vpop.f32.mrb[0].mxu0
    %v1816 = vadd.f32 %v1737, %v1815
    %v1817 = vpop.f32.mrb[0].mxu0
    %1818 = vdwg.mxu0
    %v1819 = vmax.f32 %v1811, 0.0
    %v1820 = vmax.f32 %v1816, 0.0
    %v1821 = vlaneseq
    %v1822 = vshrl.u32 %v1821, 7
    %v1823 = vsub.s32 5, %v1822
    %v1824 = vrot.slane %v279, %v1823
    %1825 = vmatprep.subr.mxu0 0.0
    %1826 = vmatpush1.msra.mxu0 %v263
    %1827 = vmatprep.subr.mxu0 0.0
    %1828 = vmatpush1.msra.mxu0 %v264
    %1829 = vmatprep.subr.mxu0 0.0
    %1830 = vmatpush1.msra.mxu0 %v265
    %1831 = vmatprep.subr.mxu0 0.0
    %1832 = vmatpush1.msra.mxu0 %v266
    %1833 = vmatprep.subr.mxu0 0.0
    %1834 = vmatpush1.msra.mxu0 %v267
    %1835 = vmatprep.subr.mxu0 0.0
    %1836 = vmatpush1.msra.mxu0 %v268
    %1837 = vmatprep.subr.mxu0 0.0
    %1838 = vmatpush1.msra.mxu0 %v269
    %1839 = vmatprep.subr.mxu0 0.0
    %1840 = vmatpush1.msra.mxu0 %v270
    %1841 = vmatprep.subr.mxu0 0.0
    %1842 = vmatpush1.msra.mxu0 %v271
    %1843 = vmatprep.subr.mxu0 0.0
    %1844 = vmatpush1.msra.mxu0 %v272
    %1845 = vmatprep.subr.mxu0 0.0
    %1846 = vmatpush1.msra.mxu0 %v273
    %1847 = vmatprep.subr.mxu0 0.0
    %1848 = vmatpush1.msra.mxu0 %v274
    %1849 = vmatprep.subr.mxu0 0.0
    %1850 = vmatpush1.msra.mxu0 %v275
    %1851 = vmatprep.subr.mxu0 0.0
    %1852 = vmatpush1.msra.mxu0 %v276
    %1853 = vmatprep.subr.mxu0 0.0
    %1854 = vmatpush1.msra.mxu0 %v277
    %1855 = vmatprep.subr.mxu0 0.0
    %1856 = vmatpush1.msra.mxu0 %v278
    %1857 = vmatprep.subr.mxu0 0.0
    %1858 = vmatpush1.msra.mxu0 0.0
    %1859 = vmatprep.subr.mxu0 0.0
    %1860 = vmatpush1.msra.mxu0 0.0
    %1861 = vmatprep.subr.mxu0 0.0
    %1862 = vmatpush1.msra.mxu0 0.0
    %1863 = vmatprep.subr.mxu0 0.0
    %1864 = vmatpush1.msra.mxu0 0.0
    %1865 = vmatprep.subr.mxu0 0.0
    %1866 = vmatpush1.msra.mxu0 0.0
    %1867 = vmatprep.subr.mxu0 0.0
    %1868 = vmatpush1.msra.mxu0 0.0
    %1869 = vmatprep.subr.mxu0 0.0
    %1870 = vmatpush1.msra.mxu0 0.0
    %1871 = vmatprep.subr.mxu0 0.0
    %1872 = vmatpush1.msra.mxu0 0.0
    %1873 = vmatprep.subr.mxu0 0.0
    %1874 = vmatpush1.msra.mxu0 0.0
    %1875 = vmatprep.subr.mxu0 0.0
    %1876 = vmatpush1.msra.mxu0 0.0
    %1877 = vmatprep.subr.mxu0 0.0
    %1878 = vmatpush1.msra.mxu0 0.0
    %1879 = vmatprep.subr.mxu0 0.0
    %1880 = vmatpush1.msra.mxu0 0.0
    %1881 = vmatprep.subr.mxu0 0.0
    %1882 = vmatpush1.msra.mxu0 0.0
    %1883 = vmatprep.subr.mxu0 0.0
    %1884 = vmatpush1.msra.mxu0 0.0
    %1885 = vmatprep.subr.mxu0 0.0
    %1886 = vmatpush1.msra.mxu0 0.0
    %1887 = vmatprep.subr.mxu0 0.0
    %1888 = vmatpush1.msra.mxu0 0.0
    %1889 = vmatprep.mubr.f32.mxu0 0.0
    %1890 = vmatmul.mubr.f32.gmra.mrb[0].mxu0 %v1819
    %v1891 = vpop.f32.mrb[0].mxu0
    %v1892 = vadd.f32 %v1824, %v1891
    %v1893 = vpop.f32.mrb[0].mxu0
    %1894 = vmatprep.mubr.f32.mxu0 0.0
    %1895 = vmatmul.mubr.f32.gmra.mrb[0].mxu0 %v1820
    %v1896 = vpop.f32.mrb[0].mxu0
    %v1897 = vadd.f32 %v1824, %v1896
    %v1898 = vpop.f32.mrb[0].mxu0
    %1899 = vdwg.mxu0
    %v1900 = vadd.f32 %v1694, %v1892
    %v1901 = vadd.f32 %v1695, %v1897
    %s1902 = scalar_lea.vmem %s3, 128
    %v1903 = vld [vmem:[%s1902] sm:$0xff]
    %v1904 = vld [vmem:[%s1902 + $0x8] sm:$0xff]
    %v1905 = vld [vmem:[%s1902 + $0x10] sm:$0xff]
    %v1906 = vld [vmem:[%s1902 + $0x18] sm:$0xff]
    %v1907 = vld [vmem:[%s1902 + $0x20] sm:$0xff]
    %v1908 = vld [vmem:[%s1902 + $0x28] sm:$0xff]
    %v1909 = vld [vmem:[%s1902 + $0x30] sm:$0xff]
    %v1910 = vld [vmem:[%s1902 + $0x38] sm:$0xff]
    %v1911 = vld [vmem:[%s1902 + $0x40] sm:$0xff]
    %v1912 = vld [vmem:[%s1902 + $0x48] sm:$0xff]
    %v1913 = vld [vmem:[%s1902 + $0x50] sm:$0xff]
    %v1914 = vld [vmem:[%s1902 + $0x58] sm:$0xff]
    %v1915 = vld [vmem:[%s1902 + $0x60] sm:$0xff]
    %v1916 = vld [vmem:[%s1902 + $0x68] sm:$0xff]
    %v1917 = vld [vmem:[%s1902 + $0x70] sm:$0xff]
    %v1918 = vld [vmem:[%s1902 + $0x78] sm:$0xff]
    %s1919 = scalar_lea.vmem %s4, 32
    %v1920 = vld [vmem:[%s1919] sm:$0xff]
    %v1921 = vld [vmem:[%s1919 + $0x8] sm:$0xff]
    %v1922 = vld [vmem:[%s1919 + $0x10] sm:$0xff]
    %v1923 = vld [vmem:[%s1919 + $0x18] sm:$0xff]
    %s1924 = scalar_lea.vmem %s5, 128
    %v1925 = vld [vmem:[%s1924] sm:$0xff]
    %v1926 = vld [vmem:[%s1924 + $0x8] sm:$0xff]
    %v1927 = vld [vmem:[%s1924 + $0x10] sm:$0xff]
    %v1928 = vld [vmem:[%s1924 + $0x18] sm:$0xff]
    %v1929 = vld [vmem:[%s1924 + $0x20] sm:$0xff]
    %v1930 = vld [vmem:[%s1924 + $0x28] sm:$0xff]
    %v1931 = vld [vmem:[%s1924 + $0x30] sm:$0xff]
    %v1932 = vld [vmem:[%s1924 + $0x38] sm:$0xff]
    %v1933 = vld [vmem:[%s1924 + $0x40] sm:$0xff]
    %v1934 = vld [vmem:[%s1924 + $0x48] sm:$0xff]
    %v1935 = vld [vmem:[%s1924 + $0x50] sm:$0xff]
    %v1936 = vld [vmem:[%s1924 + $0x58] sm:$0xff]
    %v1937 = vld [vmem:[%s1924 + $0x60] sm:$0xff]
    %v1938 = vld [vmem:[%s1924 + $0x68] sm:$0xff]
    %v1939 = vld [vmem:[%s1924 + $0x70] sm:$0xff]
    %v1940 = vld [vmem:[%s1924 + $0x78] sm:$0xff]
    %s1941 = scalar_lea.vmem %s6, 8
    %v1942 = vld [vmem:[%s1941] sm:$0xff]
    %v1943 = vsel %vm280, %v1900, 0.0
    %1944 = vadd.xlane.f32.xlu0 %v1943
    %v1945 = vpop.xlane.xlu0 %1944
    %v1946 = vsel %vm280, %v1901, 0.0
    %1947 = vadd.xlane.f32.xlu0 %v1946
    %v1948 = vpop.xlane.xlu0 %1947
    %v1949 = vmul.f32 %v1945, %v287
    %v1950 = vmul.f32 %v1948, %v287
    %v1951 = vsub.f32 %v1900, %v1949
    %v1952 = vsub.f32 %v1901, %v1950
    %v1953 = vmul.f32 %v1951, %v1951
    %v1954 = vmul.f32 %v1952, %v1952
    %v1955 = vsel %vm280, %v1953, 0.0
    %1956 = vadd.xlane.f32.xlu0 %v1955
    %v1957 = vpop.xlane.xlu0 %1956
    %v1958 = vsel %vm280, %v1954, 0.0
    %1959 = vadd.xlane.f32.xlu0 %v1958
    %v1960 = vpop.xlane.xlu0 %1959
    %v1961 = vmul.f32 %v1957, %v287
    %v1962 = vmul.f32 %v1960, %v287
    %v1963 = vadd.f32 %v1961, 1e-05
    %v1964 = vadd.f32 %v1962, 1e-05
    %v1965 = vrsqrt.pop %v1963
    %v1966 = vrsqrt.pop %v1964
    %v1967 = vmul.f32 %v1951, %v1965
    %v1968 = vmul.f32 %v1952, %v1966
    %v1969 = vlaneseq
    %v1970 = vshrl.u32 %v1969, 7
    %v1971 = vsub.s32 0, %v1970
    %v1972 = vrot.slane %v1942, %v1971
    %v1973 = vmul.f32 %v1967, %v1972
    %v1974 = vmul.f32 %v1968, %v1972
    %v1975 = vlaneseq
    %v1976 = vshrl.u32 %v1975, 7
    %v1977 = vsub.s32 1, %v1976
    %v1978 = vrot.slane %v1942, %v1977
    %v1979 = vadd.f32 %v1973, %v1978
    %v1980 = vadd.f32 %v1974, %v1978
    %v1982 = vsel %vm280, %v1979, 0
    %v1985 = vsel %vm280, %v1980, 0
    %1987 = vmatprep.subr.mxu0 0.0
    %1988 = vmatpush1.msra.mxu0 %v1903
    %1989 = vmatprep.subr.mxu0 0.0
    %1990 = vmatpush1.msra.mxu0 %v1904
    %1991 = vmatprep.subr.mxu0 0.0
    %1992 = vmatpush1.msra.mxu0 %v1905
    %1993 = vmatprep.subr.mxu0 0.0
    %1994 = vmatpush1.msra.mxu0 %v1906
    %1995 = vmatprep.subr.mxu0 0.0
    %1996 = vmatpush1.msra.mxu0 0.0
    %1997 = vmatprep.subr.mxu0 0.0
    %1998 = vmatpush1.msra.mxu0 0.0
    %1999 = vmatprep.subr.mxu0 0.0
    %2000 = vmatpush1.msra.mxu0 0.0
    %2001 = vmatprep.subr.mxu0 0.0
    %2002 = vmatpush1.msra.mxu0 0.0
    %2003 = vmatprep.subr.mxu0 0.0
    %2004 = vmatpush1.msra.mxu0 0.0
    %2005 = vmatprep.subr.mxu0 0.0
    %2006 = vmatpush1.msra.mxu0 0.0
    %2007 = vmatprep.subr.mxu0 0.0
    %2008 = vmatpush1.msra.mxu0 0.0
    %2009 = vmatprep.subr.mxu0 0.0
    %2010 = vmatpush1.msra.mxu0 0.0
    %2011 = vmatprep.subr.mxu0 0.0
    %2012 = vmatpush1.msra.mxu0 0.0
    %2013 = vmatprep.subr.mxu0 0.0
    %2014 = vmatpush1.msra.mxu0 0.0
    %2015 = vmatprep.subr.mxu0 0.0
    %2016 = vmatpush1.msra.mxu0 0.0
    %2017 = vmatprep.subr.mxu0 0.0
    %2018 = vmatpush1.msra.mxu0 0.0
    %2019 = vmatprep.subr.mxu0 0.0
    %2020 = vmatpush1.msra.mxu0 0.0
    %2021 = vmatprep.subr.mxu0 0.0
    %2022 = vmatpush1.msra.mxu0 0.0
    %2023 = vmatprep.subr.mxu0 0.0
    %2024 = vmatpush1.msra.mxu0 0.0
    %2025 = vmatprep.subr.mxu0 0.0
    %2026 = vmatpush1.msra.mxu0 0.0
    %2027 = vmatprep.subr.mxu0 0.0
    %2028 = vmatpush1.msra.mxu0 0.0
    %2029 = vmatprep.subr.mxu0 0.0
    %2030 = vmatpush1.msra.mxu0 0.0
    %2031 = vmatprep.subr.mxu0 0.0
    %2032 = vmatpush1.msra.mxu0 0.0
    %2033 = vmatprep.subr.mxu0 0.0
    %2034 = vmatpush1.msra.mxu0 0.0
    %2035 = vmatprep.subr.mxu0 0.0
    %2036 = vmatpush1.msra.mxu0 0.0
    %2037 = vmatprep.subr.mxu0 0.0
    %2038 = vmatpush1.msra.mxu0 0.0
    %2039 = vmatprep.subr.mxu0 0.0
    %2040 = vmatpush1.msra.mxu0 0.0
    %2041 = vmatprep.subr.mxu0 0.0
    %2042 = vmatpush1.msra.mxu0 0.0
    %2043 = vmatprep.subr.mxu0 0.0
    %2044 = vmatpush1.msra.mxu0 0.0
    %2045 = vmatprep.subr.mxu0 0.0
    %2046 = vmatpush1.msra.mxu0 0.0
    %2047 = vmatprep.subr.mxu0 0.0
    %2048 = vmatpush1.msra.mxu0 0.0
    %2049 = vmatprep.subr.mxu0 0.0
    %2050 = vmatpush1.msra.mxu0 0.0
    %2051 = vmatprep.mubr.f32.mxu0 0.0
    %2052 = vmatmul.mubr.f32.gmra.mrb[0].mxu0 %v1982
    %v2053 = vpop.f32.mrb[0].mxu0
    %v2054 = vadd.f32 0.0, %v2053
    %v2055 = vpop.f32.mrb[0].mxu0
    %2056 = vmatprep.mubr.f32.mxu0 0.0
    %2057 = vmatmul.mubr.f32.gmra.mrb[0].mxu0 %v1985
    %v2058 = vpop.f32.mrb[0].mxu0
    %v2059 = vadd.f32 0.0, %v2058
    %v2060 = vpop.f32.mrb[0].mxu0
    %2061 = vdwg.mxu0
    %2062 = vmatprep.subr.mxu0 0.0
    %2063 = vmatpush1.msra.mxu0 %v1907
    %2064 = vmatprep.subr.mxu0 0.0
    %2065 = vmatpush1.msra.mxu0 %v1908
    %2066 = vmatprep.subr.mxu0 0.0
    %2067 = vmatpush1.msra.mxu0 %v1909
    %2068 = vmatprep.subr.mxu0 0.0
    %2069 = vmatpush1.msra.mxu0 %v1910
    %2070 = vmatprep.subr.mxu0 0.0
    %2071 = vmatpush1.msra.mxu0 0.0
    %2072 = vmatprep.subr.mxu0 0.0
    %2073 = vmatpush1.msra.mxu0 0.0
    %2074 = vmatprep.subr.mxu0 0.0
    %2075 = vmatpush1.msra.mxu0 0.0
    %2076 = vmatprep.subr.mxu0 0.0
    %2077 = vmatpush1.msra.mxu0 0.0
    %2078 = vmatprep.subr.mxu0 0.0
    %2079 = vmatpush1.msra.mxu0 0.0
    %2080 = vmatprep.subr.mxu0 0.0
    %2081 = vmatpush1.msra.mxu0 0.0
    %2082 = vmatprep.subr.mxu0 0.0
    %2083 = vmatpush1.msra.mxu0 0.0
    %2084 = vmatprep.subr.mxu0 0.0
    %2085 = vmatpush1.msra.mxu0 0.0
    %2086 = vmatprep.subr.mxu0 0.0
    %2087 = vmatpush1.msra.mxu0 0.0
    %2088 = vmatprep.subr.mxu0 0.0
    %2089 = vmatpush1.msra.mxu0 0.0
    %2090 = vmatprep.subr.mxu0 0.0
    %2091 = vmatpush1.msra.mxu0 0.0
    %2092 = vmatprep.subr.mxu0 0.0
    %2093 = vmatpush1.msra.mxu0 0.0
    %2094 = vmatprep.subr.mxu0 0.0
    %2095 = vmatpush1.msra.mxu0 0.0
    %2096 = vmatprep.subr.mxu0 0.0
    %2097 = vmatpush1.msra.mxu0 0.0
    %2098 = vmatprep.subr.mxu0 0.0
    %2099 = vmatpush1.msra.mxu0 0.0
    %2100 = vmatprep.subr.mxu0 0.0
    %2101 = vmatpush1.msra.mxu0 0.0
    %2102 = vmatprep.subr.mxu0 0.0
    %2103 = vmatpush1.msra.mxu0 0.0
    %2104 = vmatprep.subr.mxu0 0.0
    %2105 = vmatpush1.msra.mxu0 0.0
    %2106 = vmatprep.subr.mxu0 0.0
    %2107 = vmatpush1.msra.mxu0 0.0
    %2108 = vmatprep.subr.mxu0 0.0
    %2109 = vmatpush1.msra.mxu0 0.0
    %2110 = vmatprep.subr.mxu0 0.0
    %2111 = vmatpush1.msra.mxu0 0.0
    %2112 = vmatprep.subr.mxu0 0.0
    %2113 = vmatpush1.msra.mxu0 0.0
    %2114 = vmatprep.subr.mxu0 0.0
    %2115 = vmatpush1.msra.mxu0 0.0
    %2116 = vmatprep.subr.mxu0 0.0
    %2117 = vmatpush1.msra.mxu0 0.0
    %2118 = vmatprep.subr.mxu0 0.0
    %2119 = vmatpush1.msra.mxu0 0.0
    %2120 = vmatprep.subr.mxu0 0.0
    %2121 = vmatpush1.msra.mxu0 0.0
    %2122 = vmatprep.subr.mxu0 0.0
    %2123 = vmatpush1.msra.mxu0 0.0
    %2124 = vmatprep.subr.mxu0 0.0
    %2125 = vmatpush1.msra.mxu0 0.0
    %2126 = vmatprep.mubr.f32.mxu0 0.0
    %2127 = vmatmul.mubr.f32.gmra.mrb[0].mxu0 %v1982
    %v2128 = vpop.f32.mrb[0].mxu0
    %v2129 = vadd.f32 0.0, %v2128
    %v2130 = vpop.f32.mrb[0].mxu0
    %2131 = vmatprep.mubr.f32.mxu0 0.0
    %2132 = vmatmul.mubr.f32.gmra.mrb[0].mxu0 %v1985
    %v2133 = vpop.f32.mrb[0].mxu0
    %v2134 = vadd.f32 0.0, %v2133
    %v2135 = vpop.f32.mrb[0].mxu0
    %2136 = vdwg.mxu0
    %2137 = vmatprep.subr.mxu0 0.0
    %2138 = vmatpush1.msra.mxu0 %v1911
    %2139 = vmatprep.subr.mxu0 0.0
    %2140 = vmatpush1.msra.mxu0 %v1912
    %2141 = vmatprep.subr.mxu0 0.0
    %2142 = vmatpush1.msra.mxu0 %v1913
    %2143 = vmatprep.subr.mxu0 0.0
    %2144 = vmatpush1.msra.mxu0 %v1914
    %2145 = vmatprep.subr.mxu0 0.0
    %2146 = vmatpush1.msra.mxu0 0.0
    %2147 = vmatprep.subr.mxu0 0.0
    %2148 = vmatpush1.msra.mxu0 0.0
    %2149 = vmatprep.subr.mxu0 0.0
    %2150 = vmatpush1.msra.mxu0 0.0
    %2151 = vmatprep.subr.mxu0 0.0
    %2152 = vmatpush1.msra.mxu0 0.0
    %2153 = vmatprep.subr.mxu0 0.0
    %2154 = vmatpush1.msra.mxu0 0.0
    %2155 = vmatprep.subr.mxu0 0.0
    %2156 = vmatpush1.msra.mxu0 0.0
    %2157 = vmatprep.subr.mxu0 0.0
    %2158 = vmatpush1.msra.mxu0 0.0
    %2159 = vmatprep.subr.mxu0 0.0
    %2160 = vmatpush1.msra.mxu0 0.0
    %2161 = vmatprep.subr.mxu0 0.0
    %2162 = vmatpush1.msra.mxu0 0.0
    %2163 = vmatprep.subr.mxu0 0.0
    %2164 = vmatpush1.msra.mxu0 0.0
    %2165 = vmatprep.subr.mxu0 0.0
    %2166 = vmatpush1.msra.mxu0 0.0
    %2167 = vmatprep.subr.mxu0 0.0
    %2168 = vmatpush1.msra.mxu0 0.0
    %2169 = vmatprep.subr.mxu0 0.0
    %2170 = vmatpush1.msra.mxu0 0.0
    %2171 = vmatprep.subr.mxu0 0.0
    %2172 = vmatpush1.msra.mxu0 0.0
    %2173 = vmatprep.subr.mxu0 0.0
    %2174 = vmatpush1.msra.mxu0 0.0
    %2175 = vmatprep.subr.mxu0 0.0
    %2176 = vmatpush1.msra.mxu0 0.0
    %2177 = vmatprep.subr.mxu0 0.0
    %2178 = vmatpush1.msra.mxu0 0.0
    %2179 = vmatprep.subr.mxu0 0.0
    %2180 = vmatpush1.msra.mxu0 0.0
    %2181 = vmatprep.subr.mxu0 0.0
    %2182 = vmatpush1.msra.mxu0 0.0
    %2183 = vmatprep.subr.mxu0 0.0
    %2184 = vmatpush1.msra.mxu0 0.0
    %2185 = vmatprep.subr.mxu0 0.0
    %2186 = vmatpush1.msra.mxu0 0.0
    %2187 = vmatprep.subr.mxu0 0.0
    %2188 = vmatpush1.msra.mxu0 0.0
    %2189 = vmatprep.subr.mxu0 0.0
    %2190 = vmatpush1.msra.mxu0 0.0
    %2191 = vmatprep.subr.mxu0 0.0
    %2192 = vmatpush1.msra.mxu0 0.0
    %2193 = vmatprep.subr.mxu0 0.0
    %2194 = vmatpush1.msra.mxu0 0.0
    %2195 = vmatprep.subr.mxu0 0.0
    %2196 = vmatpush1.msra.mxu0 0.0
    %2197 = vmatprep.subr.mxu0 0.0
    %2198 = vmatpush1.msra.mxu0 0.0
    %2199 = vmatprep.subr.mxu0 0.0
    %2200 = vmatpush1.msra.mxu0 0.0
    %2201 = vmatprep.mubr.f32.mxu0 0.0
    %2202 = vmatmul.mubr.f32.gmra.mrb[0].mxu0 %v1982
    %v2203 = vpop.f32.mrb[0].mxu0
    %v2204 = vadd.f32 0.0, %v2203
    %v2205 = vpop.f32.mrb[0].mxu0
    %2206 = vmatprep.mubr.f32.mxu0 0.0
    %2207 = vmatmul.mubr.f32.gmra.mrb[0].mxu0 %v1985
    %v2208 = vpop.f32.mrb[0].mxu0
    %v2209 = vadd.f32 0.0, %v2208
    %v2210 = vpop.f32.mrb[0].mxu0
    %2211 = vdwg.mxu0
    %v2213 = vsel %vm69, %v2054, 0
    %v2216 = vsel %vm69, %v2059, 0
    %v2219 = vsel %vm69, %v2129, 0
    %v2222 = vsel %vm69, %v2134, 0
    %2224 = vmatprep.subr.mxu0 0.0
    %2225 = vmatpush1.xpose.msra.mxu0 %v2219
    %2226 = vmatprep.subr.mxu0 0.0
    %2227 = vmatpush1.xpose.msra.mxu0 %v2222
    %2228 = vmatprep.subr.mxu0 0.0
    %2229 = vmatpush1.xpose.msra.mxu0 0.0
    %2230 = vmatprep.subr.mxu0 0.0
    %2231 = vmatpush1.xpose.msra.mxu0 0.0
    %2232 = vmatprep.subr.mxu0 0.0
    %2233 = vmatpush1.xpose.msra.mxu0 0.0
    %2234 = vmatprep.subr.mxu0 0.0
    %2235 = vmatpush1.xpose.msra.mxu0 0.0
    %2236 = vmatprep.subr.mxu0 0.0
    %2237 = vmatpush1.xpose.msra.mxu0 0.0
    %2238 = vmatprep.subr.mxu0 0.0
    %2239 = vmatpush1.xpose.msra.mxu0 0.0
    %2240 = vmatprep.subr.mxu0 0.0
    %2241 = vmatpush1.xpose.msra.mxu0 0.0
    %2242 = vmatprep.subr.mxu0 0.0
    %2243 = vmatpush1.xpose.msra.mxu0 0.0
    %2244 = vmatprep.subr.mxu0 0.0
    %2245 = vmatpush1.xpose.msra.mxu0 0.0
    %2246 = vmatprep.subr.mxu0 0.0
    %2247 = vmatpush1.xpose.msra.mxu0 0.0
    %2248 = vmatprep.subr.mxu0 0.0
    %2249 = vmatpush1.xpose.msra.mxu0 0.0
    %2250 = vmatprep.subr.mxu0 0.0
    %2251 = vmatpush1.xpose.msra.mxu0 0.0
    %2252 = vmatprep.subr.mxu0 0.0
    %2253 = vmatpush1.xpose.msra.mxu0 0.0
    %2254 = vmatprep.subr.mxu0 0.0
    %2255 = vmatpush1.xpose.msra.mxu0 0.0
    %2256 = vmatprep.subr.mxu0 0.0
    %2257 = vmatpush1.xpose.msra.mxu0 0.0
    %2258 = vmatprep.subr.mxu0 0.0
    %2259 = vmatpush1.xpose.msra.mxu0 0.0
    %2260 = vmatprep.subr.mxu0 0.0
    %2261 = vmatpush1.xpose.msra.mxu0 0.0
    %2262 = vmatprep.subr.mxu0 0.0
    %2263 = vmatpush1.xpose.msra.mxu0 0.0
    %2264 = vmatprep.subr.mxu0 0.0
    %2265 = vmatpush1.xpose.msra.mxu0 0.0
    %2266 = vmatprep.subr.mxu0 0.0
    %2267 = vmatpush1.xpose.msra.mxu0 0.0
    %2268 = vmatprep.subr.mxu0 0.0
    %2269 = vmatpush1.xpose.msra.mxu0 0.0
    %2270 = vmatprep.subr.mxu0 0.0
    %2271 = vmatpush1.xpose.msra.mxu0 0.0
    %2272 = vmatprep.subr.mxu0 0.0
    %2273 = vmatpush1.xpose.msra.mxu0 0.0
    %2274 = vmatprep.subr.mxu0 0.0
    %2275 = vmatpush1.xpose.msra.mxu0 0.0
    %2276 = vmatprep.subr.mxu0 0.0
    %2277 = vmatpush1.xpose.msra.mxu0 0.0
    %2278 = vmatprep.subr.mxu0 0.0
    %2279 = vmatpush1.xpose.msra.mxu0 0.0
    %2280 = vmatprep.subr.mxu0 0.0
    %2281 = vmatpush1.xpose.msra.mxu0 0.0
    %2282 = vmatprep.subr.mxu0 0.0
    %2283 = vmatpush1.xpose.msra.mxu0 0.0
    %2284 = vmatprep.subr.mxu0 0.0
    %2285 = vmatpush1.xpose.msra.mxu0 0.0
    %2286 = vmatprep.subr.mxu0 0.0
    %2287 = vmatpush1.xpose.msra.mxu0 0.0
    %2288 = vmatprep.mubr.f32.mxu0 0.0
    %2289 = vmatmul.mubr.f32.gmra.mrb[0].mxu0 %v2213
    %v2290 = vpop.f32.mrb[0].mxu0
    %v2291 = vadd.f32 0.0, %v2290
    %v2292 = vpop.f32.mrb[0].mxu0
    %2293 = vmatprep.mubr.f32.mxu0 0.0
    %2294 = vmatmul.mubr.f32.gmra.mrb[0].mxu0 %v2216
    %v2295 = vpop.f32.mrb[0].mxu0
    %v2296 = vadd.f32 0.0, %v2295
    %v2297 = vpop.f32.mrb[0].mxu0
    %2298 = vdwg.mxu0
    %v2299 = vmul.f32 %v2291, 0.17677669
    %v2300 = vmul.f32 %v2296, 0.17677669
    %v2301 = vadd.f32 %v2299, %v241
    %v2302 = vadd.f32 %v2300, %v242
    %v2303 = vsel %vm642, %v2301, -inf
    %2304 = vmax.xlane.f32.xlu0 %v2303
    %v2305 = vpop.xlane.xlu0 %2304
    %v2306 = vsel %vm642, %v2302, -inf
    %2307 = vmax.xlane.f32.xlu0 %v2306
    %v2308 = vpop.xlane.xlu0 %2307
    %v2309 = vsub.f32 %v2301, %v2305
    %v2310 = vsub.f32 %v2302, %v2308
    %v2311 = vmul.f32 %v2309, 1.442695
    %v2312 = vpow.pop %v2311
    %v2313 = vmul.f32 %v2310, 1.442695
    %v2314 = vpow.pop %v2313
    %v2315 = vsel %vm642, %v2312, 0.0
    %2316 = vadd.xlane.f32.xlu0 %v2315
    %v2317 = vpop.xlane.xlu0 %2316
    %v2318 = vsel %vm642, %v2314, 0.0
    %2319 = vadd.xlane.f32.xlu0 %v2318
    %v2320 = vpop.xlane.xlu0 %2319
    %v2321 = vrcp.pop %v2317
    %v2322 = vrcp.pop %v2320
    %v2323 = vmul.f32 %v2312, %v2321
    %v2324 = vmul.f32 %v2314, %v2322
    %v2326 = vsel %vm642, %v2323, 0
    %v2329 = vsel %vm642, %v2324, 0
    %2331 = vmatprep.subr.mxu0 0.0
    %2332 = vmatpush1.msra.mxu0 %v2204
    %2333 = vmatprep.subr.mxu0 0.0
    %2334 = vmatpush1.msra.mxu0 %v2209
    %2335 = vmatprep.subr.mxu0 0.0
    %2336 = vmatpush1.msra.mxu0 0.0
    %2337 = vmatprep.subr.mxu0 0.0
    %2338 = vmatpush1.msra.mxu0 0.0
    %2339 = vmatprep.subr.mxu0 0.0
    %2340 = vmatpush1.msra.mxu0 0.0
    %2341 = vmatprep.subr.mxu0 0.0
    %2342 = vmatpush1.msra.mxu0 0.0
    %2343 = vmatprep.subr.mxu0 0.0
    %2344 = vmatpush1.msra.mxu0 0.0
    %2345 = vmatprep.subr.mxu0 0.0
    %2346 = vmatpush1.msra.mxu0 0.0
    %2347 = vmatprep.subr.mxu0 0.0
    %2348 = vmatpush1.msra.mxu0 0.0
    %2349 = vmatprep.subr.mxu0 0.0
    %2350 = vmatpush1.msra.mxu0 0.0
    %2351 = vmatprep.subr.mxu0 0.0
    %2352 = vmatpush1.msra.mxu0 0.0
    %2353 = vmatprep.subr.mxu0 0.0
    %2354 = vmatpush1.msra.mxu0 0.0
    %2355 = vmatprep.subr.mxu0 0.0
    %2356 = vmatpush1.msra.mxu0 0.0
    %2357 = vmatprep.subr.mxu0 0.0
    %2358 = vmatpush1.msra.mxu0 0.0
    %2359 = vmatprep.subr.mxu0 0.0
    %2360 = vmatpush1.msra.mxu0 0.0
    %2361 = vmatprep.subr.mxu0 0.0
    %2362 = vmatpush1.msra.mxu0 0.0
    %2363 = vmatprep.subr.mxu0 0.0
    %2364 = vmatpush1.msra.mxu0 0.0
    %2365 = vmatprep.subr.mxu0 0.0
    %2366 = vmatpush1.msra.mxu0 0.0
    %2367 = vmatprep.subr.mxu0 0.0
    %2368 = vmatpush1.msra.mxu0 0.0
    %2369 = vmatprep.subr.mxu0 0.0
    %2370 = vmatpush1.msra.mxu0 0.0
    %2371 = vmatprep.subr.mxu0 0.0
    %2372 = vmatpush1.msra.mxu0 0.0
    %2373 = vmatprep.subr.mxu0 0.0
    %2374 = vmatpush1.msra.mxu0 0.0
    %2375 = vmatprep.subr.mxu0 0.0
    %2376 = vmatpush1.msra.mxu0 0.0
    %2377 = vmatprep.subr.mxu0 0.0
    %2378 = vmatpush1.msra.mxu0 0.0
    %2379 = vmatprep.subr.mxu0 0.0
    %2380 = vmatpush1.msra.mxu0 0.0
    %2381 = vmatprep.subr.mxu0 0.0
    %2382 = vmatpush1.msra.mxu0 0.0
    %2383 = vmatprep.subr.mxu0 0.0
    %2384 = vmatpush1.msra.mxu0 0.0
    %2385 = vmatprep.subr.mxu0 0.0
    %2386 = vmatpush1.msra.mxu0 0.0
    %2387 = vmatprep.subr.mxu0 0.0
    %2388 = vmatpush1.msra.mxu0 0.0
    %2389 = vmatprep.subr.mxu0 0.0
    %2390 = vmatpush1.msra.mxu0 0.0
    %2391 = vmatprep.subr.mxu0 0.0
    %2392 = vmatpush1.msra.mxu0 0.0
    %2393 = vmatprep.subr.mxu0 0.0
    %2394 = vmatpush1.msra.mxu0 0.0
    %2395 = vmatprep.mubr.f32.mxu0 0.0
    %2396 = vmatmul.mubr.f32.gmra.mrb[0].mxu0 %v2326
    %v2397 = vpop.f32.mrb[0].mxu0
    %v2398 = vadd.f32 0.0, %v2397
    %v2399 = vpop.f32.mrb[0].mxu0
    %2400 = vmatprep.mubr.f32.mxu0 0.0
    %2401 = vmatmul.mubr.f32.gmra.mrb[0].mxu0 %v2329
    %v2402 = vpop.f32.mrb[0].mxu0
    %v2403 = vadd.f32 0.0, %v2402
    %v2404 = vpop.f32.mrb[0].mxu0
    %2405 = vdwg.mxu0
    %2406 = vrot.lane.b32.xlu0 %v2054, 120
    %v2407 = vpop.permute.xlu0 %2406
    %2408 = vrot.lane.b32.xlu0 %v2059, 120
    %v2409 = vpop.permute.xlu0 %2408
    %2410 = vrot.lane.b32.xlu0 %v2129, 120
    %v2411 = vpop.permute.xlu0 %2410
    %2412 = vrot.lane.b32.xlu0 %v2134, 120
    %v2413 = vpop.permute.xlu0 %2412
    %v2414 = vsel %vm69, %v2407, 0
    %v2416 = vsel %vm69, %v2409, 0
    %v2418 = vsel %vm69, %v2411, 0
    %v2420 = vsel %vm69, %v2413, 0
    %2422 = vmatprep.subr.mxu0 0.0
    %2423 = vmatpush1.xpose.msra.mxu0 %v2418
    %2424 = vmatprep.subr.mxu0 0.0
    %2425 = vmatpush1.xpose.msra.mxu0 %v2420
    %2426 = vmatprep.subr.mxu0 0.0
    %2427 = vmatpush1.xpose.msra.mxu0 0.0
    %2428 = vmatprep.subr.mxu0 0.0
    %2429 = vmatpush1.xpose.msra.mxu0 0.0
    %2430 = vmatprep.subr.mxu0 0.0
    %2431 = vmatpush1.xpose.msra.mxu0 0.0
    %2432 = vmatprep.subr.mxu0 0.0
    %2433 = vmatpush1.xpose.msra.mxu0 0.0
    %2434 = vmatprep.subr.mxu0 0.0
    %2435 = vmatpush1.xpose.msra.mxu0 0.0
    %2436 = vmatprep.subr.mxu0 0.0
    %2437 = vmatpush1.xpose.msra.mxu0 0.0
    %2438 = vmatprep.subr.mxu0 0.0
    %2439 = vmatpush1.xpose.msra.mxu0 0.0
    %2440 = vmatprep.subr.mxu0 0.0
    %2441 = vmatpush1.xpose.msra.mxu0 0.0
    %2442 = vmatprep.subr.mxu0 0.0
    %2443 = vmatpush1.xpose.msra.mxu0 0.0
    %2444 = vmatprep.subr.mxu0 0.0
    %2445 = vmatpush1.xpose.msra.mxu0 0.0
    %2446 = vmatprep.subr.mxu0 0.0
    %2447 = vmatpush1.xpose.msra.mxu0 0.0
    %2448 = vmatprep.subr.mxu0 0.0
    %2449 = vmatpush1.xpose.msra.mxu0 0.0
    %2450 = vmatprep.subr.mxu0 0.0
    %2451 = vmatpush1.xpose.msra.mxu0 0.0
    %2452 = vmatprep.subr.mxu0 0.0
    %2453 = vmatpush1.xpose.msra.mxu0 0.0
    %2454 = vmatprep.subr.mxu0 0.0
    %2455 = vmatpush1.xpose.msra.mxu0 0.0
    %2456 = vmatprep.subr.mxu0 0.0
    %2457 = vmatpush1.xpose.msra.mxu0 0.0
    %2458 = vmatprep.subr.mxu0 0.0
    %2459 = vmatpush1.xpose.msra.mxu0 0.0
    %2460 = vmatprep.subr.mxu0 0.0
    %2461 = vmatpush1.xpose.msra.mxu0 0.0
    %2462 = vmatprep.subr.mxu0 0.0
    %2463 = vmatpush1.xpose.msra.mxu0 0.0
    %2464 = vmatprep.subr.mxu0 0.0
    %2465 = vmatpush1.xpose.msra.mxu0 0.0
    %2466 = vmatprep.subr.mxu0 0.0
    %2467 = vmatpush1.xpose.msra.mxu0 0.0
    %2468 = vmatprep.subr.mxu0 0.0
    %2469 = vmatpush1.xpose.msra.mxu0 0.0
    %2470 = vmatprep.subr.mxu0 0.0
    %2471 = vmatpush1.xpose.msra.mxu0 0.0
    %2472 = vmatprep.subr.mxu0 0.0
    %2473 = vmatpush1.xpose.msra.mxu0 0.0
    %2474 = vmatprep.subr.mxu0 0.0
    %2475 = vmatpush1.xpose.msra.mxu0 0.0
    %2476 = vmatprep.subr.mxu0 0.0
    %2477 = vmatpush1.xpose.msra.mxu0 0.0
    %2478 = vmatprep.subr.mxu0 0.0
    %2479 = vmatpush1.xpose.msra.mxu0 0.0
    %2480 = vmatprep.subr.mxu0 0.0
    %2481 = vmatpush1.xpose.msra.mxu0 0.0
    %2482 = vmatprep.subr.mxu0 0.0
    %2483 = vmatpush1.xpose.msra.mxu0 0.0
    %2484 = vmatprep.subr.mxu0 0.0
    %2485 = vmatpush1.xpose.msra.mxu0 0.0
    %2486 = vmatprep.mubr.f32.mxu0 0.0
    %2487 = vmatmul.mubr.f32.gmra.mrb[0].mxu0 %v2414
    %v2488 = vpop.f32.mrb[0].mxu0
    %v2489 = vadd.f32 0.0, %v2488
    %v2490 = vpop.f32.mrb[0].mxu0
    %2491 = vmatprep.mubr.f32.mxu0 0.0
    %2492 = vmatmul.mubr.f32.gmra.mrb[0].mxu0 %v2416
    %v2493 = vpop.f32.mrb[0].mxu0
    %v2494 = vadd.f32 0.0, %v2493
    %v2495 = vpop.f32.mrb[0].mxu0
    %2496 = vdwg.mxu0
    %v2497 = vmul.f32 %v2489, 0.17677669
    %v2498 = vmul.f32 %v2494, 0.17677669
    %v2499 = vadd.f32 %v2497, %v241
    %v2500 = vadd.f32 %v2498, %v242
    %v2501 = vsel %vm642, %v2499, -inf
    %2502 = vmax.xlane.f32.xlu0 %v2501
    %v2503 = vpop.xlane.xlu0 %2502
    %v2504 = vsel %vm642, %v2500, -inf
    %2505 = vmax.xlane.f32.xlu0 %v2504
    %v2506 = vpop.xlane.xlu0 %2505
    %v2507 = vsub.f32 %v2499, %v2503
    %v2508 = vsub.f32 %v2500, %v2506
    %v2509 = vmul.f32 %v2507, 1.442695
    %v2510 = vpow.pop %v2509
    %v2511 = vmul.f32 %v2508, 1.442695
    %v2512 = vpow.pop %v2511
    %v2513 = vsel %vm642, %v2510, 0.0
    %2514 = vadd.xlane.f32.xlu0 %v2513
    %v2515 = vpop.xlane.xlu0 %2514
    %v2516 = vsel %vm642, %v2512, 0.0
    %2517 = vadd.xlane.f32.xlu0 %v2516
    %v2518 = vpop.xlane.xlu0 %2517
    %v2519 = vrcp.pop %v2515
    %v2520 = vrcp.pop %v2518
    %v2521 = vmul.f32 %v2510, %v2519
    %v2522 = vmul.f32 %v2512, %v2520
    %2525 = vrot.lane.b32.xlu0 %v2204, 120
    %v2526 = vpop.permute.xlu0 %2525
    %2527 = vrot.lane.b32.xlu0 %v2209, 120
    %v2528 = vpop.permute.xlu0 %2527
    %v2532 = vsel %vm642, %v2521, 0
    %v2535 = vsel %vm642, %v2522, 0
    %2537 = vmatprep.subr.mxu0 0.0
    %2538 = vmatpush1.msra.mxu0 %v2526
    %2539 = vmatprep.subr.mxu0 0.0
    %2540 = vmatpush1.msra.mxu0 %v2528
    %2541 = vmatprep.subr.mxu0 0.0
    %2542 = vmatpush1.msra.mxu0 0.0
    %2543 = vmatprep.subr.mxu0 0.0
    %2544 = vmatpush1.msra.mxu0 0.0
    %2545 = vmatprep.subr.mxu0 0.0
    %2546 = vmatpush1.msra.mxu0 0.0
    %2547 = vmatprep.subr.mxu0 0.0
    %2548 = vmatpush1.msra.mxu0 0.0
    %2549 = vmatprep.subr.mxu0 0.0
    %2550 = vmatpush1.msra.mxu0 0.0
    %2551 = vmatprep.subr.mxu0 0.0
    %2552 = vmatpush1.msra.mxu0 0.0
    %2553 = vmatprep.subr.mxu0 0.0
    %2554 = vmatpush1.msra.mxu0 0.0
    %2555 = vmatprep.subr.mxu0 0.0
    %2556 = vmatpush1.msra.mxu0 0.0
    %2557 = vmatprep.subr.mxu0 0.0
    %2558 = vmatpush1.msra.mxu0 0.0
    %2559 = vmatprep.subr.mxu0 0.0
    %2560 = vmatpush1.msra.mxu0 0.0
    %2561 = vmatprep.subr.mxu0 0.0
    %2562 = vmatpush1.msra.mxu0 0.0
    %2563 = vmatprep.subr.mxu0 0.0
    %2564 = vmatpush1.msra.mxu0 0.0
    %2565 = vmatprep.subr.mxu0 0.0
    %2566 = vmatpush1.msra.mxu0 0.0
    %2567 = vmatprep.subr.mxu0 0.0
    %2568 = vmatpush1.msra.mxu0 0.0
    %2569 = vmatprep.subr.mxu0 0.0
    %2570 = vmatpush1.msra.mxu0 0.0
    %2571 = vmatprep.subr.mxu0 0.0
    %2572 = vmatpush1.msra.mxu0 0.0
    %2573 = vmatprep.subr.mxu0 0.0
    %2574 = vmatpush1.msra.mxu0 0.0
    %2575 = vmatprep.subr.mxu0 0.0
    %2576 = vmatpush1.msra.mxu0 0.0
    %2577 = vmatprep.subr.mxu0 0.0
    %2578 = vmatpush1.msra.mxu0 0.0
    %2579 = vmatprep.subr.mxu0 0.0
    %2580 = vmatpush1.msra.mxu0 0.0
    %2581 = vmatprep.subr.mxu0 0.0
    %2582 = vmatpush1.msra.mxu0 0.0
    %2583 = vmatprep.subr.mxu0 0.0
    %2584 = vmatpush1.msra.mxu0 0.0
    %2585 = vmatprep.subr.mxu0 0.0
    %2586 = vmatpush1.msra.mxu0 0.0
    %2587 = vmatprep.subr.mxu0 0.0
    %2588 = vmatpush1.msra.mxu0 0.0
    %2589 = vmatprep.subr.mxu0 0.0
    %2590 = vmatpush1.msra.mxu0 0.0
    %2591 = vmatprep.subr.mxu0 0.0
    %2592 = vmatpush1.msra.mxu0 0.0
    %2593 = vmatprep.subr.mxu0 0.0
    %2594 = vmatpush1.msra.mxu0 0.0
    %2595 = vmatprep.subr.mxu0 0.0
    %2596 = vmatpush1.msra.mxu0 0.0
    %2597 = vmatprep.subr.mxu0 0.0
    %2598 = vmatpush1.msra.mxu0 0.0
    %2599 = vmatprep.subr.mxu0 0.0
    %2600 = vmatpush1.msra.mxu0 0.0
    %2601 = vmatprep.mubr.f32.mxu0 0.0
    %2602 = vmatmul.mubr.f32.gmra.mrb[0].mxu0 %v2532
    %v2603 = vpop.f32.mrb[0].mxu0
    %v2604 = vadd.f32 0.0, %v2603
    %v2605 = vpop.f32.mrb[0].mxu0
    %2606 = vmatprep.mubr.f32.mxu0 0.0
    %2607 = vmatmul.mubr.f32.gmra.mrb[0].mxu0 %v2535
    %v2608 = vpop.f32.mrb[0].mxu0
    %v2609 = vadd.f32 0.0, %v2608
    %v2610 = vpop.f32.mrb[0].mxu0
    %2611 = vdwg.mxu0
    %v2613 = vsel %vm69, %v2604, 0
    %v2616 = vsel %vm69, %v2609, 0
    %2618 = vmatprep.subr.mxu0 0.0
    %2619 = vmatpush1.msra.mxu0 %v1916
    %2620 = vmatprep.subr.mxu0 0.0
    %2621 = vmatpush1.msra.mxu0 0.0
    %2622 = vmatprep.subr.mxu0 0.0
    %2623 = vmatpush1.msra.mxu0 0.0
    %2624 = vmatprep.subr.mxu0 0.0
    %2625 = vmatpush1.msra.mxu0 0.0
    %2626 = vmatprep.subr.mxu0 0.0
    %2627 = vmatpush1.msra.mxu0 0.0
    %2628 = vmatprep.subr.mxu0 0.0
    %2629 = vmatpush1.msra.mxu0 0.0
    %2630 = vmatprep.subr.mxu0 0.0
    %2631 = vmatpush1.msra.mxu0 0.0
    %2632 = vmatprep.subr.mxu0 0.0
    %2633 = vmatpush1.msra.mxu0 0.0
    %2634 = vmatprep.subr.mxu0 0.0
    %2635 = vmatpush1.msra.mxu0 0.0
    %2636 = vmatprep.subr.mxu0 0.0
    %2637 = vmatpush1.msra.mxu0 0.0
    %2638 = vmatprep.subr.mxu0 0.0
    %2639 = vmatpush1.msra.mxu0 0.0
    %2640 = vmatprep.subr.mxu0 0.0
    %2641 = vmatpush1.msra.mxu0 0.0
    %2642 = vmatprep.subr.mxu0 0.0
    %2643 = vmatpush1.msra.mxu0 0.0
    %2644 = vmatprep.subr.mxu0 0.0
    %2645 = vmatpush1.msra.mxu0 0.0
    %2646 = vmatprep.subr.mxu0 0.0
    %2647 = vmatpush1.msra.mxu0 0.0
    %2648 = vmatprep.subr.mxu0 0.0
    %2649 = vmatpush1.msra.mxu0 0.0
    %2650 = vmatprep.subr.mxu0 0.0
    %2651 = vmatpush1.msra.mxu0 0.0
    %2652 = vmatprep.subr.mxu0 0.0
    %2653 = vmatpush1.msra.mxu0 0.0
    %2654 = vmatprep.subr.mxu0 0.0
    %2655 = vmatpush1.msra.mxu0 0.0
    %2656 = vmatprep.subr.mxu0 0.0
    %2657 = vmatpush1.msra.mxu0 0.0
    %2658 = vmatprep.subr.mxu0 0.0
    %2659 = vmatpush1.msra.mxu0 0.0
    %2660 = vmatprep.subr.mxu0 0.0
    %2661 = vmatpush1.msra.mxu0 0.0
    %2662 = vmatprep.subr.mxu0 0.0
    %2663 = vmatpush1.msra.mxu0 0.0
    %2664 = vmatprep.subr.mxu0 0.0
    %2665 = vmatpush1.msra.mxu0 0.0
    %2666 = vmatprep.subr.mxu0 0.0
    %2667 = vmatpush1.msra.mxu0 0.0
    %2668 = vmatprep.subr.mxu0 0.0
    %2669 = vmatpush1.msra.mxu0 0.0
    %2670 = vmatprep.subr.mxu0 0.0
    %2671 = vmatpush1.msra.mxu0 0.0
    %2672 = vmatprep.subr.mxu0 0.0
    %2673 = vmatpush1.msra.mxu0 0.0
    %2674 = vmatprep.subr.mxu0 0.0
    %2675 = vmatpush1.msra.mxu0 0.0
    %2676 = vmatprep.subr.mxu0 0.0
    %2677 = vmatpush1.msra.mxu0 0.0
    %2678 = vmatprep.subr.mxu0 0.0
    %2679 = vmatpush1.msra.mxu0 0.0
    %2680 = vmatprep.subr.mxu0 0.0
    %2681 = vmatpush1.msra.mxu0 0.0
    %2682 = vmatprep.mubr.f32.mxu0 0.0
    %2683 = vmatmul.mubr.f32.gmra.mrb[0].mxu0 %v2613
    %v2684 = vpop.f32.mrb[0].mxu0
    %v2685 = vadd.f32 0.0, %v2684
    %v2686 = vpop.f32.mrb[0].mxu0
    %2687 = vmatprep.mubr.f32.mxu0 0.0
    %2688 = vmatmul.mubr.f32.gmra.mrb[0].mxu0 %v2616
    %v2689 = vpop.f32.mrb[0].mxu0
    %v2690 = vadd.f32 0.0, %v2689
    %v2691 = vpop.f32.mrb[0].mxu0
    %2692 = vdwg.mxu0
    %v2694 = vsel %vm69, %v2398, 0
    %v2697 = vsel %vm69, %v2403, 0
    %2699 = vmatprep.subr.mxu0 0.0
    %2700 = vmatpush1.msra.mxu0 %v1915
    %2701 = vmatprep.subr.mxu0 0.0
    %2702 = vmatpush1.msra.mxu0 0.0
    %2703 = vmatprep.subr.mxu0 0.0
    %2704 = vmatpush1.msra.mxu0 0.0
    %2705 = vmatprep.subr.mxu0 0.0
    %2706 = vmatpush1.msra.mxu0 0.0
    %2707 = vmatprep.subr.mxu0 0.0
    %2708 = vmatpush1.msra.mxu0 0.0
    %2709 = vmatprep.subr.mxu0 0.0
    %2710 = vmatpush1.msra.mxu0 0.0
    %2711 = vmatprep.subr.mxu0 0.0
    %2712 = vmatpush1.msra.mxu0 0.0
    %2713 = vmatprep.subr.mxu0 0.0
    %2714 = vmatpush1.msra.mxu0 0.0
    %2715 = vmatprep.subr.mxu0 0.0
    %2716 = vmatpush1.msra.mxu0 0.0
    %2717 = vmatprep.subr.mxu0 0.0
    %2718 = vmatpush1.msra.mxu0 0.0
    %2719 = vmatprep.subr.mxu0 0.0
    %2720 = vmatpush1.msra.mxu0 0.0
    %2721 = vmatprep.subr.mxu0 0.0
    %2722 = vmatpush1.msra.mxu0 0.0
    %2723 = vmatprep.subr.mxu0 0.0
    %2724 = vmatpush1.msra.mxu0 0.0
    %2725 = vmatprep.subr.mxu0 0.0
    %2726 = vmatpush1.msra.mxu0 0.0
    %2727 = vmatprep.subr.mxu0 0.0
    %2728 = vmatpush1.msra.mxu0 0.0
    %2729 = vmatprep.subr.mxu0 0.0
    %2730 = vmatpush1.msra.mxu0 0.0
    %2731 = vmatprep.subr.mxu0 0.0
    %2732 = vmatpush1.msra.mxu0 0.0
    %2733 = vmatprep.subr.mxu0 0.0
    %2734 = vmatpush1.msra.mxu0 0.0
    %2735 = vmatprep.subr.mxu0 0.0
    %2736 = vmatpush1.msra.mxu0 0.0
    %2737 = vmatprep.subr.mxu0 0.0
    %2738 = vmatpush1.msra.mxu0 0.0
    %2739 = vmatprep.subr.mxu0 0.0
    %2740 = vmatpush1.msra.mxu0 0.0
    %2741 = vmatprep.subr.mxu0 0.0
    %2742 = vmatpush1.msra.mxu0 0.0
    %2743 = vmatprep.subr.mxu0 0.0
    %2744 = vmatpush1.msra.mxu0 0.0
    %2745 = vmatprep.subr.mxu0 0.0
    %2746 = vmatpush1.msra.mxu0 0.0
    %2747 = vmatprep.subr.mxu0 0.0
    %2748 = vmatpush1.msra.mxu0 0.0
    %2749 = vmatprep.subr.mxu0 0.0
    %2750 = vmatpush1.msra.mxu0 0.0
    %2751 = vmatprep.subr.mxu0 0.0
    %2752 = vmatpush1.msra.mxu0 0.0
    %2753 = vmatprep.subr.mxu0 0.0
    %2754 = vmatpush1.msra.mxu0 0.0
    %2755 = vmatprep.subr.mxu0 0.0
    %2756 = vmatpush1.msra.mxu0 0.0
    %2757 = vmatprep.subr.mxu0 0.0
    %2758 = vmatpush1.msra.mxu0 0.0
    %2759 = vmatprep.subr.mxu0 0.0
    %2760 = vmatpush1.msra.mxu0 0.0
    %2761 = vmatprep.subr.mxu0 0.0
    %2762 = vmatpush1.msra.mxu0 0.0
    %2763 = vmatprep.mubr.f32.mxu0 0.0
    %2764 = vmatmul.mubr.f32.gmra.mrb[0].mxu0 %v2694
    %v2765 = vpop.f32.mrb[0].mxu0
    %v2766 = vadd.f32 %v2685, %v2765
    %v2767 = vpop.f32.mrb[0].mxu0
    %2768 = vmatprep.mubr.f32.mxu0 0.0
    %2769 = vmatmul.mubr.f32.gmra.mrb[0].mxu0 %v2697
    %v2770 = vpop.f32.mrb[0].mxu0
    %v2771 = vadd.f32 %v2690, %v2770
    %v2772 = vpop.f32.mrb[0].mxu0
    %2773 = vdwg.mxu0
    %2774 = vrot.lane.b32.xlu0 %v2054, 112
    %v2775 = vpop.permute.xlu0 %2774
    %2776 = vrot.lane.b32.xlu0 %v2059, 112
    %v2777 = vpop.permute.xlu0 %2776
    %2778 = vrot.lane.b32.xlu0 %v2129, 112
    %v2779 = vpop.permute.xlu0 %2778
    %2780 = vrot.lane.b32.xlu0 %v2134, 112
    %v2781 = vpop.permute.xlu0 %2780
    %v2782 = vsel %vm69, %v2775, 0
    %v2784 = vsel %vm69, %v2777, 0
    %v2786 = vsel %vm69, %v2779, 0
    %v2788 = vsel %vm69, %v2781, 0
    %2790 = vmatprep.subr.mxu0 0.0
    %2791 = vmatpush1.xpose.msra.mxu0 %v2786
    %2792 = vmatprep.subr.mxu0 0.0
    %2793 = vmatpush1.xpose.msra.mxu0 %v2788
    %2794 = vmatprep.subr.mxu0 0.0
    %2795 = vmatpush1.xpose.msra.mxu0 0.0
    %2796 = vmatprep.subr.mxu0 0.0
    %2797 = vmatpush1.xpose.msra.mxu0 0.0
    %2798 = vmatprep.subr.mxu0 0.0
    %2799 = vmatpush1.xpose.msra.mxu0 0.0
    %2800 = vmatprep.subr.mxu0 0.0
    %2801 = vmatpush1.xpose.msra.mxu0 0.0
    %2802 = vmatprep.subr.mxu0 0.0
    %2803 = vmatpush1.xpose.msra.mxu0 0.0
    %2804 = vmatprep.subr.mxu0 0.0
    %2805 = vmatpush1.xpose.msra.mxu0 0.0
    %2806 = vmatprep.subr.mxu0 0.0
    %2807 = vmatpush1.xpose.msra.mxu0 0.0
    %2808 = vmatprep.subr.mxu0 0.0
    %2809 = vmatpush1.xpose.msra.mxu0 0.0
    %2810 = vmatprep.subr.mxu0 0.0
    %2811 = vmatpush1.xpose.msra.mxu0 0.0
    %2812 = vmatprep.subr.mxu0 0.0
    %2813 = vmatpush1.xpose.msra.mxu0 0.0
    %2814 = vmatprep.subr.mxu0 0.0
    %2815 = vmatpush1.xpose.msra.mxu0 0.0
    %2816 = vmatprep.subr.mxu0 0.0
    %2817 = vmatpush1.xpose.msra.mxu0 0.0
    %2818 = vmatprep.subr.mxu0 0.0
    %2819 = vmatpush1.xpose.msra.mxu0 0.0
    %2820 = vmatprep.subr.mxu0 0.0
    %2821 = vmatpush1.xpose.msra.mxu0 0.0
    %2822 = vmatprep.subr.mxu0 0.0
    %2823 = vmatpush1.xpose.msra.mxu0 0.0
    %2824 = vmatprep.subr.mxu0 0.0
    %2825 = vmatpush1.xpose.msra.mxu0 0.0
    %2826 = vmatprep.subr.mxu0 0.0
    %2827 = vmatpush1.xpose.msra.mxu0 0.0
    %2828 = vmatprep.subr.mxu0 0.0
    %2829 = vmatpush1.xpose.msra.mxu0 0.0
    %2830 = vmatprep.subr.mxu0 0.0
    %2831 = vmatpush1.xpose.msra.mxu0 0.0
    %2832 = vmatprep.subr.mxu0 0.0
    %2833 = vmatpush1.xpose.msra.mxu0 0.0
    %2834 = vmatprep.subr.mxu0 0.0
    %2835 = vmatpush1.xpose.msra.mxu0 0.0
    %2836 = vmatprep.subr.mxu0 0.0
    %2837 = vmatpush1.xpose.msra.mxu0 0.0
    %2838 = vmatprep.subr.mxu0 0.0
    %2839 = vmatpush1.xpose.msra.mxu0 0.0
    %2840 = vmatprep.subr.mxu0 0.0
    %2841 = vmatpush1.xpose.msra.mxu0 0.0
    %2842 = vmatprep.subr.mxu0 0.0
    %2843 = vmatpush1.xpose.msra.mxu0 0.0
    %2844 = vmatprep.subr.mxu0 0.0
    %2845 = vmatpush1.xpose.msra.mxu0 0.0
    %2846 = vmatprep.subr.mxu0 0.0
    %2847 = vmatpush1.xpose.msra.mxu0 0.0
    %2848 = vmatprep.subr.mxu0 0.0
    %2849 = vmatpush1.xpose.msra.mxu0 0.0
    %2850 = vmatprep.subr.mxu0 0.0
    %2851 = vmatpush1.xpose.msra.mxu0 0.0
    %2852 = vmatprep.subr.mxu0 0.0
    %2853 = vmatpush1.xpose.msra.mxu0 0.0
    %2854 = vmatprep.mubr.f32.mxu0 0.0
    %2855 = vmatmul.mubr.f32.gmra.mrb[0].mxu0 %v2782
    %v2856 = vpop.f32.mrb[0].mxu0
    %v2857 = vadd.f32 0.0, %v2856
    %v2858 = vpop.f32.mrb[0].mxu0
    %2859 = vmatprep.mubr.f32.mxu0 0.0
    %2860 = vmatmul.mubr.f32.gmra.mrb[0].mxu0 %v2784
    %v2861 = vpop.f32.mrb[0].mxu0
    %v2862 = vadd.f32 0.0, %v2861
    %v2863 = vpop.f32.mrb[0].mxu0
    %2864 = vdwg.mxu0
    %v2865 = vmul.f32 %v2857, 0.17677669
    %v2866 = vmul.f32 %v2862, 0.17677669
    %v2867 = vadd.f32 %v2865, %v241
    %v2868 = vadd.f32 %v2866, %v242
    %v2869 = vsel %vm642, %v2867, -inf
    %2870 = vmax.xlane.f32.xlu0 %v2869
    %v2871 = vpop.xlane.xlu0 %2870
    %v2872 = vsel %vm642, %v2868, -inf
    %2873 = vmax.xlane.f32.xlu0 %v2872
    %v2874 = vpop.xlane.xlu0 %2873
    %v2875 = vsub.f32 %v2867, %v2871
    %v2876 = vsub.f32 %v2868, %v2874
    %v2877 = vmul.f32 %v2875, 1.442695
    %v2878 = vpow.pop %v2877
    %v2879 = vmul.f32 %v2876, 1.442695
    %v2880 = vpow.pop %v2879
    %v2881 = vsel %vm642, %v2878, 0.0
    %2882 = vadd.xlane.f32.xlu0 %v2881
    %v2883 = vpop.xlane.xlu0 %2882
    %v2884 = vsel %vm642, %v2880, 0.0
    %2885 = vadd.xlane.f32.xlu0 %v2884
    %v2886 = vpop.xlane.xlu0 %2885
    %v2887 = vrcp.pop %v2883
    %v2888 = vrcp.pop %v2886
    %v2889 = vmul.f32 %v2878, %v2887
    %v2890 = vmul.f32 %v2880, %v2888
    %2891 = vrot.lane.b32.xlu0 %v2204, 112
    %v2892 = vpop.permute.xlu0 %2891
    %2893 = vrot.lane.b32.xlu0 %v2209, 112
    %v2894 = vpop.permute.xlu0 %2893
    %v2898 = vsel %vm642, %v2889, 0
    %v2901 = vsel %vm642, %v2890, 0
    %2903 = vmatprep.subr.mxu0 0.0
    %2904 = vmatpush1.msra.mxu0 %v2892
    %2905 = vmatprep.subr.mxu0 0.0
    %2906 = vmatpush1.msra.mxu0 %v2894
    %2907 = vmatprep.subr.mxu0 0.0
    %2908 = vmatpush1.msra.mxu0 0.0
    %2909 = vmatprep.subr.mxu0 0.0
    %2910 = vmatpush1.msra.mxu0 0.0
    %2911 = vmatprep.subr.mxu0 0.0
    %2912 = vmatpush1.msra.mxu0 0.0
    %2913 = vmatprep.subr.mxu0 0.0
    %2914 = vmatpush1.msra.mxu0 0.0
    %2915 = vmatprep.subr.mxu0 0.0
    %2916 = vmatpush1.msra.mxu0 0.0
    %2917 = vmatprep.subr.mxu0 0.0
    %2918 = vmatpush1.msra.mxu0 0.0
    %2919 = vmatprep.subr.mxu0 0.0
    %2920 = vmatpush1.msra.mxu0 0.0
    %2921 = vmatprep.subr.mxu0 0.0
    %2922 = vmatpush1.msra.mxu0 0.0
    %2923 = vmatprep.subr.mxu0 0.0
    %2924 = vmatpush1.msra.mxu0 0.0
    %2925 = vmatprep.subr.mxu0 0.0
    %2926 = vmatpush1.msra.mxu0 0.0
    %2927 = vmatprep.subr.mxu0 0.0
    %2928 = vmatpush1.msra.mxu0 0.0
    %2929 = vmatprep.subr.mxu0 0.0
    %2930 = vmatpush1.msra.mxu0 0.0
    %2931 = vmatprep.subr.mxu0 0.0
    %2932 = vmatpush1.msra.mxu0 0.0
    %2933 = vmatprep.subr.mxu0 0.0
    %2934 = vmatpush1.msra.mxu0 0.0
    %2935 = vmatprep.subr.mxu0 0.0
    %2936 = vmatpush1.msra.mxu0 0.0
    %2937 = vmatprep.subr.mxu0 0.0
    %2938 = vmatpush1.msra.mxu0 0.0
    %2939 = vmatprep.subr.mxu0 0.0
    %2940 = vmatpush1.msra.mxu0 0.0
    %2941 = vmatprep.subr.mxu0 0.0
    %2942 = vmatpush1.msra.mxu0 0.0
    %2943 = vmatprep.subr.mxu0 0.0
    %2944 = vmatpush1.msra.mxu0 0.0
    %2945 = vmatprep.subr.mxu0 0.0
    %2946 = vmatpush1.msra.mxu0 0.0
    %2947 = vmatprep.subr.mxu0 0.0
    %2948 = vmatpush1.msra.mxu0 0.0
    %2949 = vmatprep.subr.mxu0 0.0
    %2950 = vmatpush1.msra.mxu0 0.0
    %2951 = vmatprep.subr.mxu0 0.0
    %2952 = vmatpush1.msra.mxu0 0.0
    %2953 = vmatprep.subr.mxu0 0.0
    %2954 = vmatpush1.msra.mxu0 0.0
    %2955 = vmatprep.subr.mxu0 0.0
    %2956 = vmatpush1.msra.mxu0 0.0
    %2957 = vmatprep.subr.mxu0 0.0
    %2958 = vmatpush1.msra.mxu0 0.0
    %2959 = vmatprep.subr.mxu0 0.0
    %2960 = vmatpush1.msra.mxu0 0.0
    %2961 = vmatprep.subr.mxu0 0.0
    %2962 = vmatpush1.msra.mxu0 0.0
    %2963 = vmatprep.subr.mxu0 0.0
    %2964 = vmatpush1.msra.mxu0 0.0
    %2965 = vmatprep.subr.mxu0 0.0
    %2966 = vmatpush1.msra.mxu0 0.0
    %2967 = vmatprep.mubr.f32.mxu0 0.0
    %2968 = vmatmul.mubr.f32.gmra.mrb[0].mxu0 %v2898
    %v2969 = vpop.f32.mrb[0].mxu0
    %v2970 = vadd.f32 0.0, %v2969
    %v2971 = vpop.f32.mrb[0].mxu0
    %2972 = vmatprep.mubr.f32.mxu0 0.0
    %2973 = vmatmul.mubr.f32.gmra.mrb[0].mxu0 %v2901
    %v2974 = vpop.f32.mrb[0].mxu0
    %v2975 = vadd.f32 0.0, %v2974
    %v2976 = vpop.f32.mrb[0].mxu0
    %2977 = vdwg.mxu0
    %v2979 = vsel %vm69, %v2970, 0
    %v2982 = vsel %vm69, %v2975, 0
    %2984 = vmatprep.subr.mxu0 0.0
    %2985 = vmatpush1.msra.mxu0 %v1917
    %2986 = vmatprep.subr.mxu0 0.0
    %2987 = vmatpush1.msra.mxu0 0.0
    %2988 = vmatprep.subr.mxu0 0.0
    %2989 = vmatpush1.msra.mxu0 0.0
    %2990 = vmatprep.subr.mxu0 0.0
    %2991 = vmatpush1.msra.mxu0 0.0
    %2992 = vmatprep.subr.mxu0 0.0
    %2993 = vmatpush1.msra.mxu0 0.0
    %2994 = vmatprep.subr.mxu0 0.0
    %2995 = vmatpush1.msra.mxu0 0.0
    %2996 = vmatprep.subr.mxu0 0.0
    %2997 = vmatpush1.msra.mxu0 0.0
    %2998 = vmatprep.subr.mxu0 0.0
    %2999 = vmatpush1.msra.mxu0 0.0
    %3000 = vmatprep.subr.mxu0 0.0
    %3001 = vmatpush1.msra.mxu0 0.0
    %3002 = vmatprep.subr.mxu0 0.0
    %3003 = vmatpush1.msra.mxu0 0.0
    %3004 = vmatprep.subr.mxu0 0.0
    %3005 = vmatpush1.msra.mxu0 0.0
    %3006 = vmatprep.subr.mxu0 0.0
    %3007 = vmatpush1.msra.mxu0 0.0
    %3008 = vmatprep.subr.mxu0 0.0
    %3009 = vmatpush1.msra.mxu0 0.0
    %3010 = vmatprep.subr.mxu0 0.0
    %3011 = vmatpush1.msra.mxu0 0.0
    %3012 = vmatprep.subr.mxu0 0.0
    %3013 = vmatpush1.msra.mxu0 0.0
    %3014 = vmatprep.subr.mxu0 0.0
    %3015 = vmatpush1.msra.mxu0 0.0
    %3016 = vmatprep.subr.mxu0 0.0
    %3017 = vmatpush1.msra.mxu0 0.0
    %3018 = vmatprep.subr.mxu0 0.0
    %3019 = vmatpush1.msra.mxu0 0.0
    %3020 = vmatprep.subr.mxu0 0.0
    %3021 = vmatpush1.msra.mxu0 0.0
    %3022 = vmatprep.subr.mxu0 0.0
    %3023 = vmatpush1.msra.mxu0 0.0
    %3024 = vmatprep.subr.mxu0 0.0
    %3025 = vmatpush1.msra.mxu0 0.0
    %3026 = vmatprep.subr.mxu0 0.0
    %3027 = vmatpush1.msra.mxu0 0.0
    %3028 = vmatprep.subr.mxu0 0.0
    %3029 = vmatpush1.msra.mxu0 0.0
    %3030 = vmatprep.subr.mxu0 0.0
    %3031 = vmatpush1.msra.mxu0 0.0
    %3032 = vmatprep.subr.mxu0 0.0
    %3033 = vmatpush1.msra.mxu0 0.0
    %3034 = vmatprep.subr.mxu0 0.0
    %3035 = vmatpush1.msra.mxu0 0.0
    %3036 = vmatprep.subr.mxu0 0.0
    %3037 = vmatpush1.msra.mxu0 0.0
    %3038 = vmatprep.subr.mxu0 0.0
    %3039 = vmatpush1.msra.mxu0 0.0
    %3040 = vmatprep.subr.mxu0 0.0
    %3041 = vmatpush1.msra.mxu0 0.0
    %3042 = vmatprep.subr.mxu0 0.0
    %3043 = vmatpush1.msra.mxu0 0.0
    %3044 = vmatprep.subr.mxu0 0.0
    %3045 = vmatpush1.msra.mxu0 0.0
    %3046 = vmatprep.subr.mxu0 0.0
    %3047 = vmatpush1.msra.mxu0 0.0
    %3048 = vmatprep.mubr.f32.mxu0 0.0
    %3049 = vmatmul.mubr.f32.gmra.mrb[0].mxu0 %v2979
    %v3050 = vpop.f32.mrb[0].mxu0
    %v3051 = vadd.f32 0.0, %v3050
    %v3052 = vpop.f32.mrb[0].mxu0
    %3053 = vmatprep.mubr.f32.mxu0 0.0
    %3054 = vmatmul.mubr.f32.gmra.mrb[0].mxu0 %v2982
    %v3055 = vpop.f32.mrb[0].mxu0
    %v3056 = vadd.f32 0.0, %v3055
    %v3057 = vpop.f32.mrb[0].mxu0
    %3058 = vdwg.mxu0
    %v3059 = vadd.f32 %v2766, %v3051
    %v3060 = vadd.f32 %v2771, %v3056
    %3061 = vrot.lane.b32.xlu0 %v2054, 104
    %v3062 = vpop.permute.xlu0 %3061
    %3063 = vrot.lane.b32.xlu0 %v2059, 104
    %v3064 = vpop.permute.xlu0 %3063
    %3065 = vrot.lane.b32.xlu0 %v2129, 104
    %v3066 = vpop.permute.xlu0 %3065
    %3067 = vrot.lane.b32.xlu0 %v2134, 104
    %v3068 = vpop.permute.xlu0 %3067
    %v3069 = vsel %vm69, %v3062, 0
    %v3071 = vsel %vm69, %v3064, 0
    %v3073 = vsel %vm69, %v3066, 0
    %v3075 = vsel %vm69, %v3068, 0
    %3077 = vmatprep.subr.mxu0 0.0
    %3078 = vmatpush1.xpose.msra.mxu0 %v3073
    %3079 = vmatprep.subr.mxu0 0.0
    %3080 = vmatpush1.xpose.msra.mxu0 %v3075
    %3081 = vmatprep.subr.mxu0 0.0
    %3082 = vmatpush1.xpose.msra.mxu0 0.0
    %3083 = vmatprep.subr.mxu0 0.0
    %3084 = vmatpush1.xpose.msra.mxu0 0.0
    %3085 = vmatprep.subr.mxu0 0.0
    %3086 = vmatpush1.xpose.msra.mxu0 0.0
    %3087 = vmatprep.subr.mxu0 0.0
    %3088 = vmatpush1.xpose.msra.mxu0 0.0
    %3089 = vmatprep.subr.mxu0 0.0
    %3090 = vmatpush1.xpose.msra.mxu0 0.0
    %3091 = vmatprep.subr.mxu0 0.0
    %3092 = vmatpush1.xpose.msra.mxu0 0.0
    %3093 = vmatprep.subr.mxu0 0.0
    %3094 = vmatpush1.xpose.msra.mxu0 0.0
    %3095 = vmatprep.subr.mxu0 0.0
    %3096 = vmatpush1.xpose.msra.mxu0 0.0
    %3097 = vmatprep.subr.mxu0 0.0
    %3098 = vmatpush1.xpose.msra.mxu0 0.0
    %3099 = vmatprep.subr.mxu0 0.0
    %3100 = vmatpush1.xpose.msra.mxu0 0.0
    %3101 = vmatprep.subr.mxu0 0.0
    %3102 = vmatpush1.xpose.msra.mxu0 0.0
    %3103 = vmatprep.subr.mxu0 0.0
    %3104 = vmatpush1.xpose.msra.mxu0 0.0
    %3105 = vmatprep.subr.mxu0 0.0
    %3106 = vmatpush1.xpose.msra.mxu0 0.0
    %3107 = vmatprep.subr.mxu0 0.0
    %3108 = vmatpush1.xpose.msra.mxu0 0.0
    %3109 = vmatprep.subr.mxu0 0.0
    %3110 = vmatpush1.xpose.msra.mxu0 0.0
    %3111 = vmatprep.subr.mxu0 0.0
    %3112 = vmatpush1.xpose.msra.mxu0 0.0
    %3113 = vmatprep.subr.mxu0 0.0
    %3114 = vmatpush1.xpose.msra.mxu0 0.0
    %3115 = vmatprep.subr.mxu0 0.0
    %3116 = vmatpush1.xpose.msra.mxu0 0.0
    %3117 = vmatprep.subr.mxu0 0.0
    %3118 = vmatpush1.xpose.msra.mxu0 0.0
    %3119 = vmatprep.subr.mxu0 0.0
    %3120 = vmatpush1.xpose.msra.mxu0 0.0
    %3121 = vmatprep.subr.mxu0 0.0
    %3122 = vmatpush1.xpose.msra.mxu0 0.0
    %3123 = vmatprep.subr.mxu0 0.0
    %3124 = vmatpush1.xpose.msra.mxu0 0.0
    %3125 = vmatprep.subr.mxu0 0.0
    %3126 = vmatpush1.xpose.msra.mxu0 0.0
    %3127 = vmatprep.subr.mxu0 0.0
    %3128 = vmatpush1.xpose.msra.mxu0 0.0
    %3129 = vmatprep.subr.mxu0 0.0
    %3130 = vmatpush1.xpose.msra.mxu0 0.0
    %3131 = vmatprep.subr.mxu0 0.0
    %3132 = vmatpush1.xpose.msra.mxu0 0.0
    %3133 = vmatprep.subr.mxu0 0.0
    %3134 = vmatpush1.xpose.msra.mxu0 0.0
    %3135 = vmatprep.subr.mxu0 0.0
    %3136 = vmatpush1.xpose.msra.mxu0 0.0
    %3137 = vmatprep.subr.mxu0 0.0
    %3138 = vmatpush1.xpose.msra.mxu0 0.0
    %3139 = vmatprep.subr.mxu0 0.0
    %3140 = vmatpush1.xpose.msra.mxu0 0.0
    %3141 = vmatprep.mubr.f32.mxu0 0.0
    %3142 = vmatmul.mubr.f32.gmra.mrb[0].mxu0 %v3069
    %v3143 = vpop.f32.mrb[0].mxu0
    %v3144 = vadd.f32 0.0, %v3143
    %v3145 = vpop.f32.mrb[0].mxu0
    %3146 = vmatprep.mubr.f32.mxu0 0.0
    %3147 = vmatmul.mubr.f32.gmra.mrb[0].mxu0 %v3071
    %v3148 = vpop.f32.mrb[0].mxu0
    %v3149 = vadd.f32 0.0, %v3148
    %v3150 = vpop.f32.mrb[0].mxu0
    %3151 = vdwg.mxu0
    %v3152 = vmul.f32 %v3144, 0.17677669
    %v3153 = vmul.f32 %v3149, 0.17677669
    %v3154 = vadd.f32 %v3152, %v241
    %v3155 = vadd.f32 %v3153, %v242
    %v3156 = vsel %vm642, %v3154, -inf
    %3157 = vmax.xlane.f32.xlu0 %v3156
    %v3158 = vpop.xlane.xlu0 %3157
    %v3159 = vsel %vm642, %v3155, -inf
    %3160 = vmax.xlane.f32.xlu0 %v3159
    %v3161 = vpop.xlane.xlu0 %3160
    %v3162 = vsub.f32 %v3154, %v3158
    %v3163 = vsub.f32 %v3155, %v3161
    %v3164 = vmul.f32 %v3162, 1.442695
    %v3165 = vpow.pop %v3164
    %v3166 = vmul.f32 %v3163, 1.442695
    %v3167 = vpow.pop %v3166
    %v3168 = vsel %vm642, %v3165, 0.0
    %3169 = vadd.xlane.f32.xlu0 %v3168
    %v3170 = vpop.xlane.xlu0 %3169
    %v3171 = vsel %vm642, %v3167, 0.0
    %3172 = vadd.xlane.f32.xlu0 %v3171
    %v3173 = vpop.xlane.xlu0 %3172
    %v3174 = vrcp.pop %v3170
    %v3175 = vrcp.pop %v3173
    %v3176 = vmul.f32 %v3165, %v3174
    %v3177 = vmul.f32 %v3167, %v3175
    %3178 = vrot.lane.b32.xlu0 %v2204, 104
    %v3179 = vpop.permute.xlu0 %3178
    %3180 = vrot.lane.b32.xlu0 %v2209, 104
    %v3181 = vpop.permute.xlu0 %3180
    %v3185 = vsel %vm642, %v3176, 0
    %v3188 = vsel %vm642, %v3177, 0
    %3190 = vmatprep.subr.mxu0 0.0
    %3191 = vmatpush1.msra.mxu0 %v3179
    %3192 = vmatprep.subr.mxu0 0.0
    %3193 = vmatpush1.msra.mxu0 %v3181
    %3194 = vmatprep.subr.mxu0 0.0
    %3195 = vmatpush1.msra.mxu0 0.0
    %3196 = vmatprep.subr.mxu0 0.0
    %3197 = vmatpush1.msra.mxu0 0.0
    %3198 = vmatprep.subr.mxu0 0.0
    %3199 = vmatpush1.msra.mxu0 0.0
    %3200 = vmatprep.subr.mxu0 0.0
    %3201 = vmatpush1.msra.mxu0 0.0
    %3202 = vmatprep.subr.mxu0 0.0
    %3203 = vmatpush1.msra.mxu0 0.0
    %3204 = vmatprep.subr.mxu0 0.0
    %3205 = vmatpush1.msra.mxu0 0.0
    %3206 = vmatprep.subr.mxu0 0.0
    %3207 = vmatpush1.msra.mxu0 0.0
    %3208 = vmatprep.subr.mxu0 0.0
    %3209 = vmatpush1.msra.mxu0 0.0
    %3210 = vmatprep.subr.mxu0 0.0
    %3211 = vmatpush1.msra.mxu0 0.0
    %3212 = vmatprep.subr.mxu0 0.0
    %3213 = vmatpush1.msra.mxu0 0.0
    %3214 = vmatprep.subr.mxu0 0.0
    %3215 = vmatpush1.msra.mxu0 0.0
    %3216 = vmatprep.subr.mxu0 0.0
    %3217 = vmatpush1.msra.mxu0 0.0
    %3218 = vmatprep.subr.mxu0 0.0
    %3219 = vmatpush1.msra.mxu0 0.0
    %3220 = vmatprep.subr.mxu0 0.0
    %3221 = vmatpush1.msra.mxu0 0.0
    %3222 = vmatprep.subr.mxu0 0.0
    %3223 = vmatpush1.msra.mxu0 0.0
    %3224 = vmatprep.subr.mxu0 0.0
    %3225 = vmatpush1.msra.mxu0 0.0
    %3226 = vmatprep.subr.mxu0 0.0
    %3227 = vmatpush1.msra.mxu0 0.0
    %3228 = vmatprep.subr.mxu0 0.0
    %3229 = vmatpush1.msra.mxu0 0.0
    %3230 = vmatprep.subr.mxu0 0.0
    %3231 = vmatpush1.msra.mxu0 0.0
    %3232 = vmatprep.subr.mxu0 0.0
    %3233 = vmatpush1.msra.mxu0 0.0
    %3234 = vmatprep.subr.mxu0 0.0
    %3235 = vmatpush1.msra.mxu0 0.0
    %3236 = vmatprep.subr.mxu0 0.0
    %3237 = vmatpush1.msra.mxu0 0.0
    %3238 = vmatprep.subr.mxu0 0.0
    %3239 = vmatpush1.msra.mxu0 0.0
    %3240 = vmatprep.subr.mxu0 0.0
    %3241 = vmatpush1.msra.mxu0 0.0
    %3242 = vmatprep.subr.mxu0 0.0
    %3243 = vmatpush1.msra.mxu0 0.0
    %3244 = vmatprep.subr.mxu0 0.0
    %3245 = vmatpush1.msra.mxu0 0.0
    %3246 = vmatprep.subr.mxu0 0.0
    %3247 = vmatpush1.msra.mxu0 0.0
    %3248 = vmatprep.subr.mxu0 0.0
    %3249 = vmatpush1.msra.mxu0 0.0
    %3250 = vmatprep.subr.mxu0 0.0
    %3251 = vmatpush1.msra.mxu0 0.0
    %3252 = vmatprep.subr.mxu0 0.0
    %3253 = vmatpush1.msra.mxu0 0.0
    %3254 = vmatprep.mubr.f32.mxu0 0.0
    %3255 = vmatmul.mubr.f32.gmra.mrb[0].mxu0 %v3185
    %v3256 = vpop.f32.mrb[0].mxu0
    %v3257 = vadd.f32 0.0, %v3256
    %v3258 = vpop.f32.mrb[0].mxu0
    %3259 = vmatprep.mubr.f32.mxu0 0.0
    %3260 = vmatmul.mubr.f32.gmra.mrb[0].mxu0 %v3188
    %v3261 = vpop.f32.mrb[0].mxu0
    %v3262 = vadd.f32 0.0, %v3261
    %v3263 = vpop.f32.mrb[0].mxu0
    %3264 = vdwg.mxu0
    %v3266 = vsel %vm69, %v3257, 0
    %v3269 = vsel %vm69, %v3262, 0
    %3271 = vmatprep.subr.mxu0 0.0
    %3272 = vmatpush1.msra.mxu0 %v1918
    %3273 = vmatprep.subr.mxu0 0.0
    %3274 = vmatpush1.msra.mxu0 0.0
    %3275 = vmatprep.subr.mxu0 0.0
    %3276 = vmatpush1.msra.mxu0 0.0
    %3277 = vmatprep.subr.mxu0 0.0
    %3278 = vmatpush1.msra.mxu0 0.0
    %3279 = vmatprep.subr.mxu0 0.0
    %3280 = vmatpush1.msra.mxu0 0.0
    %3281 = vmatprep.subr.mxu0 0.0
    %3282 = vmatpush1.msra.mxu0 0.0
    %3283 = vmatprep.subr.mxu0 0.0
    %3284 = vmatpush1.msra.mxu0 0.0
    %3285 = vmatprep.subr.mxu0 0.0
    %3286 = vmatpush1.msra.mxu0 0.0
    %3287 = vmatprep.subr.mxu0 0.0
    %3288 = vmatpush1.msra.mxu0 0.0
    %3289 = vmatprep.subr.mxu0 0.0
    %3290 = vmatpush1.msra.mxu0 0.0
    %3291 = vmatprep.subr.mxu0 0.0
    %3292 = vmatpush1.msra.mxu0 0.0
    %3293 = vmatprep.subr.mxu0 0.0
    %3294 = vmatpush1.msra.mxu0 0.0
    %3295 = vmatprep.subr.mxu0 0.0
    %3296 = vmatpush1.msra.mxu0 0.0
    %3297 = vmatprep.subr.mxu0 0.0
    %3298 = vmatpush1.msra.mxu0 0.0
    %3299 = vmatprep.subr.mxu0 0.0
    %3300 = vmatpush1.msra.mxu0 0.0
    %3301 = vmatprep.subr.mxu0 0.0
    %3302 = vmatpush1.msra.mxu0 0.0
    %3303 = vmatprep.subr.mxu0 0.0
    %3304 = vmatpush1.msra.mxu0 0.0
    %3305 = vmatprep.subr.mxu0 0.0
    %3306 = vmatpush1.msra.mxu0 0.0
    %3307 = vmatprep.subr.mxu0 0.0
    %3308 = vmatpush1.msra.mxu0 0.0
    %3309 = vmatprep.subr.mxu0 0.0
    %3310 = vmatpush1.msra.mxu0 0.0
    %3311 = vmatprep.subr.mxu0 0.0
    %3312 = vmatpush1.msra.mxu0 0.0
    %3313 = vmatprep.subr.mxu0 0.0
    %3314 = vmatpush1.msra.mxu0 0.0
    %3315 = vmatprep.subr.mxu0 0.0
    %3316 = vmatpush1.msra.mxu0 0.0
    %3317 = vmatprep.subr.mxu0 0.0
    %3318 = vmatpush1.msra.mxu0 0.0
    %3319 = vmatprep.subr.mxu0 0.0
    %3320 = vmatpush1.msra.mxu0 0.0
    %3321 = vmatprep.subr.mxu0 0.0
    %3322 = vmatpush1.msra.mxu0 0.0
    %3323 = vmatprep.subr.mxu0 0.0
    %3324 = vmatpush1.msra.mxu0 0.0
    %3325 = vmatprep.subr.mxu0 0.0
    %3326 = vmatpush1.msra.mxu0 0.0
    %3327 = vmatprep.subr.mxu0 0.0
    %3328 = vmatpush1.msra.mxu0 0.0
    %3329 = vmatprep.subr.mxu0 0.0
    %3330 = vmatpush1.msra.mxu0 0.0
    %3331 = vmatprep.subr.mxu0 0.0
    %3332 = vmatpush1.msra.mxu0 0.0
    %3333 = vmatprep.subr.mxu0 0.0
    %3334 = vmatpush1.msra.mxu0 0.0
    %3335 = vmatprep.mubr.f32.mxu0 0.0
    %3336 = vmatmul.mubr.f32.gmra.mrb[0].mxu0 %v3266
    %v3337 = vpop.f32.mrb[0].mxu0
    %v3338 = vadd.f32 0.0, %v3337
    %v3339 = vpop.f32.mrb[0].mxu0
    %3340 = vmatprep.mubr.f32.mxu0 0.0
    %3341 = vmatmul.mubr.f32.gmra.mrb[0].mxu0 %v3269
    %v3342 = vpop.f32.mrb[0].mxu0
    %v3343 = vadd.f32 0.0, %v3342
    %v3344 = vpop.f32.mrb[0].mxu0
    %3345 = vdwg.mxu0
    %v3346 = vadd.f32 %v3059, %v3338
    %v3347 = vadd.f32 %v3060, %v3343
    %v3348 = vadd.f32 %v1900, %v3346
    %v3349 = vadd.f32 %v1901, %v3347
    %v3350 = vlaneseq
    %v3351 = vshrl.u32 %v3350, 7
    %v3352 = vsub.s32 2, %v3351
    %v3353 = vrot.slane %v1942, %v3352
    %v3354 = vadd.f32 %v3348, %v3353
    %v3355 = vadd.f32 %v3349, %v3353
    %v3356 = vsel %vm280, %v3354, 0.0
    %3357 = vadd.xlane.f32.xlu0 %v3356
    %v3358 = vpop.xlane.xlu0 %3357
    %v3359 = vsel %vm280, %v3355, 0.0
    %3360 = vadd.xlane.f32.xlu0 %v3359
    %v3361 = vpop.xlane.xlu0 %3360
    %v3362 = vmul.f32 %v3358, %v287
    %v3363 = vmul.f32 %v3361, %v287
    %v3364 = vsub.f32 %v3354, %v3362
    %v3365 = vsub.f32 %v3355, %v3363
    %v3366 = vmul.f32 %v3364, %v3364
    %v3367 = vmul.f32 %v3365, %v3365
    %v3368 = vsel %vm280, %v3366, 0.0
    %3369 = vadd.xlane.f32.xlu0 %v3368
    %v3370 = vpop.xlane.xlu0 %3369
    %v3371 = vsel %vm280, %v3367, 0.0
    %3372 = vadd.xlane.f32.xlu0 %v3371
    %v3373 = vpop.xlane.xlu0 %3372
    %v3374 = vmul.f32 %v3370, %v287
    %v3375 = vmul.f32 %v3373, %v287
    %v3376 = vadd.f32 %v3374, 1e-05
    %v3377 = vadd.f32 %v3375, 1e-05
    %v3378 = vrsqrt.pop %v3376
    %v3379 = vrsqrt.pop %v3377
    %v3380 = vmul.f32 %v3364, %v3378
    %v3381 = vmul.f32 %v3365, %v3379
    %v3382 = vlaneseq
    %v3383 = vshrl.u32 %v3382, 7
    %v3384 = vsub.s32 3, %v3383
    %v3385 = vrot.slane %v1942, %v3384
    %v3386 = vmul.f32 %v3380, %v3385
    %v3387 = vmul.f32 %v3381, %v3385
    %v3388 = vlaneseq
    %v3389 = vshrl.u32 %v3388, 7
    %v3390 = vsub.s32 4, %v3389
    %v3391 = vrot.slane %v1942, %v3390
    %v3392 = vadd.f32 %v3386, %v3391
    %v3393 = vadd.f32 %v3387, %v3391
    %v3394 = vlaneseq
    %v3395 = vshrl.u32 %v3394, 7
    %v3396 = vsub.s32 6, %v3395
    %v3397 = vrot.slane %v1942, %v3396
    %v3399 = vsel %vm280, %v3392, 0
    %v3402 = vsel %vm280, %v3393, 0
    %3404 = vmatprep.subr.mxu0 0.0
    %3405 = vmatpush1.msra.mxu0 %v1920
    %3406 = vmatprep.subr.mxu0 0.0
    %3407 = vmatpush1.msra.mxu0 %v1921
    %3408 = vmatprep.subr.mxu0 0.0
    %3409 = vmatpush1.msra.mxu0 %v1922
    %3410 = vmatprep.subr.mxu0 0.0
    %3411 = vmatpush1.msra.mxu0 %v1923
    %3412 = vmatprep.subr.mxu0 0.0
    %3413 = vmatpush1.msra.mxu0 0.0
    %3414 = vmatprep.subr.mxu0 0.0
    %3415 = vmatpush1.msra.mxu0 0.0
    %3416 = vmatprep.subr.mxu0 0.0
    %3417 = vmatpush1.msra.mxu0 0.0
    %3418 = vmatprep.subr.mxu0 0.0
    %3419 = vmatpush1.msra.mxu0 0.0
    %3420 = vmatprep.subr.mxu0 0.0
    %3421 = vmatpush1.msra.mxu0 0.0
    %3422 = vmatprep.subr.mxu0 0.0
    %3423 = vmatpush1.msra.mxu0 0.0
    %3424 = vmatprep.subr.mxu0 0.0
    %3425 = vmatpush1.msra.mxu0 0.0
    %3426 = vmatprep.subr.mxu0 0.0
    %3427 = vmatpush1.msra.mxu0 0.0
    %3428 = vmatprep.subr.mxu0 0.0
    %3429 = vmatpush1.msra.mxu0 0.0
    %3430 = vmatprep.subr.mxu0 0.0
    %3431 = vmatpush1.msra.mxu0 0.0
    %3432 = vmatprep.subr.mxu0 0.0
    %3433 = vmatpush1.msra.mxu0 0.0
    %3434 = vmatprep.subr.mxu0 0.0
    %3435 = vmatpush1.msra.mxu0 0.0
    %3436 = vmatprep.subr.mxu0 0.0
    %3437 = vmatpush1.msra.mxu0 0.0
    %3438 = vmatprep.subr.mxu0 0.0
    %3439 = vmatpush1.msra.mxu0 0.0
    %3440 = vmatprep.subr.mxu0 0.0
    %3441 = vmatpush1.msra.mxu0 0.0
    %3442 = vmatprep.subr.mxu0 0.0
    %3443 = vmatpush1.msra.mxu0 0.0
    %3444 = vmatprep.subr.mxu0 0.0
    %3445 = vmatpush1.msra.mxu0 0.0
    %3446 = vmatprep.subr.mxu0 0.0
    %3447 = vmatpush1.msra.mxu0 0.0
    %3448 = vmatprep.subr.mxu0 0.0
    %3449 = vmatpush1.msra.mxu0 0.0
    %3450 = vmatprep.subr.mxu0 0.0
    %3451 = vmatpush1.msra.mxu0 0.0
    %3452 = vmatprep.subr.mxu0 0.0
    %3453 = vmatpush1.msra.mxu0 0.0
    %3454 = vmatprep.subr.mxu0 0.0
    %3455 = vmatpush1.msra.mxu0 0.0
    %3456 = vmatprep.subr.mxu0 0.0
    %3457 = vmatpush1.msra.mxu0 0.0
    %3458 = vmatprep.subr.mxu0 0.0
    %3459 = vmatpush1.msra.mxu0 0.0
    %3460 = vmatprep.subr.mxu0 0.0
    %3461 = vmatpush1.msra.mxu0 0.0
    %3462 = vmatprep.subr.mxu0 0.0
    %3463 = vmatpush1.msra.mxu0 0.0
    %3464 = vmatprep.subr.mxu0 0.0
    %3465 = vmatpush1.msra.mxu0 0.0
    %3466 = vmatprep.subr.mxu0 0.0
    %3467 = vmatpush1.msra.mxu0 0.0
    %3468 = vmatprep.mubr.f32.mxu0 0.0
    %3469 = vmatmul.mubr.f32.gmra.mrb[0].mxu0 %v3399
    %v3470 = vpop.f32.mrb[0].mxu0
    %v3471 = vadd.f32 %v3397, %v3470
    %v3472 = vpop.f32.mrb[0].mxu0
    %3473 = vmatprep.mubr.f32.mxu0 0.0
    %3474 = vmatmul.mubr.f32.gmra.mrb[0].mxu0 %v3402
    %v3475 = vpop.f32.mrb[0].mxu0
    %v3476 = vadd.f32 %v3397, %v3475
    %v3477 = vpop.f32.mrb[0].mxu0
    %3478 = vdwg.mxu0
    %v3479 = vmax.f32 %v3471, 0.0
    %v3480 = vmax.f32 %v3476, 0.0
    %v3481 = vlaneseq
    %v3482 = vshrl.u32 %v3481, 7
    %v3483 = vsub.s32 5, %v3482
    %v3484 = vrot.slane %v1942, %v3483
    %3485 = vmatprep.subr.mxu0 0.0
    %3486 = vmatpush1.msra.mxu0 %v1925
    %3487 = vmatprep.subr.mxu0 0.0
    %3488 = vmatpush1.msra.mxu0 %v1926
    %3489 = vmatprep.subr.mxu0 0.0
    %3490 = vmatpush1.msra.mxu0 %v1927
    %3491 = vmatprep.subr.mxu0 0.0
    %3492 = vmatpush1.msra.mxu0 %v1928
    %3493 = vmatprep.subr.mxu0 0.0
    %3494 = vmatpush1.msra.mxu0 %v1929
    %3495 = vmatprep.subr.mxu0 0.0
    %3496 = vmatpush1.msra.mxu0 %v1930
    %3497 = vmatprep.subr.mxu0 0.0
    %3498 = vmatpush1.msra.mxu0 %v1931
    %3499 = vmatprep.subr.mxu0 0.0
    %3500 = vmatpush1.msra.mxu0 %v1932
    %3501 = vmatprep.subr.mxu0 0.0
    %3502 = vmatpush1.msra.mxu0 %v1933
    %3503 = vmatprep.subr.mxu0 0.0
    %3504 = vmatpush1.msra.mxu0 %v1934
    %3505 = vmatprep.subr.mxu0 0.0
    %3506 = vmatpush1.msra.mxu0 %v1935
    %3507 = vmatprep.subr.mxu0 0.0
    %3508 = vmatpush1.msra.mxu0 %v1936
    %3509 = vmatprep.subr.mxu0 0.0
    %3510 = vmatpush1.msra.mxu0 %v1937
    %3511 = vmatprep.subr.mxu0 0.0
    %3512 = vmatpush1.msra.mxu0 %v1938
    %3513 = vmatprep.subr.mxu0 0.0
    %3514 = vmatpush1.msra.mxu0 %v1939
    %3515 = vmatprep.subr.mxu0 0.0
    %3516 = vmatpush1.msra.mxu0 %v1940
    %3517 = vmatprep.subr.mxu0 0.0
    %3518 = vmatpush1.msra.mxu0 0.0
    %3519 = vmatprep.subr.mxu0 0.0
    %3520 = vmatpush1.msra.mxu0 0.0
    %3521 = vmatprep.subr.mxu0 0.0
    %3522 = vmatpush1.msra.mxu0 0.0
    %3523 = vmatprep.subr.mxu0 0.0
    %3524 = vmatpush1.msra.mxu0 0.0
    %3525 = vmatprep.subr.mxu0 0.0
    %3526 = vmatpush1.msra.mxu0 0.0
    %3527 = vmatprep.subr.mxu0 0.0
    %3528 = vmatpush1.msra.mxu0 0.0
    %3529 = vmatprep.subr.mxu0 0.0
    %3530 = vmatpush1.msra.mxu0 0.0
    %3531 = vmatprep.subr.mxu0 0.0
    %3532 = vmatpush1.msra.mxu0 0.0
    %3533 = vmatprep.subr.mxu0 0.0
    %3534 = vmatpush1.msra.mxu0 0.0
    %3535 = vmatprep.subr.mxu0 0.0
    %3536 = vmatpush1.msra.mxu0 0.0
    %3537 = vmatprep.subr.mxu0 0.0
    %3538 = vmatpush1.msra.mxu0 0.0
    %3539 = vmatprep.subr.mxu0 0.0
    %3540 = vmatpush1.msra.mxu0 0.0
    %3541 = vmatprep.subr.mxu0 0.0
    %3542 = vmatpush1.msra.mxu0 0.0
    %3543 = vmatprep.subr.mxu0 0.0
    %3544 = vmatpush1.msra.mxu0 0.0
    %3545 = vmatprep.subr.mxu0 0.0
    %3546 = vmatpush1.msra.mxu0 0.0
    %3547 = vmatprep.subr.mxu0 0.0
    %3548 = vmatpush1.msra.mxu0 0.0
    %3549 = vmatprep.mubr.f32.mxu0 0.0
    %3550 = vmatmul.mubr.f32.gmra.mrb[0].mxu0 %v3479
    %v3551 = vpop.f32.mrb[0].mxu0
    %v3552 = vadd.f32 %v3484, %v3551
    %v3553 = vpop.f32.mrb[0].mxu0
    %3554 = vmatprep.mubr.f32.mxu0 0.0
    %3555 = vmatmul.mubr.f32.gmra.mrb[0].mxu0 %v3480
    %v3556 = vpop.f32.mrb[0].mxu0
    %v3557 = vadd.f32 %v3484, %v3556
    %v3558 = vpop.f32.mrb[0].mxu0
    %3559 = vdwg.mxu0
    %v3560 = vadd.f32 %v3354, %v3552
    %v3561 = vadd.f32 %v3355, %v3557
    %v3562 = vld [vmem:[%s8] sm:$0xff]
    %v3563 = vsel %vm280, %v3560, 0.0
    %3564 = vadd.xlane.f32.xlu0 %v3563
    %v3565 = vpop.xlane.xlu0 %3564
    %v3566 = vsel %vm280, %v3561, 0.0
    %3567 = vadd.xlane.f32.xlu0 %v3566
    %v3568 = vpop.xlane.xlu0 %3567
    %v3569 = vmul.f32 %v3565, %v287
    %v3570 = vmul.f32 %v3568, %v287
    %v3571 = vsub.f32 %v3560, %v3569
    %v3572 = vsub.f32 %v3561, %v3570
    %v3573 = vmul.f32 %v3571, %v3571
    %v3574 = vmul.f32 %v3572, %v3572
    %v3575 = vsel %vm280, %v3573, 0.0
    %3576 = vadd.xlane.f32.xlu0 %v3575
    %v3577 = vpop.xlane.xlu0 %3576
    %v3578 = vsel %vm280, %v3574, 0.0
    %3579 = vadd.xlane.f32.xlu0 %v3578
    %v3580 = vpop.xlane.xlu0 %3579
    %v3581 = vmul.f32 %v3577, %v287
    %v3582 = vmul.f32 %v3580, %v287
    %v3583 = vadd.f32 %v3581, 1e-05
    %v3584 = vadd.f32 %v3582, 1e-05
    %v3585 = vrsqrt.pop %v3583
    %v3586 = vrsqrt.pop %v3584
    %v3587 = vmul.f32 %v3571, %v3585
    %v3588 = vmul.f32 %v3572, %v3586
    %v3589 = vlaneseq
    %v3590 = vshrl.u32 %v3589, 7
    %v3591 = vsub.s32 0, %v3590
    %v3592 = vrot.slane %v3562, %v3591
    %v3593 = vmul.f32 %v3587, %v3592
    %v3594 = vmul.f32 %v3588, %v3592
    %v3595 = vlaneseq
    %v3596 = vshrl.u32 %v3595, 7
    %v3597 = vsub.s32 1, %v3596
    %v3598 = vrot.slane %v3562, %v3597
    %v3599 = vadd.f32 %v3593, %v3598
    %v3600 = vadd.f32 %v3594, %v3598
    %v3601 = vld [vmem:[%s7] sm:$0xff]
    %v3602 = vld [vmem:[%s7 + $0x8] sm:$0xff]
    %v3603 = vld [vmem:[%s7 + $0x10] sm:$0xff]
    %v3604 = vld [vmem:[%s7 + $0x18] sm:$0xff]
    %v3605 = vlaneseq
    %v3606 = vshrl.u32 %v3605, 7
    %v3607 = vsub.s32 2, %v3606
    %v3608 = vrot.slane %v3562, %v3607
    %v3610 = vsel %vm280, %v3599, 0
    %v3613 = vsel %vm280, %v3600, 0
    %3615 = vmatprep.subr.mxu0 0.0
    %3616 = vmatpush1.msra.mxu0 %v3601
    %3617 = vmatprep.subr.mxu0 0.0
    %3618 = vmatpush1.msra.mxu0 %v3602
    %3619 = vmatprep.subr.mxu0 0.0
    %3620 = vmatpush1.msra.mxu0 %v3603
    %3621 = vmatprep.subr.mxu0 0.0
    %3622 = vmatpush1.msra.mxu0 %v3604
    %3623 = vmatprep.subr.mxu0 0.0
    %3624 = vmatpush1.msra.mxu0 0.0
    %3625 = vmatprep.subr.mxu0 0.0
    %3626 = vmatpush1.msra.mxu0 0.0
    %3627 = vmatprep.subr.mxu0 0.0
    %3628 = vmatpush1.msra.mxu0 0.0
    %3629 = vmatprep.subr.mxu0 0.0
    %3630 = vmatpush1.msra.mxu0 0.0
    %3631 = vmatprep.subr.mxu0 0.0
    %3632 = vmatpush1.msra.mxu0 0.0
    %3633 = vmatprep.subr.mxu0 0.0
    %3634 = vmatpush1.msra.mxu0 0.0
    %3635 = vmatprep.subr.mxu0 0.0
    %3636 = vmatpush1.msra.mxu0 0.0
    %3637 = vmatprep.subr.mxu0 0.0
    %3638 = vmatpush1.msra.mxu0 0.0
    %3639 = vmatprep.subr.mxu0 0.0
    %3640 = vmatpush1.msra.mxu0 0.0
    %3641 = vmatprep.subr.mxu0 0.0
    %3642 = vmatpush1.msra.mxu0 0.0
    %3643 = vmatprep.subr.mxu0 0.0
    %3644 = vmatpush1.msra.mxu0 0.0
    %3645 = vmatprep.subr.mxu0 0.0
    %3646 = vmatpush1.msra.mxu0 0.0
    %3647 = vmatprep.subr.mxu0 0.0
    %3648 = vmatpush1.msra.mxu0 0.0
    %3649 = vmatprep.subr.mxu0 0.0
    %3650 = vmatpush1.msra.mxu0 0.0
    %3651 = vmatprep.subr.mxu0 0.0
    %3652 = vmatpush1.msra.mxu0 0.0
    %3653 = vmatprep.subr.mxu0 0.0
    %3654 = vmatpush1.msra.mxu0 0.0
    %3655 = vmatprep.subr.mxu0 0.0
    %3656 = vmatpush1.msra.mxu0 0.0
    %3657 = vmatprep.subr.mxu0 0.0
    %3658 = vmatpush1.msra.mxu0 0.0
    %3659 = vmatprep.subr.mxu0 0.0
    %3660 = vmatpush1.msra.mxu0 0.0
    %3661 = vmatprep.subr.mxu0 0.0
    %3662 = vmatpush1.msra.mxu0 0.0
    %3663 = vmatprep.subr.mxu0 0.0
    %3664 = vmatpush1.msra.mxu0 0.0
    %3665 = vmatprep.subr.mxu0 0.0
    %3666 = vmatpush1.msra.mxu0 0.0
    %3667 = vmatprep.subr.mxu0 0.0
    %3668 = vmatpush1.msra.mxu0 0.0
    %3669 = vmatprep.subr.mxu0 0.0
    %3670 = vmatpush1.msra.mxu0 0.0
    %3671 = vmatprep.subr.mxu0 0.0
    %3672 = vmatpush1.msra.mxu0 0.0
    %3673 = vmatprep.subr.mxu0 0.0
    %3674 = vmatpush1.msra.mxu0 0.0
    %3675 = vmatprep.subr.mxu0 0.0
    %3676 = vmatpush1.msra.mxu0 0.0
    %3677 = vmatprep.subr.mxu0 0.0
    %3678 = vmatpush1.msra.mxu0 0.0
    %3679 = vmatprep.mubr.f32.mxu0 0.0
    %3680 = vmatmul.mubr.f32.gmra.mrb[0].mxu0 %v3610
    %v3681 = vpop.f32.mrb[0].mxu0
    %v3682 = vadd.f32 %v3608, %v3681
    %v3683 = vpop.f32.mrb[0].mxu0
    %3684 = vmatprep.mubr.f32.mxu0 0.0
    %3685 = vmatmul.mubr.f32.gmra.mrb[0].mxu0 %v3613
    %v3686 = vpop.f32.mrb[0].mxu0
    %v3687 = vadd.f32 %v3608, %v3686
    %v3688 = vpop.f32.mrb[0].mxu0
    %3689 = vdwg.mxu0
    %3690 = vst [vmem:[#allocation2] sm:$0xff] %v3682
    %3691 = vst [vmem:[#allocation2 + $0x8] sm:$0xff] %v3687
    // Predicated region
    $region38: #{gpt_forward.1} parent=1 // pred_check
      _
    $region39: #{gpt_forward.1} parent=1 // pred_check_branch
      %3693 = sbr.rel (0) target = $region41
    $region40: #{gpt_forward.1} parent=1 // pred_region
      %s3695 = ssub.s32 256, 256
      %3696 = vsyncadd [#allocation3], %s3695
      %s3697 = sshll.u32 [#allocation2], 4
      %s3698 = int_to_ptr.vmem [resolvable:$true] %s3697
      %3703 = dma.vmem_to_hbm [thread:$0]  %s3698, 256, %s9, [#allocation3], 128, 128, 8
    $region41: #{gpt_forward.1} parent=1 // pred_fallthru
      _
    // Predicated region
    $region42: #{gpt_forward.1} parent=1 // pred_check
      _
    $region43: #{gpt_forward.1} parent=1 // pred_check_branch
      %3705 = sbr.rel (0) target = $region45
    $region44: #{gpt_forward.1} parent=1 // pred_region
      %3706 = dma.done [#allocation3], 256
    $region45: #{gpt_forward.1} parent=1 // pred_fallthru
      _
    %3707 = vsyncpa [#allocation3], 1

</llo_original>
